<compile_context>
chip_gen: v5e
topology: v5e:2x2
jax: 0.10.0
libtpu: 0.0.40
codegen_flags: <defaults>
</compile_context>

<pallas_src>
import functools

import numpy as np
import jax
import jax.numpy as jnp
from jax import lax
from jax.experimental import pallas as pl
from jax.experimental.pallas import tpu as pltpu


# ---------------------------------------------------------------------------
# Host-side weight packing (pure numpy glue, done once outside jit)
# ---------------------------------------------------------------------------
def _fuse_taps(w_oihw):
    """(Cout, Cin, 3, 3) -> (Cout, 9*Cin); column block t=ky*3+kx = w[:,:,ky,kx]."""
    co, ci, kh, kw = w_oihw.shape
    return np.transpose(w_oihw, (0, 2, 3, 1)).reshape(co, kh * kw * ci)


def _fold_post_shuffle_conv(w_oihw, b, nf, r):
    """Fold Conv2d(nf, cout, 3, pad=1) applied AFTER PixelShuffle(r) into an
    equivalent 3x3 SAME conv on the pre-shuffle (nf*r*r, H, W) tensor
    (sub-pixel convolution identity)."""
    cout = w_oihw.shape[0]
    w_pre = np.zeros((cout * r * r, nf * r * r, 3, 3), np.float32)
    b_pre = np.zeros((cout * r * r,), np.float32)
    for o in range(cout):
        for dy in range(r):
            for dx in range(r):
                oc = o * r * r + dy * r + dx
                b_pre[oc] = b[o]
                for ky in range(3):
                    ay = dy + ky - 1
                    qy, ry = ay // r, ay % r        # python floor-div handles -1
                    for kx in range(3):
                        ax = dx + kx - 1
                        qx, rx = ax // r, ax % r
                        for c in range(nf):
                            ic = c * r * r + ry * r + rx
                            w_pre[oc, ic, qy + 1, qx + 1] = w_oihw[o, c, ky, kx]
    return w_pre, b_pre


def pack_params(params):
    body = params["body"]
    nf = body[0][0].shape[0]
    r = params["scale"]
    cin0 = body[0][0].shape[1]
    cin_pad = max(cin0, 8)

    def f32(a):
        return np.asarray(a, np.float32)

    convs = []
    w0 = np.pad(f32(body[0][0]), ((0, 0), (0, cin_pad - cin0), (0, 0), (0, 0)))
    convs.append((jnp.asarray(_fuse_taps(w0), jnp.bfloat16),
                  jnp.asarray(f32(body[0][1]).reshape(-1, 1))))
    for w, b in body[1:]:
        convs.append((jnp.asarray(_fuse_taps(f32(w)), jnp.bfloat16),
                      jnp.asarray(f32(b).reshape(-1, 1))))

    # Channel-attention FC (1x1 convs, bias=False); pad bottleneck K to >= 8.
    ca1, ca2 = f32(params["ca_w1"]), f32(params["ca_w2"])
    rdim = ca1.shape[0]
    rp = max(rdim, 8)
    ca_w1 = np.zeros((rp, nf), np.float32); ca_w1[:rdim] = ca1
    ca_w2 = np.zeros((nf, rp), np.float32); ca_w2[:, :rdim] = ca2

    # Spatial-attention 7x7 conv, channels [avg, max]; packed as (1, 49*8):
    # slot 8*t+0 = avg weight, 8*t+1 = max weight, rest zero (tap pieces stay
    # 8-sublane aligned in the in-kernel stack).
    sa = f32(params["sa_w"])[0]                         # (2, 7, 7)
    sa_w = np.zeros((1, 49 * 8), np.float32)
    for ky in range(7):
        for kx in range(7):
            t = ky * 7 + kx
            sa_w[0, 8 * t + 0] = sa[0, ky, kx]
            sa_w[0, 8 * t + 1] = sa[1, ky, kx]

    up_w = jnp.asarray(_fuse_taps(f32(params["up1_w"])), jnp.bfloat16)
    up_b = jnp.asarray(f32(params["up1_b"]).reshape(-1, 1))

    fin_pre_w, fin_pre_b = _fold_post_shuffle_conv(
        f32(params["up2_w"]), f32(params["up2_b"]), nf, r)
    cout_fin = fin_pre_w.shape[0]                       # 3 * r * r
    cout_pad = ((cout_fin + 7) // 8) * 8                # unmasked 8-sublane stores
    fin_w = np.zeros((cout_pad, fin_pre_w.shape[1], 3, 3), np.float32)
    fin_w[:cout_fin] = fin_pre_w
    fin_b = np.zeros((cout_pad, 1), np.float32)
    fin_b[:cout_fin, 0] = fin_pre_b

    return {
        "convs": convs,
        "ca_w1": jnp.asarray(ca_w1), "ca_w2": jnp.asarray(ca_w2),
        "sa_w": jnp.asarray(sa_w, jnp.bfloat16),
        "up_w": up_w, "up_b": up_b,
        "fin_w": jnp.asarray(_fuse_taps(fin_w), jnp.bfloat16),
        "fin_b": jnp.asarray(fin_b),
        "nf": nf, "scale": r, "cin_pad": cin_pad,
        "cout_fin": cout_fin, "cout_pad": cout_pad,
    }


# ---------------------------------------------------------------------------
# Fused kernel: body convs + CBAM (channel + spatial) + upsample conv +
# (folded) post-shuffle conv — one launch per image, all activations in VMEM.
# ---------------------------------------------------------------------------
def _srnet_kernel(*refs, num_blocks, H, W):
    M = H * W
    x_ref, masks_ref = refs[0], refs[1]
    pos = 2
    conv_wb = []
    for _ in range(num_blocks):
        conv_wb.append((refs[pos], refs[pos + 1])); pos += 2
    ca_w1_ref, ca_w2_ref, sa_w_ref = refs[pos], refs[pos + 1], refs[pos + 2]; pos += 3
    up_w_ref, up_b_ref = refs[pos], refs[pos + 1]; pos += 2
    fin_w_ref, fin_b_ref = refs[pos], refs[pos + 1]; pos += 2
    o_ref = refs[pos]

    # Hoisted boundary masks: each of the 49 rows is loaded at most once and
    # reused by every conv layer and the spatial-attention conv.
    mask_cache = {}

    def get_mask(oy, ox):
        key = (oy, ox)
        if key not in mask_cache:
            t = (oy + 3) * 7 + (ox + 3)
            mask_cache[key] = masks_ref[t:t + 1, :]       # (1, M) f32
        return mask_cache[key]

    def tap_stack(act, k):
        """Masked shifted copies of `act` for all k*k SAME-conv taps, stacked
        along channels -> (k*k*C, M) bf16 (in-VMEM im2col)."""
        half = k // 2
        pieces = []
        for oy in range(-half, half + 1):
            for ox in range(-half, half + 1):
                if oy == 0 and ox == 0:
                    pieces.append(act)
                else:
                    shift = (-(oy * W + ox)) % M
                    rolled = pltpu.roll(act, shift, axis=1)   # XLU lane rotation
                    pieces.append(rolled * get_mask(oy, ox))
        return jnp.concatenate(pieces, axis=0).astype(jnp.bfloat16)

    def conv3x3(act, w_ref, b_ref, relu):
        """3x3 SAME conv as ONE (Cout, 9*Cin)@(9*Cin, M) MXU matmul (+bias/ReLU)."""
        out = jnp.dot(w_ref[...], tap_stack(act, 3),
                      preferred_element_type=jnp.float32)
        out = out + b_ref[...]
        return jnp.maximum(out, 0.0) if relu else out

    # ---- body: conv3x3 + ReLU blocks (activations stay resident in VMEM) ----
    act = x_ref[0]
    for w_ref, b_ref in conv_wb:
        act = conv3x3(act, w_ref, b_ref, relu=True)

    # ---- CBAM channel attention: GAP (MXU) -> FC -> ReLU -> FC -> sigmoid ----
    C = act.shape[0]
    gap = jnp.dot(act, jnp.full((M, 1), 1.0 / M, jnp.float32),
                  preferred_element_type=jnp.float32)                    # (C, 1)
    h = jnp.maximum(jnp.dot(ca_w1_ref[...], gap,
                            preferred_element_type=jnp.float32), 0.0)
    catt = jax.nn.sigmoid(jnp.dot(ca_w2_ref[...], h,
                                  preferred_element_type=jnp.float32))   # (C, 1)
    ca = act * catt                                                      # (C, M)

    # ---- CBAM spatial attention: [avg_c, max_c] -> 7x7 conv (MXU) -> sigmoid
    avg = jnp.dot(jnp.full((1, C), 1.0 / C, jnp.float32), ca,
                  preferred_element_type=jnp.float32)                    # (1, M)
    mx = jnp.max(ca, axis=0, keepdims=True)                              # (1, M)
    row = lax.broadcasted_iota(jnp.int32, (8, 1), 0)
    base = jnp.where(row == 0, avg, 0.0) + jnp.where(row == 1, mx, 0.0)  # (8, M)
    s = jnp.dot(sa_w_ref[...], tap_stack(base, 7),
                preferred_element_type=jnp.float32)                      # (1, M)
    attended = ca * jax.nn.sigmoid(s)

    # ---- upsample conv nf -> nf*r^2 (pre-shuffle layout), no activation ----
    up = conv3x3(attended, up_w_ref, up_b_ref, relu=False)

    # ---- final 3x3 conv folded into pre-shuffle space (sub-pixel identity) ----
    out = conv3x3(up, fin_w_ref, fin_b_ref, relu=False)
    o_ref[0] = out.astype(o_ref.dtype)


# ---------------------------------------------------------------------------
# Wrapper: layout glue + single pallas_call + tiny output pixel-shuffle
# ---------------------------------------------------------------------------
def srnet_cbam_forward(packed, x_nchw):
    N, Cin, H, W = x_nchw.shape
    M = H * W
    r = packed["scale"]
    cin_pad = packed["cin_pad"]
    cout_fin = packed["cout_fin"]
    cout_pad = packed["cout_pad"]
    num_blocks = len(packed["convs"])

    # NCHW -> lane-dense (N, cin_pad, H*W), zero-pad RGB channels to 8.
    x_flat = jnp.pad(x_nchw.reshape(N, Cin, M),
                     ((0, 0), (0, cin_pad - Cin), (0, 0)))

    # Host-precomputed boundary-mask table: one row per 7x7 offset (the 3x3
    # offsets are the inner 9 rows); keeps div/mod + mask math out of the kernel.
    xi = jnp.arange(M, dtype=jnp.int32) % W
    yi = jnp.arange(M, dtype=jnp.int32) // W
    off = jnp.arange(49, dtype=jnp.int32)
    oy = off // 7 - 3
    ox = off % 7 - 3
    masks = ((xi[None, :] >= -ox[:, None]) & (xi[None, :] < W - ox[:, None]) &
             (yi[None, :] >= -oy[:, None]) & (yi[None, :] < H - oy[:, None])
             ).astype(jnp.float32)                                      # (49, M)

    operands = [x_flat, masks]
    for w, b in packed["convs"]:
        operands += [w, b]
    operands += [packed["ca_w1"], packed["ca_w2"], packed["sa_w"],
                 packed["up_w"], packed["up_b"], packed["fin_w"], packed["fin_b"]]

    def resident(a):
        nd = a.ndim
        return pl.BlockSpec(a.shape, lambda n, _nd=nd: (0,) * _nd)

    in_specs = [pl.BlockSpec((1, cin_pad, M), lambda n: (n, 0, 0))]
    in_specs += [resident(a) for a in operands[1:]]       # weights/masks resident

    out_pre = pl.pallas_call(
        functools.partial(_srnet_kernel, num_blocks=num_blocks, H=H, W=W),
        out_shape=jax.ShapeDtypeStruct((N, cout_pad, M), x_nchw.dtype),
        grid=(N,),
        in_specs=in_specs,
        out_specs=pl.BlockSpec((1, cout_pad, M), lambda n: (n, 0, 0)),
        compiler_params=pltpu.CompilerParams(
            dimension_semantics=("parallel",)),
    )(*operands)

    # PixelShuffle of the tiny (3*r*r, H, W) kernel output (pure layout glue).
    out = out_pre[:, :cout_fin].reshape(N, cout_fin // (r * r), r, r, H, W)
    out = out.transpose(0, 1, 4, 2, 5, 3).reshape(N, -1, H * r, W * r)
    return out


# ---------------------------------------------------------------------------
# Deterministic synthetic parameters (PyTorch OIHW layout) + pure-JAX reference
# ---------------------------------------------------------------------------
def init_params(key, nf=16, scale=2, num_blocks=3, reduction=16):
    keys = iter(jax.random.split(key, 2 * num_blocks + 8))

    def conv_w(k, cout, cin, ksz, std=0.1):
        return std * jax.random.normal(k, (cout, cin, ksz, ksz), jnp.float32)

    body = []
    cin = 3
    for _ in range(num_blocks):                 # Conv2d(cin, nf, 3, pad=1) + ReLU
        w = conv_w(next(keys), nf, cin, 3)
        b = 0.01 * jax.random.normal(next(keys), (nf,), jnp.float32)
        body.append((w, b))
        cin = nf

    rdim = nf // reduction                      # channels // reduction, as in PyTorch
    assert rdim >= 1, "nf // reduction must be >= 1"
    return {
        "body": body,
        "ca_w1": 0.1 * jax.random.normal(next(keys), (rdim, nf), jnp.float32),
        "ca_w2": 0.1 * jax.random.normal(next(keys), (nf, rdim), jnp.float32),
        "sa_w": 0.1 * jax.random.normal(next(keys), (1, 2, 7, 7), jnp.float32),
        "up1_w": conv_w(next(keys), nf * scale * scale, nf, 3),
        "up1_b": 0.01 * jax.random.normal(next(keys), (nf * scale * scale,),
                                          jnp.float32),
        "up2_w": conv_w(next(keys), 3, nf, 3),
        "up2_b": 0.01 * jax.random.normal(next(keys), (3,), jnp.float32),
        "scale": scale,
    }


def _reference_forward(params, x):
    """Pure-JAX (XLA) replica of the PyTorch SRNet_CBAM forward, for validation."""
    def conv(z, w, b=None, pad=0):
        out = lax.conv_general_dilated(
            z, w, (1, 1), [(pad, pad), (pad, pad)],
            dimension_numbers=("NCHW", "OIHW", "NCHW"))
        if b is not None:
            out = out + b.reshape(1, -1, 1, 1)
        return out

    out = x
    for w, b in params["body"]:
        out = jax.nn.relu(conv(out, w, b, pad=1))
    # CBAM channel attention (avg-pool branch only, per the reference module).
    gap = jnp.mean(out, axis=(2, 3), keepdims=True)
    h = jax.nn.relu(conv(gap, params["ca_w1"][:, :, None, None]))
    catt = jax.nn.sigmoid(conv(h, params["ca_w2"][:, :, None, None]))
    ca = out * catt
    # CBAM spatial attention.
    sa_in = jnp.concatenate([jnp.mean(ca, axis=1, keepdims=True),
                             jnp.max(ca, axis=1, keepdims=True)], axis=1)
    att = ca * jax.nn.sigmoid(conv(sa_in, params["sa_w"], pad=3))
    # Upsample: conv -> PixelShuffle(r) -> conv.
    up = conv(att, params["up1_w"], params["up1_b"], pad=1)
    N, C, H, W = up.shape
    r = params["scale"]
    nf = C // (r * r)
    up = up.reshape(N, nf, r, r, H, W).transpose(0, 1, 4, 2, 5, 3)
    up = up.reshape(N, nf, H * r, W * r)
    return conv(up, params["up2_w"], params["up2_b"], pad=1)


if __name__ == "__main__":
    key = jax.random.PRNGKey(0)
    kx, kp = jax.random.split(key)

    # Small demo: batch=2, RGB 16x16 input, nf=16, scale=2, 3 body blocks.
    x = jax.random.normal(kx, (2, 3, 16, 16), jnp.float32)   # NCHW, like PyTorch
    params = init_params(kp, nf=16, scale=2, num_blocks=3, reduction=16)
    packed = pack_params(params)

    fwd = jax.jit(functools.partial(srnet_cbam_forward, packed))
    y = fwd(x)
    jax.block_until_ready(y)

    assert y.shape == (2, 3, 32, 32), y.shape
    assert bool(jnp.all(jnp.isfinite(y)))

    # Numerical sanity check vs. a pure-JAX f32 reference (bf16 MXU tolerance).
    y_ref = jax.jit(functools.partial(_reference_forward, params))(x)
    err = float(jnp.max(jnp.abs(y - y_ref)))
    assert err < 5e-3, f"max abs err vs reference: {err}"

    print("KERNEL_OK")
</pallas_src>

<mosaic_0001>
module attributes {stable_mosaic.version = 11 : i64} {
  func.func @_srnet_kernel(%arg0: i32, %arg1: memref<1x8x256xf32, #tpu.memory_space<vmem>>, %arg2: memref<49x256xf32, #tpu.memory_space<vmem>>, %arg3: memref<16x72xbf16, #tpu.memory_space<vmem>>, %arg4: memref<16x1xf32, #tpu.memory_space<vmem>>, %arg5: memref<16x144xbf16, #tpu.memory_space<vmem>>, %arg6: memref<16x1xf32, #tpu.memory_space<vmem>>, %arg7: memref<16x144xbf16, #tpu.memory_space<vmem>>, %arg8: memref<16x1xf32, #tpu.memory_space<vmem>>, %arg9: memref<8x16xf32, #tpu.memory_space<vmem>>, %arg10: memref<16x8xf32, #tpu.memory_space<vmem>>, %arg11: memref<1x392xbf16, #tpu.memory_space<vmem>>, %arg12: memref<64x144xbf16, #tpu.memory_space<vmem>>, %arg13: memref<64x1xf32, #tpu.memory_space<vmem>>, %arg14: memref<16x576xbf16, #tpu.memory_space<vmem>>, %arg15: memref<16x1xf32, #tpu.memory_space<vmem>>, %arg16: memref<1x16x256xf32, #tpu.memory_space<vmem>>) attributes {dimension_semantics = [#tpu.dimension_semantics<parallel>], iteration_bounds = array<i64: 2>, scalar_prefetch = 0 : i64, scratch_operands = 0 : i64, tpu.core_type = #tpu.core_type<tc>, window_params = [{transform_indices = @transform_0, window_bounds = array<i64: 1, 8, 256>}, {pipeline_mode = #tpu.pipeline_mode<synchronous>, transform_indices = @transform_1, window_bounds = array<i64: 49, 256>}, {pipeline_mode = #tpu.pipeline_mode<synchronous>, transform_indices = @transform_2, window_bounds = array<i64: 16, 72>}, {pipeline_mode = #tpu.pipeline_mode<synchronous>, transform_indices = @transform_3, window_bounds = array<i64: 16, 1>}, {pipeline_mode = #tpu.pipeline_mode<synchronous>, transform_indices = @transform_4, window_bounds = array<i64: 16, 144>}, {pipeline_mode = #tpu.pipeline_mode<synchronous>, transform_indices = @transform_5, window_bounds = array<i64: 16, 1>}, {pipeline_mode = #tpu.pipeline_mode<synchronous>, transform_indices = @transform_6, window_bounds = array<i64: 16, 144>}, {pipeline_mode = #tpu.pipeline_mode<synchronous>, transform_indices = @transform_7, window_bounds = array<i64: 16, 1>}, {pipeline_mode = #tpu.pipeline_mode<synchronous>, transform_indices = @transform_8, window_bounds = array<i64: 8, 16>}, {pipeline_mode = #tpu.pipeline_mode<synchronous>, transform_indices = @transform_9, window_bounds = array<i64: 16, 8>}, {pipeline_mode = #tpu.pipeline_mode<synchronous>, transform_indices = @transform_10, window_bounds = array<i64: 1, 392>}, {pipeline_mode = #tpu.pipeline_mode<synchronous>, transform_indices = @transform_11, window_bounds = array<i64: 64, 144>}, {pipeline_mode = #tpu.pipeline_mode<synchronous>, transform_indices = @transform_12, window_bounds = array<i64: 64, 1>}, {pipeline_mode = #tpu.pipeline_mode<synchronous>, transform_indices = @transform_13, window_bounds = array<i64: 16, 576>}, {pipeline_mode = #tpu.pipeline_mode<synchronous>, transform_indices = @transform_14, window_bounds = array<i64: 16, 1>}, {transform_indices = @transform_15, window_bounds = array<i64: 1, 16, 256>}]} {
    %c0 = arith.constant 0 : index
    %c0_0 = arith.constant 0 : index
    %c0_1 = arith.constant 0 : index
    %0 = vector.load %arg1[%c0, %c0_0, %c0_1] : memref<1x8x256xf32, #tpu.memory_space<vmem>>, vector<1x8x256xf32>
    %1 = vector.shape_cast %0 : vector<1x8x256xf32> to vector<8x256xf32>
    %c0_2 = arith.constant 0 : index
    %c0_3 = arith.constant 0 : index
    %2 = vector.load %arg3[%c0_2, %c0_3] : memref<16x72xbf16, #tpu.memory_space<vmem>>, vector<16x72xbf16>
    %c17_i32 = arith.constant 17 : i32
    %3 = tpu.dynamic_rotate %1 by %c17_i32 dim 1 : vector<8x256xf32>, i32 -> vector<8x256xf32>
    %c16 = arith.constant 16 : index
    %c0_4 = arith.constant 0 : index
    %4 = vector.load %arg2[%c16, %c0_4] : memref<49x256xf32, #tpu.memory_space<vmem>>, vector<1x256xf32>
    %5 = vector.broadcast %4 : vector<1x256xf32> to vector<8x256xf32>
    %6 = arith.mulf %3, %5 : vector<8x256xf32>
    %c16_i32 = arith.constant 16 : i32
    %7 = tpu.dynamic_rotate %1 by %c16_i32 dim 1 : vector<8x256xf32>, i32 -> vector<8x256xf32>
    %c17 = arith.constant 17 : index
    %c0_5 = arith.constant 0 : index
    %8 = vector.load %arg2[%c17, %c0_5] : memref<49x256xf32, #tpu.memory_space<vmem>>, vector<1x256xf32>
    %9 = vector.broadcast %8 : vector<1x256xf32> to vector<8x256xf32>
    %10 = arith.mulf %7, %9 : vector<8x256xf32>
    %c15_i32 = arith.constant 15 : i32
    %11 = tpu.dynamic_rotate %1 by %c15_i32 dim 1 : vector<8x256xf32>, i32 -> vector<8x256xf32>
    %c18 = arith.constant 18 : index
    %c0_6 = arith.constant 0 : index
    %12 = vector.load %arg2[%c18, %c0_6] : memref<49x256xf32, #tpu.memory_space<vmem>>, vector<1x256xf32>
    %13 = vector.broadcast %12 : vector<1x256xf32> to vector<8x256xf32>
    %14 = arith.mulf %11, %13 : vector<8x256xf32>
    %c1_i32 = arith.constant 1 : i32
    %15 = tpu.dynamic_rotate %1 by %c1_i32 dim 1 : vector<8x256xf32>, i32 -> vector<8x256xf32>
    %c23 = arith.constant 23 : index
    %c0_7 = arith.constant 0 : index
    %16 = vector.load %arg2[%c23, %c0_7] : memref<49x256xf32, #tpu.memory_space<vmem>>, vector<1x256xf32>
    %17 = vector.broadcast %16 : vector<1x256xf32> to vector<8x256xf32>
    %18 = arith.mulf %15, %17 : vector<8x256xf32>
    %c255_i32 = arith.constant 255 : i32
    %19 = tpu.dynamic_rotate %1 by %c255_i32 dim 1 : vector<8x256xf32>, i32 -> vector<8x256xf32>
    %c25 = arith.constant 25 : index
    %c0_8 = arith.constant 0 : index
    %20 = vector.load %arg2[%c25, %c0_8] : memref<49x256xf32, #tpu.memory_space<vmem>>, vector<1x256xf32>
    %21 = vector.broadcast %20 : vector<1x256xf32> to vector<8x256xf32>
    %22 = arith.mulf %19, %21 : vector<8x256xf32>
    %c241_i32 = arith.constant 241 : i32
    %23 = tpu.dynamic_rotate %1 by %c241_i32 dim 1 : vector<8x256xf32>, i32 -> vector<8x256xf32>
    %c30 = arith.constant 30 : index
    %c0_9 = arith.constant 0 : index
    %24 = vector.load %arg2[%c30, %c0_9] : memref<49x256xf32, #tpu.memory_space<vmem>>, vector<1x256xf32>
    %25 = vector.broadcast %24 : vector<1x256xf32> to vector<8x256xf32>
    %26 = arith.mulf %23, %25 : vector<8x256xf32>
    %c240_i32 = arith.constant 240 : i32
    %27 = tpu.dynamic_rotate %1 by %c240_i32 dim 1 : vector<8x256xf32>, i32 -> vector<8x256xf32>
    %c31 = arith.constant 31 : index
    %c0_10 = arith.constant 0 : index
    %28 = vector.load %arg2[%c31, %c0_10] : memref<49x256xf32, #tpu.memory_space<vmem>>, vector<1x256xf32>
    %29 = vector.broadcast %28 : vector<1x256xf32> to vector<8x256xf32>
    %30 = arith.mulf %27, %29 : vector<8x256xf32>
    %c239_i32 = arith.constant 239 : i32
    %31 = tpu.dynamic_rotate %1 by %c239_i32 dim 1 : vector<8x256xf32>, i32 -> vector<8x256xf32>
    %c32 = arith.constant 32 : index
    %c0_11 = arith.constant 0 : index
    %32 = vector.load %arg2[%c32, %c0_11] : memref<49x256xf32, #tpu.memory_space<vmem>>, vector<1x256xf32>
    %33 = vector.broadcast %32 : vector<1x256xf32> to vector<8x256xf32>
    %34 = arith.mulf %31, %33 : vector<8x256xf32>
    %35 = tpu.concatenate %6, %10, %14, %18, %1, %22, %26, %30, %34 in 0 : vector<8x256xf32>, vector<8x256xf32>, vector<8x256xf32>, vector<8x256xf32>, vector<8x256xf32>, vector<8x256xf32>, vector<8x256xf32>, vector<8x256xf32>, vector<8x256xf32> -> vector<72x256xf32>
    %36 = arith.truncf %35 : vector<72x256xf32> to vector<72x256xbf16>
    %cst = arith.constant dense<0.000000e+00> : vector<16x256xf32>
    %37 = tpu.matmul %2, %36, %cst {dimension_numbers = #tpu.dot_dimension_numbers<[1], [0], [0], [1], [0, 0, 1, 1], [], []>} : vector<16x72xbf16>, vector<72x256xbf16>, vector<16x256xf32> -> vector<16x256xf32>
    %c0_12 = arith.constant 0 : index
    %c0_13 = arith.constant 0 : index
    %38 = vector.load %arg4[%c0_12, %c0_13] : memref<16x1xf32, #tpu.memory_space<vmem>>, vector<16x1xf32>
    %39 = vector.broadcast %38 : vector<16x1xf32> to vector<16x256xf32>
    %40 = arith.addf %37, %39 : vector<16x256xf32>
    %cst_14 = arith.constant 0.000000e+00 : f32
    %41 = vector.broadcast %cst_14 : f32 to vector<16x256xf32>
    %42 = arith.maximumf %40, %41 : vector<16x256xf32>
    %c0_15 = arith.constant 0 : index
    %c0_16 = arith.constant 0 : index
    %43 = vector.load %arg5[%c0_15, %c0_16] : memref<16x144xbf16, #tpu.memory_space<vmem>>, vector<16x144xbf16>
    %c17_i32_17 = arith.constant 17 : i32
    %44 = tpu.dynamic_rotate %42 by %c17_i32_17 dim 1 : vector<16x256xf32>, i32 -> vector<16x256xf32>
    %45 = vector.broadcast %4 : vector<1x256xf32> to vector<16x256xf32>
    %46 = arith.mulf %44, %45 : vector<16x256xf32>
    %c16_i32_18 = arith.constant 16 : i32
    %47 = tpu.dynamic_rotate %42 by %c16_i32_18 dim 1 : vector<16x256xf32>, i32 -> vector<16x256xf32>
    %48 = vector.broadcast %8 : vector<1x256xf32> to vector<16x256xf32>
    %49 = arith.mulf %47, %48 : vector<16x256xf32>
    %c15_i32_19 = arith.constant 15 : i32
    %50 = tpu.dynamic_rotate %42 by %c15_i32_19 dim 1 : vector<16x256xf32>, i32 -> vector<16x256xf32>
    %51 = vector.broadcast %12 : vector<1x256xf32> to vector<16x256xf32>
    %52 = arith.mulf %50, %51 : vector<16x256xf32>
    %c1_i32_20 = arith.constant 1 : i32
    %53 = tpu.dynamic_rotate %42 by %c1_i32_20 dim 1 : vector<16x256xf32>, i32 -> vector<16x256xf32>
    %54 = vector.broadcast %16 : vector<1x256xf32> to vector<16x256xf32>
    %55 = arith.mulf %53, %54 : vector<16x256xf32>
    %c255_i32_21 = arith.constant 255 : i32
    %56 = tpu.dynamic_rotate %42 by %c255_i32_21 dim 1 : vector<16x256xf32>, i32 -> vector<16x256xf32>
    %57 = vector.broadcast %20 : vector<1x256xf32> to vector<16x256xf32>
    %58 = arith.mulf %56, %57 : vector<16x256xf32>
    %c241_i32_22 = arith.constant 241 : i32
    %59 = tpu.dynamic_rotate %42 by %c241_i32_22 dim 1 : vector<16x256xf32>, i32 -> vector<16x256xf32>
    %60 = vector.broadcast %24 : vector<1x256xf32> to vector<16x256xf32>
    %61 = arith.mulf %59, %60 : vector<16x256xf32>
    %c240_i32_23 = arith.constant 240 : i32
    %62 = tpu.dynamic_rotate %42 by %c240_i32_23 dim 1 : vector<16x256xf32>, i32 -> vector<16x256xf32>
    %63 = vector.broadcast %28 : vector<1x256xf32> to vector<16x256xf32>
    %64 = arith.mulf %62, %63 : vector<16x256xf32>
    %c239_i32_24 = arith.constant 239 : i32
    %65 = tpu.dynamic_rotate %42 by %c239_i32_24 dim 1 : vector<16x256xf32>, i32 -> vector<16x256xf32>
    %66 = vector.broadcast %32 : vector<1x256xf32> to vector<16x256xf32>
    %67 = arith.mulf %65, %66 : vector<16x256xf32>
    %68 = tpu.concatenate %46, %49, %52, %55, %42, %58, %61, %64, %67 in 0 : vector<16x256xf32>, vector<16x256xf32>, vector<16x256xf32>, vector<16x256xf32>, vector<16x256xf32>, vector<16x256xf32>, vector<16x256xf32>, vector<16x256xf32>, vector<16x256xf32> -> vector<144x256xf32>
    %69 = arith.truncf %68 : vector<144x256xf32> to vector<144x256xbf16>
    %cst_25 = arith.constant dense<0.000000e+00> : vector<16x256xf32>
    %70 = tpu.matmul %43, %69, %cst_25 {dimension_numbers = #tpu.dot_dimension_numbers<[1], [0], [0], [1], [0, 0, 1, 1], [], []>} : vector<16x144xbf16>, vector<144x256xbf16>, vector<16x256xf32> -> vector<16x256xf32>
    %c0_26 = arith.constant 0 : index
    %c0_27 = arith.constant 0 : index
    %71 = vector.load %arg6[%c0_26, %c0_27] : memref<16x1xf32, #tpu.memory_space<vmem>>, vector<16x1xf32>
    %72 = vector.broadcast %71 : vector<16x1xf32> to vector<16x256xf32>
    %73 = arith.addf %70, %72 : vector<16x256xf32>
    %cst_28 = arith.constant 0.000000e+00 : f32
    %74 = vector.broadcast %cst_28 : f32 to vector<16x256xf32>
    %75 = arith.maximumf %73, %74 : vector<16x256xf32>
    %c0_29 = arith.constant 0 : index
    %c0_30 = arith.constant 0 : index
    %76 = vector.load %arg7[%c0_29, %c0_30] : memref<16x144xbf16, #tpu.memory_space<vmem>>, vector<16x144xbf16>
    %c17_i32_31 = arith.constant 17 : i32
    %77 = tpu.dynamic_rotate %75 by %c17_i32_31 dim 1 : vector<16x256xf32>, i32 -> vector<16x256xf32>
    %78 = vector.broadcast %4 : vector<1x256xf32> to vector<16x256xf32>
    %79 = arith.mulf %77, %78 : vector<16x256xf32>
    %c16_i32_32 = arith.constant 16 : i32
    %80 = tpu.dynamic_rotate %75 by %c16_i32_32 dim 1 : vector<16x256xf32>, i32 -> vector<16x256xf32>
    %81 = vector.broadcast %8 : vector<1x256xf32> to vector<16x256xf32>
    %82 = arith.mulf %80, %81 : vector<16x256xf32>
    %c15_i32_33 = arith.constant 15 : i32
    %83 = tpu.dynamic_rotate %75 by %c15_i32_33 dim 1 : vector<16x256xf32>, i32 -> vector<16x256xf32>
    %84 = vector.broadcast %12 : vector<1x256xf32> to vector<16x256xf32>
    %85 = arith.mulf %83, %84 : vector<16x256xf32>
    %c1_i32_34 = arith.constant 1 : i32
    %86 = tpu.dynamic_rotate %75 by %c1_i32_34 dim 1 : vector<16x256xf32>, i32 -> vector<16x256xf32>
    %87 = vector.broadcast %16 : vector<1x256xf32> to vector<16x256xf32>
    %88 = arith.mulf %86, %87 : vector<16x256xf32>
    %c255_i32_35 = arith.constant 255 : i32
    %89 = tpu.dynamic_rotate %75 by %c255_i32_35 dim 1 : vector<16x256xf32>, i32 -> vector<16x256xf32>
    %90 = vector.broadcast %20 : vector<1x256xf32> to vector<16x256xf32>
    %91 = arith.mulf %89, %90 : vector<16x256xf32>
    %c241_i32_36 = arith.constant 241 : i32
    %92 = tpu.dynamic_rotate %75 by %c241_i32_36 dim 1 : vector<16x256xf32>, i32 -> vector<16x256xf32>
    %93 = vector.broadcast %24 : vector<1x256xf32> to vector<16x256xf32>
    %94 = arith.mulf %92, %93 : vector<16x256xf32>
    %c240_i32_37 = arith.constant 240 : i32
    %95 = tpu.dynamic_rotate %75 by %c240_i32_37 dim 1 : vector<16x256xf32>, i32 -> vector<16x256xf32>
    %96 = vector.broadcast %28 : vector<1x256xf32> to vector<16x256xf32>
    %97 = arith.mulf %95, %96 : vector<16x256xf32>
    %c239_i32_38 = arith.constant 239 : i32
    %98 = tpu.dynamic_rotate %75 by %c239_i32_38 dim 1 : vector<16x256xf32>, i32 -> vector<16x256xf32>
    %99 = vector.broadcast %32 : vector<1x256xf32> to vector<16x256xf32>
    %100 = arith.mulf %98, %99 : vector<16x256xf32>
    %101 = tpu.concatenate %79, %82, %85, %88, %75, %91, %94, %97, %100 in 0 : vector<16x256xf32>, vector<16x256xf32>, vector<16x256xf32>, vector<16x256xf32>, vector<16x256xf32>, vector<16x256xf32>, vector<16x256xf32>, vector<16x256xf32>, vector<16x256xf32> -> vector<144x256xf32>
    %102 = arith.truncf %101 : vector<144x256xf32> to vector<144x256xbf16>
    %cst_39 = arith.constant dense<0.000000e+00> : vector<16x256xf32>
    %103 = tpu.matmul %76, %102, %cst_39 {dimension_numbers = #tpu.dot_dimension_numbers<[1], [0], [0], [1], [0, 0, 1, 1], [], []>} : vector<16x144xbf16>, vector<144x256xbf16>, vector<16x256xf32> -> vector<16x256xf32>
    %c0_40 = arith.constant 0 : index
    %c0_41 = arith.constant 0 : index
    %104 = vector.load %arg8[%c0_40, %c0_41] : memref<16x1xf32, #tpu.memory_space<vmem>>, vector<16x1xf32>
    %105 = vector.broadcast %104 : vector<16x1xf32> to vector<16x256xf32>
    %106 = arith.addf %103, %105 : vector<16x256xf32>
    %cst_42 = arith.constant 0.000000e+00 : f32
    %107 = vector.broadcast %cst_42 : f32 to vector<16x256xf32>
    %108 = arith.maximumf %106, %107 : vector<16x256xf32>
    %cst_43 = arith.constant 3.906250e-03 : f32
    %109 = vector.broadcast %cst_43 : f32 to vector<256x1xf32>
    %cst_44 = arith.constant dense<0.000000e+00> : vector<16x1xf32>
    %110 = tpu.matmul %108, %109, %cst_44 {dimension_numbers = #tpu.dot_dimension_numbers<[1], [0], [0], [1], [0, 0, 1, 1], [], []>} : vector<16x256xf32>, vector<256x1xf32>, vector<16x1xf32> -> vector<16x1xf32>
    %c0_45 = arith.constant 0 : index
    %c0_46 = arith.constant 0 : index
    %111 = vector.load %arg9[%c0_45, %c0_46] : memref<8x16xf32, #tpu.memory_space<vmem>>, vector<8x16xf32>
    %cst_47 = arith.constant dense<0.000000e+00> : vector<8x1xf32>
    %112 = tpu.matmul %111, %110, %cst_47 {dimension_numbers = #tpu.dot_dimension_numbers<[1], [0], [0], [1], [0, 0, 1, 1], [], []>} : vector<8x16xf32>, vector<16x1xf32>, vector<8x1xf32> -> vector<8x1xf32>
    %cst_48 = arith.constant 0.000000e+00 : f32
    %113 = vector.broadcast %cst_48 : f32 to vector<8x1xf32>
    %114 = arith.maximumf %112, %113 : vector<8x1xf32>
    %c0_49 = arith.constant 0 : index
    %c0_50 = arith.constant 0 : index
    %115 = vector.load %arg10[%c0_49, %c0_50] : memref<16x8xf32, #tpu.memory_space<vmem>>, vector<16x8xf32>
    %cst_51 = arith.constant dense<0.000000e+00> : vector<16x1xf32>
    %116 = tpu.matmul %115, %114, %cst_51 {dimension_numbers = #tpu.dot_dimension_numbers<[1], [0], [0], [1], [0, 0, 1, 1], [], []>} : vector<16x8xf32>, vector<8x1xf32>, vector<16x1xf32> -> vector<16x1xf32>
    %117 = arith.negf %116 : vector<16x1xf32>
    %118 = math.exp %117 : vector<16x1xf32>
    %cst_52 = arith.constant 1.000000e+00 : f32
    %119 = vector.broadcast %cst_52 : f32 to vector<16x1xf32>
    %120 = arith.addf %119, %118 : vector<16x1xf32>
    %121 = arith.divf %119, %120 : vector<16x1xf32>
    %122 = vector.broadcast %121 : vector<16x1xf32> to vector<16x256xf32>
    %123 = arith.mulf %108, %122 : vector<16x256xf32>
    %cst_53 = arith.constant 6.250000e-02 : f32
    %124 = vector.broadcast %cst_53 : f32 to vector<1x16xf32>
    %cst_54 = arith.constant dense<0.000000e+00> : vector<1x256xf32>
    %125 = tpu.matmul %124, %123, %cst_54 {dimension_numbers = #tpu.dot_dimension_numbers<[1], [0], [0], [1], [0, 0, 1, 1], [], []>} : vector<1x16xf32>, vector<16x256xf32>, vector<1x256xf32> -> vector<1x256xf32>
    %cst_55 = arith.constant dense<0xFF800000> : vector<256xf32>
    %126 = vector.multi_reduction <maximumf>, %123, %cst_55 [0] : vector<16x256xf32> to vector<256xf32>
    %127 = vector.shape_cast %126 : vector<256xf32> to vector<1x256xf32>
    %128 = tpu.iota {dimensions = array<i32: 0>} : vector<8x1xi32>
    %c0_i32 = arith.constant 0 : i32
    %129 = vector.broadcast %c0_i32 : i32 to vector<8x1xi32>
    %130 = arith.cmpi eq, %128, %129 : vector<8x1xi32>
    %cst_56 = arith.constant 0.000000e+00 : f32
    %131 = vector.shape_cast %130 : vector<8x1xi1> to vector<8x1xi1>
    %132 = vector.broadcast %131 : vector<8x1xi1> to vector<8x256xi1>
    %133 = vector.shape_cast %125 : vector<1x256xf32> to vector<1x256xf32>
    %134 = vector.broadcast %133 : vector<1x256xf32> to vector<8x256xf32>
    %135 = vector.broadcast %cst_56 : f32 to vector<8x256xf32>
    %136 = arith.select %132, %134, %135 : vector<8x256xi1>, vector<8x256xf32>
    %c1_i32_57 = arith.constant 1 : i32
    %137 = vector.broadcast %c1_i32_57 : i32 to vector<8x1xi32>
    %138 = arith.cmpi eq, %128, %137 : vector<8x1xi32>
    %cst_58 = arith.constant 0.000000e+00 : f32
    %139 = vector.shape_cast %138 : vector<8x1xi1> to vector<8x1xi1>
    %140 = vector.broadcast %139 : vector<8x1xi1> to vector<8x256xi1>
    %141 = vector.shape_cast %127 : vector<1x256xf32> to vector<1x256xf32>
    %142 = vector.broadcast %141 : vector<1x256xf32> to vector<8x256xf32>
    %143 = vector.broadcast %cst_58 : f32 to vector<8x256xf32>
    %144 = arith.select %140, %142, %143 : vector<8x256xi1>, vector<8x256xf32>
    %145 = arith.addf %136, %144 : vector<8x256xf32>
    %c0_59 = arith.constant 0 : index
    %c0_60 = arith.constant 0 : index
    %146 = vector.load %arg11[%c0_59, %c0_60] : memref<1x392xbf16, #tpu.memory_space<vmem>>, vector<1x392xbf16>
    %c51_i32 = arith.constant 51 : i32
    %147 = tpu.dynamic_rotate %145 by %c51_i32 dim 1 : vector<8x256xf32>, i32 -> vector<8x256xf32>
    %c0_61 = arith.constant 0 : index
    %c0_62 = arith.constant 0 : index
    %148 = vector.load %arg2[%c0_61, %c0_62] : memref<49x256xf32, #tpu.memory_space<vmem>>, vector<1x256xf32>
    %149 = vector.broadcast %148 : vector<1x256xf32> to vector<8x256xf32>
    %150 = arith.mulf %147, %149 : vector<8x256xf32>
    %c50_i32 = arith.constant 50 : i32
    %151 = tpu.dynamic_rotate %145 by %c50_i32 dim 1 : vector<8x256xf32>, i32 -> vector<8x256xf32>
    %c1 = arith.constant 1 : index
    %c0_63 = arith.constant 0 : index
    %152 = vector.load %arg2[%c1, %c0_63] : memref<49x256xf32, #tpu.memory_space<vmem>>, vector<1x256xf32>
    %153 = vector.broadcast %152 : vector<1x256xf32> to vector<8x256xf32>
    %154 = arith.mulf %151, %153 : vector<8x256xf32>
    %c49_i32 = arith.constant 49 : i32
    %155 = tpu.dynamic_rotate %145 by %c49_i32 dim 1 : vector<8x256xf32>, i32 -> vector<8x256xf32>
    %c2 = arith.constant 2 : index
    %c0_64 = arith.constant 0 : index
    %156 = vector.load %arg2[%c2, %c0_64] : memref<49x256xf32, #tpu.memory_space<vmem>>, vector<1x256xf32>
    %157 = vector.broadcast %156 : vector<1x256xf32> to vector<8x256xf32>
    %158 = arith.mulf %155, %157 : vector<8x256xf32>
    %c48_i32 = arith.constant 48 : i32
    %159 = tpu.dynamic_rotate %145 by %c48_i32 dim 1 : vector<8x256xf32>, i32 -> vector<8x256xf32>
    %c3 = arith.constant 3 : index
    %c0_65 = arith.constant 0 : index
    %160 = vector.load %arg2[%c3, %c0_65] : memref<49x256xf32, #tpu.memory_space<vmem>>, vector<1x256xf32>
    %161 = vector.broadcast %160 : vector<1x256xf32> to vector<8x256xf32>
    %162 = arith.mulf %159, %161 : vector<8x256xf32>
    %c47_i32 = arith.constant 47 : i32
    %163 = tpu.dynamic_rotate %145 by %c47_i32 dim 1 : vector<8x256xf32>, i32 -> vector<8x256xf32>
    %c4 = arith.constant 4 : index
    %c0_66 = arith.constant 0 : index
    %164 = vector.load %arg2[%c4, %c0_66] : memref<49x256xf32, #tpu.memory_space<vmem>>, vector<1x256xf32>
    %165 = vector.broadcast %164 : vector<1x256xf32> to vector<8x256xf32>
    %166 = arith.mulf %163, %165 : vector<8x256xf32>
    %c46_i32 = arith.constant 46 : i32
    %167 = tpu.dynamic_rotate %145 by %c46_i32 dim 1 : vector<8x256xf32>, i32 -> vector<8x256xf32>
    %c5 = arith.constant 5 : index
    %c0_67 = arith.constant 0 : index
    %168 = vector.load %arg2[%c5, %c0_67] : memref<49x256xf32, #tpu.memory_space<vmem>>, vector<1x256xf32>
    %169 = vector.broadcast %168 : vector<1x256xf32> to vector<8x256xf32>
    %170 = arith.mulf %167, %169 : vector<8x256xf32>
    %c45_i32 = arith.constant 45 : i32
    %171 = tpu.dynamic_rotate %145 by %c45_i32 dim 1 : vector<8x256xf32>, i32 -> vector<8x256xf32>
    %c6 = arith.constant 6 : index
    %c0_68 = arith.constant 0 : index
    %172 = vector.load %arg2[%c6, %c0_68] : memref<49x256xf32, #tpu.memory_space<vmem>>, vector<1x256xf32>
    %173 = vector.broadcast %172 : vector<1x256xf32> to vector<8x256xf32>
    %174 = arith.mulf %171, %173 : vector<8x256xf32>
    %c35_i32 = arith.constant 35 : i32
    %175 = tpu.dynamic_rotate %145 by %c35_i32 dim 1 : vector<8x256xf32>, i32 -> vector<8x256xf32>
    %c7 = arith.constant 7 : index
    %c0_69 = arith.constant 0 : index
    %176 = vector.load %arg2[%c7, %c0_69] : memref<49x256xf32, #tpu.memory_space<vmem>>, vector<1x256xf32>
    %177 = vector.broadcast %176 : vector<1x256xf32> to vector<8x256xf32>
    %178 = arith.mulf %175, %177 : vector<8x256xf32>
    %c34_i32 = arith.constant 34 : i32
    %179 = tpu.dynamic_rotate %145 by %c34_i32 dim 1 : vector<8x256xf32>, i32 -> vector<8x256xf32>
    %c8 = arith.constant 8 : index
    %c0_70 = arith.constant 0 : index
    %180 = vector.load %arg2[%c8, %c0_70] : memref<49x256xf32, #tpu.memory_space<vmem>>, vector<1x256xf32>
    %181 = vector.broadcast %180 : vector<1x256xf32> to vector<8x256xf32>
    %182 = arith.mulf %179, %181 : vector<8x256xf32>
    %c33_i32 = arith.constant 33 : i32
    %183 = tpu.dynamic_rotate %145 by %c33_i32 dim 1 : vector<8x256xf32>, i32 -> vector<8x256xf32>
    %c9 = arith.constant 9 : index
    %c0_71 = arith.constant 0 : index
    %184 = vector.load %arg2[%c9, %c0_71] : memref<49x256xf32, #tpu.memory_space<vmem>>, vector<1x256xf32>
    %185 = vector.broadcast %184 : vector<1x256xf32> to vector<8x256xf32>
    %186 = arith.mulf %183, %185 : vector<8x256xf32>
    %c32_i32 = arith.constant 32 : i32
    %187 = tpu.dynamic_rotate %145 by %c32_i32 dim 1 : vector<8x256xf32>, i32 -> vector<8x256xf32>
    %c10 = arith.constant 10 : index
    %c0_72 = arith.constant 0 : index
    %188 = vector.load %arg2[%c10, %c0_72] : memref<49x256xf32, #tpu.memory_space<vmem>>, vector<1x256xf32>
    %189 = vector.broadcast %188 : vector<1x256xf32> to vector<8x256xf32>
    %190 = arith.mulf %187, %189 : vector<8x256xf32>
    %c31_i32 = arith.constant 31 : i32
    %191 = tpu.dynamic_rotate %145 by %c31_i32 dim 1 : vector<8x256xf32>, i32 -> vector<8x256xf32>
    %c11 = arith.constant 11 : index
    %c0_73 = arith.constant 0 : index
    %192 = vector.load %arg2[%c11, %c0_73] : memref<49x256xf32, #tpu.memory_space<vmem>>, vector<1x256xf32>
    %193 = vector.broadcast %192 : vector<1x256xf32> to vector<8x256xf32>
    %194 = arith.mulf %191, %193 : vector<8x256xf32>
    %c30_i32 = arith.constant 30 : i32
    %195 = tpu.dynamic_rotate %145 by %c30_i32 dim 1 : vector<8x256xf32>, i32 -> vector<8x256xf32>
    %c12 = arith.constant 12 : index
    %c0_74 = arith.constant 0 : index
    %196 = vector.load %arg2[%c12, %c0_74] : memref<49x256xf32, #tpu.memory_space<vmem>>, vector<1x256xf32>
    %197 = vector.broadcast %196 : vector<1x256xf32> to vector<8x256xf32>
    %198 = arith.mulf %195, %197 : vector<8x256xf32>
    %c29_i32 = arith.constant 29 : i32
    %199 = tpu.dynamic_rotate %145 by %c29_i32 dim 1 : vector<8x256xf32>, i32 -> vector<8x256xf32>
    %c13 = arith.constant 13 : index
    %c0_75 = arith.constant 0 : index
    %200 = vector.load %arg2[%c13, %c0_75] : memref<49x256xf32, #tpu.memory_space<vmem>>, vector<1x256xf32>
    %201 = vector.broadcast %200 : vector<1x256xf32> to vector<8x256xf32>
    %202 = arith.mulf %199, %201 : vector<8x256xf32>
    %c19_i32 = arith.constant 19 : i32
    %203 = tpu.dynamic_rotate %145 by %c19_i32 dim 1 : vector<8x256xf32>, i32 -> vector<8x256xf32>
    %c14 = arith.constant 14 : index
    %c0_76 = arith.constant 0 : index
    %204 = vector.load %arg2[%c14, %c0_76] : memref<49x256xf32, #tpu.memory_space<vmem>>, vector<1x256xf32>
    %205 = vector.broadcast %204 : vector<1x256xf32> to vector<8x256xf32>
    %206 = arith.mulf %203, %205 : vector<8x256xf32>
    %c18_i32 = arith.constant 18 : i32
    %207 = tpu.dynamic_rotate %145 by %c18_i32 dim 1 : vector<8x256xf32>, i32 -> vector<8x256xf32>
    %c15 = arith.constant 15 : index
    %c0_77 = arith.constant 0 : index
    %208 = vector.load %arg2[%c15, %c0_77] : memref<49x256xf32, #tpu.memory_space<vmem>>, vector<1x256xf32>
    %209 = vector.broadcast %208 : vector<1x256xf32> to vector<8x256xf32>
    %210 = arith.mulf %207, %209 : vector<8x256xf32>
    %c17_i32_78 = arith.constant 17 : i32
    %211 = tpu.dynamic_rotate %145 by %c17_i32_78 dim 1 : vector<8x256xf32>, i32 -> vector<8x256xf32>
    %212 = vector.broadcast %4 : vector<1x256xf32> to vector<8x256xf32>
    %213 = arith.mulf %211, %212 : vector<8x256xf32>
    %c16_i32_79 = arith.constant 16 : i32
    %214 = tpu.dynamic_rotate %145 by %c16_i32_79 dim 1 : vector<8x256xf32>, i32 -> vector<8x256xf32>
    %215 = vector.broadcast %8 : vector<1x256xf32> to vector<8x256xf32>
    %216 = arith.mulf %214, %215 : vector<8x256xf32>
    %c15_i32_80 = arith.constant 15 : i32
    %217 = tpu.dynamic_rotate %145 by %c15_i32_80 dim 1 : vector<8x256xf32>, i32 -> vector<8x256xf32>
    %218 = vector.broadcast %12 : vector<1x256xf32> to vector<8x256xf32>
    %219 = arith.mulf %217, %218 : vector<8x256xf32>
    %c14_i32 = arith.constant 14 : i32
    %220 = tpu.dynamic_rotate %145 by %c14_i32 dim 1 : vector<8x256xf32>, i32 -> vector<8x256xf32>
    %c19 = arith.constant 19 : index
    %c0_81 = arith.constant 0 : index
    %221 = vector.load %arg2[%c19, %c0_81] : memref<49x256xf32, #tpu.memory_space<vmem>>, vector<1x256xf32>
    %222 = vector.broadcast %221 : vector<1x256xf32> to vector<8x256xf32>
    %223 = arith.mulf %220, %222 : vector<8x256xf32>
    %c13_i32 = arith.constant 13 : i32
    %224 = tpu.dynamic_rotate %145 by %c13_i32 dim 1 : vector<8x256xf32>, i32 -> vector<8x256xf32>
    %c20 = arith.constant 20 : index
    %c0_82 = arith.constant 0 : index
    %225 = vector.load %arg2[%c20, %c0_82] : memref<49x256xf32, #tpu.memory_space<vmem>>, vector<1x256xf32>
    %226 = vector.broadcast %225 : vector<1x256xf32> to vector<8x256xf32>
    %227 = arith.mulf %224, %226 : vector<8x256xf32>
    %c3_i32 = arith.constant 3 : i32
    %228 = tpu.dynamic_rotate %145 by %c3_i32 dim 1 : vector<8x256xf32>, i32 -> vector<8x256xf32>
    %c21 = arith.constant 21 : index
    %c0_83 = arith.constant 0 : index
    %229 = vector.load %arg2[%c21, %c0_83] : memref<49x256xf32, #tpu.memory_space<vmem>>, vector<1x256xf32>
    %230 = vector.broadcast %229 : vector<1x256xf32> to vector<8x256xf32>
    %231 = arith.mulf %228, %230 : vector<8x256xf32>
    %c2_i32 = arith.constant 2 : i32
    %232 = tpu.dynamic_rotate %145 by %c2_i32 dim 1 : vector<8x256xf32>, i32 -> vector<8x256xf32>
    %c22 = arith.constant 22 : index
    %c0_84 = arith.constant 0 : index
    %233 = vector.load %arg2[%c22, %c0_84] : memref<49x256xf32, #tpu.memory_space<vmem>>, vector<1x256xf32>
    %234 = vector.broadcast %233 : vector<1x256xf32> to vector<8x256xf32>
    %235 = arith.mulf %232, %234 : vector<8x256xf32>
    %c1_i32_85 = arith.constant 1 : i32
    %236 = tpu.dynamic_rotate %145 by %c1_i32_85 dim 1 : vector<8x256xf32>, i32 -> vector<8x256xf32>
    %237 = vector.broadcast %16 : vector<1x256xf32> to vector<8x256xf32>
    %238 = arith.mulf %236, %237 : vector<8x256xf32>
    %c255_i32_86 = arith.constant 255 : i32
    %239 = tpu.dynamic_rotate %145 by %c255_i32_86 dim 1 : vector<8x256xf32>, i32 -> vector<8x256xf32>
    %240 = vector.broadcast %20 : vector<1x256xf32> to vector<8x256xf32>
    %241 = arith.mulf %239, %240 : vector<8x256xf32>
    %c254_i32 = arith.constant 254 : i32
    %242 = tpu.dynamic_rotate %145 by %c254_i32 dim 1 : vector<8x256xf32>, i32 -> vector<8x256xf32>
    %c26 = arith.constant 26 : index
    %c0_87 = arith.constant 0 : index
    %243 = vector.load %arg2[%c26, %c0_87] : memref<49x256xf32, #tpu.memory_space<vmem>>, vector<1x256xf32>
    %244 = vector.broadcast %243 : vector<1x256xf32> to vector<8x256xf32>
    %245 = arith.mulf %242, %244 : vector<8x256xf32>
    %c253_i32 = arith.constant 253 : i32
    %246 = tpu.dynamic_rotate %145 by %c253_i32 dim 1 : vector<8x256xf32>, i32 -> vector<8x256xf32>
    %c27 = arith.constant 27 : index
    %c0_88 = arith.constant 0 : index
    %247 = vector.load %arg2[%c27, %c0_88] : memref<49x256xf32, #tpu.memory_space<vmem>>, vector<1x256xf32>
    %248 = vector.broadcast %247 : vector<1x256xf32> to vector<8x256xf32>
    %249 = arith.mulf %246, %248 : vector<8x256xf32>
    %c243_i32 = arith.constant 243 : i32
    %250 = tpu.dynamic_rotate %145 by %c243_i32 dim 1 : vector<8x256xf32>, i32 -> vector<8x256xf32>
    %c28 = arith.constant 28 : index
    %c0_89 = arith.constant 0 : index
    %251 = vector.load %arg2[%c28, %c0_89] : memref<49x256xf32, #tpu.memory_space<vmem>>, vector<1x256xf32>
    %252 = vector.broadcast %251 : vector<1x256xf32> to vector<8x256xf32>
    %253 = arith.mulf %250, %252 : vector<8x256xf32>
    %c242_i32 = arith.constant 242 : i32
    %254 = tpu.dynamic_rotate %145 by %c242_i32 dim 1 : vector<8x256xf32>, i32 -> vector<8x256xf32>
    %c29 = arith.constant 29 : index
    %c0_90 = arith.constant 0 : index
    %255 = vector.load %arg2[%c29, %c0_90] : memref<49x256xf32, #tpu.memory_space<vmem>>, vector<1x256xf32>
    %256 = vector.broadcast %255 : vector<1x256xf32> to vector<8x256xf32>
    %257 = arith.mulf %254, %256 : vector<8x256xf32>
    %c241_i32_91 = arith.constant 241 : i32
    %258 = tpu.dynamic_rotate %145 by %c241_i32_91 dim 1 : vector<8x256xf32>, i32 -> vector<8x256xf32>
    %259 = vector.broadcast %24 : vector<1x256xf32> to vector<8x256xf32>
    %260 = arith.mulf %258, %259 : vector<8x256xf32>
    %c240_i32_92 = arith.constant 240 : i32
    %261 = tpu.dynamic_rotate %145 by %c240_i32_92 dim 1 : vector<8x256xf32>, i32 -> vector<8x256xf32>
    %262 = vector.broadcast %28 : vector<1x256xf32> to vector<8x256xf32>
    %263 = arith.mulf %261, %262 : vector<8x256xf32>
    %c239_i32_93 = arith.constant 239 : i32
    %264 = tpu.dynamic_rotate %145 by %c239_i32_93 dim 1 : vector<8x256xf32>, i32 -> vector<8x256xf32>
    %265 = vector.broadcast %32 : vector<1x256xf32> to vector<8x256xf32>
    %266 = arith.mulf %264, %265 : vector<8x256xf32>
    %c238_i32 = arith.constant 238 : i32
    %267 = tpu.dynamic_rotate %145 by %c238_i32 dim 1 : vector<8x256xf32>, i32 -> vector<8x256xf32>
    %c33 = arith.constant 33 : index
    %c0_94 = arith.constant 0 : index
    %268 = vector.load %arg2[%c33, %c0_94] : memref<49x256xf32, #tpu.memory_space<vmem>>, vector<1x256xf32>
    %269 = vector.broadcast %268 : vector<1x256xf32> to vector<8x256xf32>
    %270 = arith.mulf %267, %269 : vector<8x256xf32>
    %c237_i32 = arith.constant 237 : i32
    %271 = tpu.dynamic_rotate %145 by %c237_i32 dim 1 : vector<8x256xf32>, i32 -> vector<8x256xf32>
    %c34 = arith.constant 34 : index
    %c0_95 = arith.constant 0 : index
    %272 = vector.load %arg2[%c34, %c0_95] : memref<49x256xf32, #tpu.memory_space<vmem>>, vector<1x256xf32>
    %273 = vector.broadcast %272 : vector<1x256xf32> to vector<8x256xf32>
    %274 = arith.mulf %271, %273 : vector<8x256xf32>
    %c227_i32 = arith.constant 227 : i32
    %275 = tpu.dynamic_rotate %145 by %c227_i32 dim 1 : vector<8x256xf32>, i32 -> vector<8x256xf32>
    %c35 = arith.constant 35 : index
    %c0_96 = arith.constant 0 : index
    %276 = vector.load %arg2[%c35, %c0_96] : memref<49x256xf32, #tpu.memory_space<vmem>>, vector<1x256xf32>
    %277 = vector.broadcast %276 : vector<1x256xf32> to vector<8x256xf32>
    %278 = arith.mulf %275, %277 : vector<8x256xf32>
    %c226_i32 = arith.constant 226 : i32
    %279 = tpu.dynamic_rotate %145 by %c226_i32 dim 1 : vector<8x256xf32>, i32 -> vector<8x256xf32>
    %c36 = arith.constant 36 : index
    %c0_97 = arith.constant 0 : index
    %280 = vector.load %arg2[%c36, %c0_97] : memref<49x256xf32, #tpu.memory_space<vmem>>, vector<1x256xf32>
    %281 = vector.broadcast %280 : vector<1x256xf32> to vector<8x256xf32>
    %282 = arith.mulf %279, %281 : vector<8x256xf32>
    %c225_i32 = arith.constant 225 : i32
    %283 = tpu.dynamic_rotate %145 by %c225_i32 dim 1 : vector<8x256xf32>, i32 -> vector<8x256xf32>
    %c37 = arith.constant 37 : index
    %c0_98 = arith.constant 0 : index
    %284 = vector.load %arg2[%c37, %c0_98] : memref<49x256xf32, #tpu.memory_space<vmem>>, vector<1x256xf32>
    %285 = vector.broadcast %284 : vector<1x256xf32> to vector<8x256xf32>
    %286 = arith.mulf %283, %285 : vector<8x256xf32>
    %c224_i32 = arith.constant 224 : i32
    %287 = tpu.dynamic_rotate %145 by %c224_i32 dim 1 : vector<8x256xf32>, i32 -> vector<8x256xf32>
    %c38 = arith.constant 38 : index
    %c0_99 = arith.constant 0 : index
    %288 = vector.load %arg2[%c38, %c0_99] : memref<49x256xf32, #tpu.memory_space<vmem>>, vector<1x256xf32>
    %289 = vector.broadcast %288 : vector<1x256xf32> to vector<8x256xf32>
    %290 = arith.mulf %287, %289 : vector<8x256xf32>
    %c223_i32 = arith.constant 223 : i32
    %291 = tpu.dynamic_rotate %145 by %c223_i32 dim 1 : vector<8x256xf32>, i32 -> vector<8x256xf32>
    %c39 = arith.constant 39 : index
    %c0_100 = arith.constant 0 : index
    %292 = vector.load %arg2[%c39, %c0_100] : memref<49x256xf32, #tpu.memory_space<vmem>>, vector<1x256xf32>
    %293 = vector.broadcast %292 : vector<1x256xf32> to vector<8x256xf32>
    %294 = arith.mulf %291, %293 : vector<8x256xf32>
    %c222_i32 = arith.constant 222 : i32
    %295 = tpu.dynamic_rotate %145 by %c222_i32 dim 1 : vector<8x256xf32>, i32 -> vector<8x256xf32>
    %c40 = arith.constant 40 : index
    %c0_101 = arith.constant 0 : index
    %296 = vector.load %arg2[%c40, %c0_101] : memref<49x256xf32, #tpu.memory_space<vmem>>, vector<1x256xf32>
    %297 = vector.broadcast %296 : vector<1x256xf32> to vector<8x256xf32>
    %298 = arith.mulf %295, %297 : vector<8x256xf32>
    %c221_i32 = arith.constant 221 : i32
    %299 = tpu.dynamic_rotate %145 by %c221_i32 dim 1 : vector<8x256xf32>, i32 -> vector<8x256xf32>
    %c41 = arith.constant 41 : index
    %c0_102 = arith.constant 0 : index
    %300 = vector.load %arg2[%c41, %c0_102] : memref<49x256xf32, #tpu.memory_space<vmem>>, vector<1x256xf32>
    %301 = vector.broadcast %300 : vector<1x256xf32> to vector<8x256xf32>
    %302 = arith.mulf %299, %301 : vector<8x256xf32>
    %c211_i32 = arith.constant 211 : i32
    %303 = tpu.dynamic_rotate %145 by %c211_i32 dim 1 : vector<8x256xf32>, i32 -> vector<8x256xf32>
    %c42 = arith.constant 42 : index
    %c0_103 = arith.constant 0 : index
    %304 = vector.load %arg2[%c42, %c0_103] : memref<49x256xf32, #tpu.memory_space<vmem>>, vector<1x256xf32>
    %305 = vector.broadcast %304 : vector<1x256xf32> to vector<8x256xf32>
    %306 = arith.mulf %303, %305 : vector<8x256xf32>
    %c210_i32 = arith.constant 210 : i32
    %307 = tpu.dynamic_rotate %145 by %c210_i32 dim 1 : vector<8x256xf32>, i32 -> vector<8x256xf32>
    %c43 = arith.constant 43 : index
    %c0_104 = arith.constant 0 : index
    %308 = vector.load %arg2[%c43, %c0_104] : memref<49x256xf32, #tpu.memory_space<vmem>>, vector<1x256xf32>
    %309 = vector.broadcast %308 : vector<1x256xf32> to vector<8x256xf32>
    %310 = arith.mulf %307, %309 : vector<8x256xf32>
    %c209_i32 = arith.constant 209 : i32
    %311 = tpu.dynamic_rotate %145 by %c209_i32 dim 1 : vector<8x256xf32>, i32 -> vector<8x256xf32>
    %c44 = arith.constant 44 : index
    %c0_105 = arith.constant 0 : index
    %312 = vector.load %arg2[%c44, %c0_105] : memref<49x256xf32, #tpu.memory_space<vmem>>, vector<1x256xf32>
    %313 = vector.broadcast %312 : vector<1x256xf32> to vector<8x256xf32>
    %314 = arith.mulf %311, %313 : vector<8x256xf32>
    %c208_i32 = arith.constant 208 : i32
    %315 = tpu.dynamic_rotate %145 by %c208_i32 dim 1 : vector<8x256xf32>, i32 -> vector<8x256xf32>
    %c45 = arith.constant 45 : index
    %c0_106 = arith.constant 0 : index
    %316 = vector.load %arg2[%c45, %c0_106] : memref<49x256xf32, #tpu.memory_space<vmem>>, vector<1x256xf32>
    %317 = vector.broadcast %316 : vector<1x256xf32> to vector<8x256xf32>
    %318 = arith.mulf %315, %317 : vector<8x256xf32>
    %c207_i32 = arith.constant 207 : i32
    %319 = tpu.dynamic_rotate %145 by %c207_i32 dim 1 : vector<8x256xf32>, i32 -> vector<8x256xf32>
    %c46 = arith.constant 46 : index
    %c0_107 = arith.constant 0 : index
    %320 = vector.load %arg2[%c46, %c0_107] : memref<49x256xf32, #tpu.memory_space<vmem>>, vector<1x256xf32>
    %321 = vector.broadcast %320 : vector<1x256xf32> to vector<8x256xf32>
    %322 = arith.mulf %319, %321 : vector<8x256xf32>
    %c206_i32 = arith.constant 206 : i32
    %323 = tpu.dynamic_rotate %145 by %c206_i32 dim 1 : vector<8x256xf32>, i32 -> vector<8x256xf32>
    %c47 = arith.constant 47 : index
    %c0_108 = arith.constant 0 : index
    %324 = vector.load %arg2[%c47, %c0_108] : memref<49x256xf32, #tpu.memory_space<vmem>>, vector<1x256xf32>
    %325 = vector.broadcast %324 : vector<1x256xf32> to vector<8x256xf32>
    %326 = arith.mulf %323, %325 : vector<8x256xf32>
    %c205_i32 = arith.constant 205 : i32
    %327 = tpu.dynamic_rotate %145 by %c205_i32 dim 1 : vector<8x256xf32>, i32 -> vector<8x256xf32>
    %c48 = arith.constant 48 : index
    %c0_109 = arith.constant 0 : index
    %328 = vector.load %arg2[%c48, %c0_109] : memref<49x256xf32, #tpu.memory_space<vmem>>, vector<1x256xf32>
    %329 = vector.broadcast %328 : vector<1x256xf32> to vector<8x256xf32>
    %330 = arith.mulf %327, %329 : vector<8x256xf32>
    %331 = tpu.concatenate %150, %154, %158, %162, %166, %170, %174, %178, %182, %186, %190, %194, %198, %202, %206, %210 in 0 : vector<8x256xf32>, vector<8x256xf32>, vector<8x256xf32>, vector<8x256xf32>, vector<8x256xf32>, vector<8x256xf32>, vector<8x256xf32>, vector<8x256xf32>, vector<8x256xf32>, vector<8x256xf32>, vector<8x256xf32>, vector<8x256xf32>, vector<8x256xf32>, vector<8x256xf32>, vector<8x256xf32>, vector<8x256xf32> -> vector<128x256xf32>
    %332 = tpu.concatenate %213, %216, %219, %223, %227, %231, %235, %238, %145, %241, %245, %249, %253, %257, %260, %263 in 0 : vector<8x256xf32>, vector<8x256xf32>, vector<8x256xf32>, vector<8x256xf32>, vector<8x256xf32>, vector<8x256xf32>, vector<8x256xf32>, vector<8x256xf32>, vector<8x256xf32>, vector<8x256xf32>, vector<8x256xf32>, vector<8x256xf32>, vector<8x256xf32>, vector<8x256xf32>, vector<8x256xf32>, vector<8x256xf32> -> vector<128x256xf32>
    %333 = tpu.concatenate %266, %270, %274, %278, %282, %286, %290, %294, %298, %302, %306, %310, %314, %318, %322, %326 in 0 : vector<8x256xf32>, vector<8x256xf32>, vector<8x256xf32>, vector<8x256xf32>, vector<8x256xf32>, vector<8x256xf32>, vector<8x256xf32>, vector<8x256xf32>, vector<8x256xf32>, vector<8x256xf32>, vector<8x256xf32>, vector<8x256xf32>, vector<8x256xf32>, vector<8x256xf32>, vector<8x256xf32>, vector<8x256xf32> -> vector<128x256xf32>
    %334 = tpu.concatenate %331, %332, %333, %330 in 0 : vector<128x256xf32>, vector<128x256xf32>, vector<128x256xf32>, vector<8x256xf32> -> vector<392x256xf32>
    %335 = arith.truncf %334 : vector<392x256xf32> to vector<392x256xbf16>
    %cst_110 = arith.constant dense<0.000000e+00> : vector<1x256xf32>
    %336 = tpu.matmul %146, %335, %cst_110 {dimension_numbers = #tpu.dot_dimension_numbers<[1], [0], [0], [1], [0, 0, 1, 1], [], []>} : vector<1x392xbf16>, vector<392x256xbf16>, vector<1x256xf32> -> vector<1x256xf32>
    %337 = arith.negf %336 : vector<1x256xf32>
    %338 = math.exp %337 : vector<1x256xf32>
    %cst_111 = arith.constant 1.000000e+00 : f32
    %339 = vector.broadcast %cst_111 : f32 to vector<1x256xf32>
    %340 = arith.addf %339, %338 : vector<1x256xf32>
    %341 = arith.divf %339, %340 : vector<1x256xf32>
    %342 = vector.broadcast %341 : vector<1x256xf32> to vector<16x256xf32>
    %343 = arith.mulf %123, %342 : vector<16x256xf32>
    %c0_112 = arith.constant 0 : index
    %c0_113 = arith.constant 0 : index
    %344 = vector.load %arg12[%c0_112, %c0_113] : memref<64x144xbf16, #tpu.memory_space<vmem>>, vector<64x144xbf16>
    %c17_i32_114 = arith.constant 17 : i32
    %345 = tpu.dynamic_rotate %343 by %c17_i32_114 dim 1 : vector<16x256xf32>, i32 -> vector<16x256xf32>
    %346 = vector.broadcast %4 : vector<1x256xf32> to vector<16x256xf32>
    %347 = arith.mulf %345, %346 : vector<16x256xf32>
    %c16_i32_115 = arith.constant 16 : i32
    %348 = tpu.dynamic_rotate %343 by %c16_i32_115 dim 1 : vector<16x256xf32>, i32 -> vector<16x256xf32>
    %349 = vector.broadcast %8 : vector<1x256xf32> to vector<16x256xf32>
    %350 = arith.mulf %348, %349 : vector<16x256xf32>
    %c15_i32_116 = arith.constant 15 : i32
    %351 = tpu.dynamic_rotate %343 by %c15_i32_116 dim 1 : vector<16x256xf32>, i32 -> vector<16x256xf32>
    %352 = vector.broadcast %12 : vector<1x256xf32> to vector<16x256xf32>
    %353 = arith.mulf %351, %352 : vector<16x256xf32>
    %c1_i32_117 = arith.constant 1 : i32
    %354 = tpu.dynamic_rotate %343 by %c1_i32_117 dim 1 : vector<16x256xf32>, i32 -> vector<16x256xf32>
    %355 = vector.broadcast %16 : vector<1x256xf32> to vector<16x256xf32>
    %356 = arith.mulf %354, %355 : vector<16x256xf32>
    %c255_i32_118 = arith.constant 255 : i32
    %357 = tpu.dynamic_rotate %343 by %c255_i32_118 dim 1 : vector<16x256xf32>, i32 -> vector<16x256xf32>
    %358 = vector.broadcast %20 : vector<1x256xf32> to vector<16x256xf32>
    %359 = arith.mulf %357, %358 : vector<16x256xf32>
    %c241_i32_119 = arith.constant 241 : i32
    %360 = tpu.dynamic_rotate %343 by %c241_i32_119 dim 1 : vector<16x256xf32>, i32 -> vector<16x256xf32>
    %361 = vector.broadcast %24 : vector<1x256xf32> to vector<16x256xf32>
    %362 = arith.mulf %360, %361 : vector<16x256xf32>
    %c240_i32_120 = arith.constant 240 : i32
    %363 = tpu.dynamic_rotate %343 by %c240_i32_120 dim 1 : vector<16x256xf32>, i32 -> vector<16x256xf32>
    %364 = vector.broadcast %28 : vector<1x256xf32> to vector<16x256xf32>
    %365 = arith.mulf %363, %364 : vector<16x256xf32>
    %c239_i32_121 = arith.constant 239 : i32
    %366 = tpu.dynamic_rotate %343 by %c239_i32_121 dim 1 : vector<16x256xf32>, i32 -> vector<16x256xf32>
    %367 = vector.broadcast %32 : vector<1x256xf32> to vector<16x256xf32>
    %368 = arith.mulf %366, %367 : vector<16x256xf32>
    %369 = tpu.concatenate %347, %350, %353, %356, %343, %359, %362, %365, %368 in 0 : vector<16x256xf32>, vector<16x256xf32>, vector<16x256xf32>, vector<16x256xf32>, vector<16x256xf32>, vector<16x256xf32>, vector<16x256xf32>, vector<16x256xf32>, vector<16x256xf32> -> vector<144x256xf32>
    %370 = arith.truncf %369 : vector<144x256xf32> to vector<144x256xbf16>
    %cst_122 = arith.constant dense<0.000000e+00> : vector<64x256xf32>
    %371 = tpu.matmul %344, %370, %cst_122 {dimension_numbers = #tpu.dot_dimension_numbers<[1], [0], [0], [1], [0, 0, 1, 1], [], []>} : vector<64x144xbf16>, vector<144x256xbf16>, vector<64x256xf32> -> vector<64x256xf32>
    %c0_123 = arith.constant 0 : index
    %c0_124 = arith.constant 0 : index
    %372 = vector.load %arg13[%c0_123, %c0_124] : memref<64x1xf32, #tpu.memory_space<vmem>>, vector<64x1xf32>
    %373 = vector.broadcast %372 : vector<64x1xf32> to vector<64x256xf32>
    %374 = arith.addf %371, %373 : vector<64x256xf32>
    %c0_125 = arith.constant 0 : index
    %c0_126 = arith.constant 0 : index
    %375 = vector.load %arg14[%c0_125, %c0_126] : memref<16x576xbf16, #tpu.memory_space<vmem>>, vector<16x576xbf16>
    %c17_i32_127 = arith.constant 17 : i32
    %376 = tpu.dynamic_rotate %374 by %c17_i32_127 dim 1 : vector<64x256xf32>, i32 -> vector<64x256xf32>
    %377 = vector.broadcast %4 : vector<1x256xf32> to vector<64x256xf32>
    %378 = arith.mulf %376, %377 : vector<64x256xf32>
    %c16_i32_128 = arith.constant 16 : i32
    %379 = tpu.dynamic_rotate %374 by %c16_i32_128 dim 1 : vector<64x256xf32>, i32 -> vector<64x256xf32>
    %380 = vector.broadcast %8 : vector<1x256xf32> to vector<64x256xf32>
    %381 = arith.mulf %379, %380 : vector<64x256xf32>
    %c15_i32_129 = arith.constant 15 : i32
    %382 = tpu.dynamic_rotate %374 by %c15_i32_129 dim 1 : vector<64x256xf32>, i32 -> vector<64x256xf32>
    %383 = vector.broadcast %12 : vector<1x256xf32> to vector<64x256xf32>
    %384 = arith.mulf %382, %383 : vector<64x256xf32>
    %c1_i32_130 = arith.constant 1 : i32
    %385 = tpu.dynamic_rotate %374 by %c1_i32_130 dim 1 : vector<64x256xf32>, i32 -> vector<64x256xf32>
    %386 = vector.broadcast %16 : vector<1x256xf32> to vector<64x256xf32>
    %387 = arith.mulf %385, %386 : vector<64x256xf32>
    %c255_i32_131 = arith.constant 255 : i32
    %388 = tpu.dynamic_rotate %374 by %c255_i32_131 dim 1 : vector<64x256xf32>, i32 -> vector<64x256xf32>
    %389 = vector.broadcast %20 : vector<1x256xf32> to vector<64x256xf32>
    %390 = arith.mulf %388, %389 : vector<64x256xf32>
    %c241_i32_132 = arith.constant 241 : i32
    %391 = tpu.dynamic_rotate %374 by %c241_i32_132 dim 1 : vector<64x256xf32>, i32 -> vector<64x256xf32>
    %392 = vector.broadcast %24 : vector<1x256xf32> to vector<64x256xf32>
    %393 = arith.mulf %391, %392 : vector<64x256xf32>
    %c240_i32_133 = arith.constant 240 : i32
    %394 = tpu.dynamic_rotate %374 by %c240_i32_133 dim 1 : vector<64x256xf32>, i32 -> vector<64x256xf32>
    %395 = vector.broadcast %28 : vector<1x256xf32> to vector<64x256xf32>
    %396 = arith.mulf %394, %395 : vector<64x256xf32>
    %c239_i32_134 = arith.constant 239 : i32
    %397 = tpu.dynamic_rotate %374 by %c239_i32_134 dim 1 : vector<64x256xf32>, i32 -> vector<64x256xf32>
    %398 = vector.broadcast %32 : vector<1x256xf32> to vector<64x256xf32>
    %399 = arith.mulf %397, %398 : vector<64x256xf32>
    %400 = tpu.concatenate %378, %381, %384, %387, %374, %390, %393, %396, %399 in 0 : vector<64x256xf32>, vector<64x256xf32>, vector<64x256xf32>, vector<64x256xf32>, vector<64x256xf32>, vector<64x256xf32>, vector<64x256xf32>, vector<64x256xf32>, vector<64x256xf32> -> vector<576x256xf32>
    %401 = arith.truncf %400 : vector<576x256xf32> to vector<576x256xbf16>
    %cst_135 = arith.constant dense<0.000000e+00> : vector<16x256xf32>
    %402 = tpu.matmul %375, %401, %cst_135 {dimension_numbers = #tpu.dot_dimension_numbers<[1], [0], [0], [1], [0, 0, 1, 1], [], []>} : vector<16x576xbf16>, vector<576x256xbf16>, vector<16x256xf32> -> vector<16x256xf32>
    %c0_136 = arith.constant 0 : index
    %c0_137 = arith.constant 0 : index
    %403 = vector.load %arg15[%c0_136, %c0_137] : memref<16x1xf32, #tpu.memory_space<vmem>>, vector<16x1xf32>
    %404 = vector.broadcast %403 : vector<16x1xf32> to vector<16x256xf32>
    %405 = arith.addf %402, %404 : vector<16x256xf32>
    %c0_138 = arith.constant 0 : index
    %c0_139 = arith.constant 0 : index
    %c0_140 = arith.constant 0 : index
    %406 = vector.load %arg16[%c0_138, %c0_139, %c0_140] : memref<1x16x256xf32, #tpu.memory_space<vmem>>, vector<1x16x256xf32>
    %407 = vector.shape_cast %406 : vector<1x16x256xf32> to vector<16x256xf32>
    %408 = vector.shape_cast %405 : vector<16x256xf32> to vector<1x16x256xf32>
    tpu.vector_store %arg16[%c0_138, %c0_139, %c0_140], %408 {strides = array<i32>} : memref<1x16x256xf32, #tpu.memory_space<vmem>>, vector<1x16x256xf32>,
    return
  }
  func.func @transform_0(%arg0: i32) -> (i32, i32, i32) {
    %c0_i32 = arith.constant 0 : i32
    %c0_i32_0 = arith.constant 0 : i32
    %c0_i32_1 = arith.constant 0 : i32
    return %arg0, %c0_i32, %c0_i32_0 : i32, i32, i32
  }
  func.func @transform_1(%arg0: i32) -> (i32, i32) {
    %c0_i32 = arith.constant 0 : i32
    %c0_i32_0 = arith.constant 0 : i32
    %c0_i32_1 = arith.constant 0 : i32
    return %c0_i32, %c0_i32_0 : i32, i32
  }
  func.func @transform_2(%arg0: i32) -> (i32, i32) {
    %c0_i32 = arith.constant 0 : i32
    %c0_i32_0 = arith.constant 0 : i32
    %c0_i32_1 = arith.constant 0 : i32
    return %c0_i32, %c0_i32_0 : i32, i32
  }
  func.func @transform_3(%arg0: i32) -> (i32, i32) {
    %c0_i32 = arith.constant 0 : i32
    %c0_i32_0 = arith.constant 0 : i32
    %c0_i32_1 = arith.constant 0 : i32
    return %c0_i32, %c0_i32_0 : i32, i32
  }
  func.func @transform_4(%arg0: i32) -> (i32, i32) {
    %c0_i32 = arith.constant 0 : i32
    %c0_i32_0 = arith.constant 0 : i32
    %c0_i32_1 = arith.constant 0 : i32
    return %c0_i32, %c0_i32_0 : i32, i32
  }
  func.func @transform_5(%arg0: i32) -> (i32, i32) {
    %c0_i32 = arith.constant 0 : i32
    %c0_i32_0 = arith.constant 0 : i32
    %c0_i32_1 = arith.constant 0 : i32
    return %c0_i32, %c0_i32_0 : i32, i32
  }
  func.func @transform_6(%arg0: i32) -> (i32, i32) {
    %c0_i32 = arith.constant 0 : i32
    %c0_i32_0 = arith.constant 0 : i32
    %c0_i32_1 = arith.constant 0 : i32
    return %c0_i32, %c0_i32_0 : i32, i32
  }
  func.func @transform_7(%arg0: i32) -> (i32, i32) {
    %c0_i32 = arith.constant 0 : i32
    %c0_i32_0 = arith.constant 0 : i32
    %c0_i32_1 = arith.constant 0 : i32
    return %c0_i32, %c0_i32_0 : i32, i32
  }
  func.func @transform_8(%arg0: i32) -> (i32, i32) {
    %c0_i32 = arith.constant 0 : i32
    %c0_i32_0 = arith.constant 0 : i32
    %c0_i32_1 = arith.constant 0 : i32
    return %c0_i32, %c0_i32_0 : i32, i32
  }
  func.func @transform_9(%arg0: i32) -> (i32, i32) {
    %c0_i32 = arith.constant 0 : i32
    %c0_i32_0 = arith.constant 0 : i32
    %c0_i32_1 = arith.constant 0 : i32
    return %c0_i32, %c0_i32_0 : i32, i32
  }
  func.func @transform_10(%arg0: i32) -> (i32, i32) {
    %c0_i32 = arith.constant 0 : i32
    %c0_i32_0 = arith.constant 0 : i32
    %c0_i32_1 = arith.constant 0 : i32
    return %c0_i32, %c0_i32_0 : i32, i32
  }
  func.func @transform_11(%arg0: i32) -> (i32, i32) {
    %c0_i32 = arith.constant 0 : i32
    %c0_i32_0 = arith.constant 0 : i32
    %c0_i32_1 = arith.constant 0 : i32
    return %c0_i32, %c0_i32_0 : i32, i32
  }
  func.func @transform_12(%arg0: i32) -> (i32, i32) {
    %c0_i32 = arith.constant 0 : i32
    %c0_i32_0 = arith.constant 0 : i32
    %c0_i32_1 = arith.constant 0 : i32
    return %c0_i32, %c0_i32_0 : i32, i32
  }
  func.func @transform_13(%arg0: i32) -> (i32, i32) {
    %c0_i32 = arith.constant 0 : i32
    %c0_i32_0 = arith.constant 0 : i32
    %c0_i32_1 = arith.constant 0 : i32
    return %c0_i32, %c0_i32_0 : i32, i32
  }
  func.func @transform_14(%arg0: i32) -> (i32, i32) {
    %c0_i32 = arith.constant 0 : i32
    %c0_i32_0 = arith.constant 0 : i32
    %c0_i32_1 = arith.constant 0 : i32
    return %c0_i32, %c0_i32_0 : i32, i32
  }
  func.func @transform_15(%arg0: i32) -> (i32, i32, i32) {
    %c0_i32 = arith.constant 0 : i32
    %c0_i32_0 = arith.constant 0 : i32
    %c0_i32_1 = arith.constant 0 : i32
    return %arg0, %c0_i32, %c0_i32_0 : i32, i32, i32
  }
}

</mosaic_0001>

<llo_original>
// kernel: srnet_cbam_forward.1
$region0: #{srnet_cbam_forward.1}
  #allocation0 [shape = 'u32[]', space=smem, size = 0x4, offset = 0x4, fixed_abs, tag = 'smem constant byte address 0x4 - core index']
  #allocation1 [shape = 'u32[72,128]{1,0:T(1,128)}', space=vmem, size = 0x9000, scoped, tag = 'internal scratch']
  %s0 = inlined_call_operand.vmem [shape: f32[2,8,256], index: 0, kind: input, shape index: {}]
  %s1 = inlined_call_operand.vmem [shape: f32[49,256], index: 1, kind: input, shape index: {}]
  %s2 = inlined_call_operand.hbm [shape: bf16[16,72], index: 2, kind: input, shape index: {}]
  %s3 = inlined_call_operand.hbm [shape: f32[16,1], index: 3, kind: input, shape index: {}]
  %s4 = inlined_call_operand.hbm [shape: bf16[16,144], index: 4, kind: input, shape index: {}]
  %s5 = inlined_call_operand.hbm [shape: f32[16,1], index: 5, kind: input, shape index: {}]
  %s6 = inlined_call_operand.hbm [shape: bf16[16,144], index: 6, kind: input, shape index: {}]
  %s7 = inlined_call_operand.hbm [shape: f32[16,1], index: 7, kind: input, shape index: {}]
  %s8 = inlined_call_operand.hbm [shape: f32[8,16], index: 8, kind: input, shape index: {}]
  %s9 = inlined_call_operand.hbm [shape: f32[16,8], index: 9, kind: input, shape index: {}]
  %s10 = inlined_call_operand.hbm [shape: bf16[1,392], index: 10, kind: input, shape index: {}]
  %s11 = inlined_call_operand.hbm [shape: bf16[64,144], index: 11, kind: input, shape index: {}]
  %s12 = inlined_call_operand.hbm [shape: f32[64,1], index: 12, kind: input, shape index: {}]
  %s13 = inlined_call_operand.hbm [shape: bf16[16,576], index: 13, kind: input, shape index: {}]
  %s14 = inlined_call_operand.hbm [shape: f32[16,1], index: 14, kind: input, shape index: {}]
  %s15 = inlined_call_operand.vmem [shape: f32[2,16,256], index: 15, kind: output, shape index: {}]
  %s16 = sld [smem:[#allocation0]]
  $region145: #{srnet_cbam_forward.1} parent=0
    _
  %s18 = ssub.s32 1, %s16
  %s19 = scalar_select 0, %s18, %s16
  $region1: #{srnet_cbam_forward.1} parent=0
    #allocation2 [shape = 'u8[4096]{0}', space=vmem, size = 0x1000, scoped, tag = 'input window, operand 2, single buffered']
    #allocation3 [shape = 's32[2]{0}', space=sflag, size = 0x8, scoped, tag = 'scoped memory for srnet_cbam_forward.1']
    #allocation4 [shape = 'u8[8192]{0}', space=vmem, size = 0x2000, scoped, tag = 'input window, operand 3, single buffered']
    #allocation5 [shape = 's32[1]{0}', space=sflag, size = 0x4, scoped, tag = 'scoped memory for srnet_cbam_forward.1']
    #allocation6 [shape = 'u8[8192]{0}', space=vmem, size = 0x2000, scoped, tag = 'input window, operand 4, single buffered']
    #allocation7 [shape = 'u8[8192]{0}', space=vmem, size = 0x2000, scoped, tag = 'input window, operand 5, single buffered']
    #allocation8 [shape = 's32[1]{0}', space=sflag, size = 0x4, scoped, tag = 'scoped memory for srnet_cbam_forward.1']
    #allocation9 [shape = 'u8[8192]{0}', space=vmem, size = 0x2000, scoped, tag = 'input window, operand 6, single buffered']
    #allocation10 [shape = 'u8[8192]{0}', space=vmem, size = 0x2000, scoped, tag = 'input window, operand 7, single buffered']
    #allocation11 [shape = 's32[1]{0}', space=sflag, size = 0x4, scoped, tag = 'scoped memory for srnet_cbam_forward.1']
    #allocation12 [shape = 'u8[4096]{0}', space=vmem, size = 0x1000, scoped, tag = 'input window, operand 8, single buffered']
    #allocation13 [shape = 'u8[8192]{0}', space=vmem, size = 0x2000, scoped, tag = 'input window, operand 9, single buffered']
    #allocation14 [shape = 's32[1]{0}', space=sflag, size = 0x4, scoped, tag = 'scoped memory for srnet_cbam_forward.1']
    #allocation15 [shape = 'u8[2048]{0}', space=vmem, size = 0x800, scoped, tag = 'input window, operand 10, single buffered']
    #allocation16 [shape = 'u8[32768]{0}', space=vmem, size = 0x8000, scoped, tag = 'input window, operand 11, single buffered']
    #allocation17 [shape = 's32[1]{0}', space=sflag, size = 0x4, scoped, tag = 'scoped memory for srnet_cbam_forward.1']
    #allocation18 [shape = 'u8[32768]{0}', space=vmem, size = 0x8000, scoped, tag = 'input window, operand 12, single buffered']
    #allocation19 [shape = 'u8[20480]{0}', space=vmem, size = 0x5000, scoped, tag = 'input window, operand 13, single buffered']
    #allocation20 [shape = 's32[1]{0}', space=sflag, size = 0x4, scoped, tag = 'scoped memory for srnet_cbam_forward.1']
    #allocation21 [shape = 'u8[8192]{0}', space=vmem, size = 0x2000, scoped, tag = 'input window, operand 14, single buffered']
    %20 = vsyncpa [#allocation3], 0
    %21 = vsyncpa [#allocation5], 0
    %22 = vsyncpa [#allocation8], 0
    %23 = vsyncpa [#allocation11], 0
    %24 = vsyncpa [#allocation14], 0
    %25 = vsyncpa [#allocation17], 0
    %26 = vsyncpa [#allocation20], 0
    loop: start=0, step=1, limit=4
    $region2: #{srnet_cbam_forward.1} parent=1 // loop_pre_header
      _
    $region3: #{srnet_cbam_forward.1} parent=1 // loop_header
      %s28 = sphi 0, %s32
      %p29 = scmp.ge.s32.totalorder %s28, 4
      %s38 = sphi 0, %s40
      %s41 = sphi 0, %s38
      %s42 = sphi 0, %s41
      %s58 = sphi 0, %s42
      %s62 = sphi 0, %s62
      %s64 = sphi 0, %s62
      %s65 = sphi 0, %s64
      %s79 = sphi 0, %s65
      %s83 = sphi 0, %s83
      %s85 = sphi 0, %s83
      %s86 = sphi 0, %s85
      %s100 = sphi 0, %s86
      %s104 = sphi 0, %s104
      %s106 = sphi 0, %s104
      %s107 = sphi 0, %s106
      %s121 = sphi 0, %s107
      %s125 = sphi 0, %s125
      %s127 = sphi 0, %s125
      %s128 = sphi 0, %s127
      %s142 = sphi 0, %s128
      %s146 = sphi 0, %s146
      %s148 = sphi 0, %s146
      %s149 = sphi 0, %s148
      %s163 = sphi 0, %s149
      %s167 = sphi 0, %s167
      %s169 = sphi 0, %s167
      %s170 = sphi 0, %s169
      %s184 = sphi 0, %s170
      %s188 = sphi 0, %s188
      %s190 = sphi 0, %s188
      %s191 = sphi 0, %s190
      %s205 = sphi 0, %s191
      %s209 = sphi 0, %s209
      %s211 = sphi 0, %s209
      %s212 = sphi 0, %s211
      %s226 = sphi 0, %s212
      %s230 = sphi 0, %s230
      %s232 = sphi 0, %s230
      %s233 = sphi 0, %s232
      %s247 = sphi 0, %s233
      %s251 = sphi 0, %s251
      %s253 = sphi 0, %s251
      %s254 = sphi 0, %s253
      %s268 = sphi 0, %s254
      %s272 = sphi 0, %s272
      %s274 = sphi 0, %s272
      %s275 = sphi 0, %s274
      %s289 = sphi 0, %s275
      %s293 = sphi 0, %s293
      %s295 = sphi 0, %s293
      %s296 = sphi 0, %s295
      %s310 = sphi 0, %s296
      %s314 = sphi 0, %s314
      %s316 = sphi 0, %s314
      %s317 = sphi 0, %s316
      %s331 = sphi 0, %s317
      %s335 = sphi 0, %s335
      %s337 = sphi 0, %s335
      %s338 = sphi 0, %s337
      %s352 = sphi 0, %s338
      %s358 = sphi 0, %s360
      %s361 = sphi 0, %s358
      %s362 = sphi 0, %s361
      %s378 = sphi 0, %s362
    $region4: #{srnet_cbam_forward.1} parent=1 // loop_header_branch
      %31 = sbr.rel (%p29) target = $region8
    $region5: #{srnet_cbam_forward.1} parent=1 // loop_body
      %s33 = ssub.s32 %s28, 1
      %s34 = ssub.s32 %s28, 2
      %s35 = sadd.s32 %s28, 1
      %s36 = ssub.s32 %s28, %s35
      %p37 = scmp.eq.s32.totalorder %s36, 0
      %s39 = sadd.s32 %s38, 1
      %s40 = scalar_select %p37, %s38, %s39
      %p43 = pneg %p37
      %p44 = scmp.eq.s32.totalorder %s28, 1
      %p45 = por %p43, %p44
      %p46 = scmp.ne.s32.totalorder %s38, %s41
      %p47 = scmp.eq.s32.totalorder %s28, 0
      %p48 = por %p46, %p47
      %p49 = scmp.ne.s32.totalorder %s38, %s41
      %p50 = scmp.eq.s32.totalorder %s33, 1
      %p51 = por %p49, %p50
      %p52 = scmp.ne.s32.totalorder %s41, %s42
      %p53 = scmp.eq.s32.totalorder %s33, 0
      %p54 = por %p52, %p53
      %p55 = scmp.ne.s32.totalorder %s41, %s42
      %p56 = scmp.eq.s32.totalorder %s34, 1
      %p57 = por %p55, %p56
      %p59 = scmp.ne.s32.totalorder %s42, %s58
      %p60 = scmp.eq.s32.totalorder %s34, 0
      %p61 = por %p59, %p60
      %s63 = sadd.s32 %s62, 1
      %p66 = scmp.eq.s32.totalorder %s28, 1
      %p67 = scmp.ne.s32.totalorder %s62, %s64
      %p68 = scmp.eq.s32.totalorder %s28, 0
      %p69 = por %p67, %p68
      %p70 = scmp.ne.s32.totalorder %s62, %s64
      %p71 = scmp.eq.s32.totalorder %s33, 1
      %p72 = por %p70, %p71
      %p73 = scmp.ne.s32.totalorder %s64, %s65
      %p74 = scmp.eq.s32.totalorder %s33, 0
      %p75 = por %p73, %p74
      %p76 = scmp.ne.s32.totalorder %s64, %s65
      %p77 = scmp.eq.s32.totalorder %s34, 1
      %p78 = por %p76, %p77
      %p80 = scmp.ne.s32.totalorder %s65, %s79
      %p81 = scmp.eq.s32.totalorder %s34, 0
      %p82 = por %p80, %p81
      %s84 = sadd.s32 %s83, 1
      %p87 = scmp.eq.s32.totalorder %s28, 1
      %p88 = scmp.ne.s32.totalorder %s83, %s85
      %p89 = scmp.eq.s32.totalorder %s28, 0
      %p90 = por %p88, %p89
      %p91 = scmp.ne.s32.totalorder %s83, %s85
      %p92 = scmp.eq.s32.totalorder %s33, 1
      %p93 = por %p91, %p92
      %p94 = scmp.ne.s32.totalorder %s85, %s86
      %p95 = scmp.eq.s32.totalorder %s33, 0
      %p96 = por %p94, %p95
      %p97 = scmp.ne.s32.totalorder %s85, %s86
      %p98 = scmp.eq.s32.totalorder %s34, 1
      %p99 = por %p97, %p98
      %p101 = scmp.ne.s32.totalorder %s86, %s100
      %p102 = scmp.eq.s32.totalorder %s34, 0
      %p103 = por %p101, %p102
      %s105 = sadd.s32 %s104, 1
      %p108 = scmp.eq.s32.totalorder %s28, 1
      %p109 = scmp.ne.s32.totalorder %s104, %s106
      %p110 = scmp.eq.s32.totalorder %s28, 0
      %p111 = por %p109, %p110
      %p112 = scmp.ne.s32.totalorder %s104, %s106
      %p113 = scmp.eq.s32.totalorder %s33, 1
      %p114 = por %p112, %p113
      %p115 = scmp.ne.s32.totalorder %s106, %s107
      %p116 = scmp.eq.s32.totalorder %s33, 0
      %p117 = por %p115, %p116
      %p118 = scmp.ne.s32.totalorder %s106, %s107
      %p119 = scmp.eq.s32.totalorder %s34, 1
      %p120 = por %p118, %p119
      %p122 = scmp.ne.s32.totalorder %s107, %s121
      %p123 = scmp.eq.s32.totalorder %s34, 0
      %p124 = por %p122, %p123
      %s126 = sadd.s32 %s125, 1
      %p129 = scmp.eq.s32.totalorder %s28, 1
      %p130 = scmp.ne.s32.totalorder %s125, %s127
      %p131 = scmp.eq.s32.totalorder %s28, 0
      %p132 = por %p130, %p131
      %p133 = scmp.ne.s32.totalorder %s125, %s127
      %p134 = scmp.eq.s32.totalorder %s33, 1
      %p135 = por %p133, %p134
      %p136 = scmp.ne.s32.totalorder %s127, %s128
      %p137 = scmp.eq.s32.totalorder %s33, 0
      %p138 = por %p136, %p137
      %p139 = scmp.ne.s32.totalorder %s127, %s128
      %p140 = scmp.eq.s32.totalorder %s34, 1
      %p141 = por %p139, %p140
      %p143 = scmp.ne.s32.totalorder %s128, %s142
      %p144 = scmp.eq.s32.totalorder %s34, 0
      %p145 = por %p143, %p144
      %s147 = sadd.s32 %s146, 1
      %p150 = scmp.eq.s32.totalorder %s28, 1
      %p151 = scmp.ne.s32.totalorder %s146, %s148
      %p152 = scmp.eq.s32.totalorder %s28, 0
      %p153 = por %p151, %p152
      %p154 = scmp.ne.s32.totalorder %s146, %s148
      %p155 = scmp.eq.s32.totalorder %s33, 1
      %p156 = por %p154, %p155
      %p157 = scmp.ne.s32.totalorder %s148, %s149
      %p158 = scmp.eq.s32.totalorder %s33, 0
      %p159 = por %p157, %p158
      %p160 = scmp.ne.s32.totalorder %s148, %s149
      %p161 = scmp.eq.s32.totalorder %s34, 1
      %p162 = por %p160, %p161
      %p164 = scmp.ne.s32.totalorder %s149, %s163
      %p165 = scmp.eq.s32.totalorder %s34, 0
      %p166 = por %p164, %p165
      %s168 = sadd.s32 %s167, 1
      %p171 = scmp.eq.s32.totalorder %s28, 1
      %p172 = scmp.ne.s32.totalorder %s167, %s169
      %p173 = scmp.eq.s32.totalorder %s28, 0
      %p174 = por %p172, %p173
      %p175 = scmp.ne.s32.totalorder %s167, %s169
      %p176 = scmp.eq.s32.totalorder %s33, 1
      %p177 = por %p175, %p176
      %p178 = scmp.ne.s32.totalorder %s169, %s170
      %p179 = scmp.eq.s32.totalorder %s33, 0
      %p180 = por %p178, %p179
      %p181 = scmp.ne.s32.totalorder %s169, %s170
      %p182 = scmp.eq.s32.totalorder %s34, 1
      %p183 = por %p181, %p182
      %p185 = scmp.ne.s32.totalorder %s170, %s184
      %p186 = scmp.eq.s32.totalorder %s34, 0
      %p187 = por %p185, %p186
      %s189 = sadd.s32 %s188, 1
      %p192 = scmp.eq.s32.totalorder %s28, 1
      %p193 = scmp.ne.s32.totalorder %s188, %s190
      %p194 = scmp.eq.s32.totalorder %s28, 0
      %p195 = por %p193, %p194
      %p196 = scmp.ne.s32.totalorder %s188, %s190
      %p197 = scmp.eq.s32.totalorder %s33, 1
      %p198 = por %p196, %p197
      %p199 = scmp.ne.s32.totalorder %s190, %s191
      %p200 = scmp.eq.s32.totalorder %s33, 0
      %p201 = por %p199, %p200
      %p202 = scmp.ne.s32.totalorder %s190, %s191
      %p203 = scmp.eq.s32.totalorder %s34, 1
      %p204 = por %p202, %p203
      %p206 = scmp.ne.s32.totalorder %s191, %s205
      %p207 = scmp.eq.s32.totalorder %s34, 0
      %p208 = por %p206, %p207
      %s210 = sadd.s32 %s209, 1
      %p213 = scmp.eq.s32.totalorder %s28, 1
      %p214 = scmp.ne.s32.totalorder %s209, %s211
      %p215 = scmp.eq.s32.totalorder %s28, 0
      %p216 = por %p214, %p215
      %p217 = scmp.ne.s32.totalorder %s209, %s211
      %p218 = scmp.eq.s32.totalorder %s33, 1
      %p219 = por %p217, %p218
      %p220 = scmp.ne.s32.totalorder %s211, %s212
      %p221 = scmp.eq.s32.totalorder %s33, 0
      %p222 = por %p220, %p221
      %p223 = scmp.ne.s32.totalorder %s211, %s212
      %p224 = scmp.eq.s32.totalorder %s34, 1
      %p225 = por %p223, %p224
      %p227 = scmp.ne.s32.totalorder %s212, %s226
      %p228 = scmp.eq.s32.totalorder %s34, 0
      %p229 = por %p227, %p228
      %s231 = sadd.s32 %s230, 1
      %p234 = scmp.eq.s32.totalorder %s28, 1
      %p235 = scmp.ne.s32.totalorder %s230, %s232
      %p236 = scmp.eq.s32.totalorder %s28, 0
      %p237 = por %p235, %p236
      %p238 = scmp.ne.s32.totalorder %s230, %s232
      %p239 = scmp.eq.s32.totalorder %s33, 1
      %p240 = por %p238, %p239
      %p241 = scmp.ne.s32.totalorder %s232, %s233
      %p242 = scmp.eq.s32.totalorder %s33, 0
      %p243 = por %p241, %p242
      %p244 = scmp.ne.s32.totalorder %s232, %s233
      %p245 = scmp.eq.s32.totalorder %s34, 1
      %p246 = por %p244, %p245
      %p248 = scmp.ne.s32.totalorder %s233, %s247
      %p249 = scmp.eq.s32.totalorder %s34, 0
      %p250 = por %p248, %p249
      %s252 = sadd.s32 %s251, 1
      %p255 = scmp.eq.s32.totalorder %s28, 1
      %p256 = scmp.ne.s32.totalorder %s251, %s253
      %p257 = scmp.eq.s32.totalorder %s28, 0
      %p258 = por %p256, %p257
      %p259 = scmp.ne.s32.totalorder %s251, %s253
      %p260 = scmp.eq.s32.totalorder %s33, 1
      %p261 = por %p259, %p260
      %p262 = scmp.ne.s32.totalorder %s253, %s254
      %p263 = scmp.eq.s32.totalorder %s33, 0
      %p264 = por %p262, %p263
      %p265 = scmp.ne.s32.totalorder %s253, %s254
      %p266 = scmp.eq.s32.totalorder %s34, 1
      %p267 = por %p265, %p266
      %p269 = scmp.ne.s32.totalorder %s254, %s268
      %p270 = scmp.eq.s32.totalorder %s34, 0
      %p271 = por %p269, %p270
      %s273 = sadd.s32 %s272, 1
      %p276 = scmp.eq.s32.totalorder %s28, 1
      %p277 = scmp.ne.s32.totalorder %s272, %s274
      %p278 = scmp.eq.s32.totalorder %s28, 0
      %p279 = por %p277, %p278
      %p280 = scmp.ne.s32.totalorder %s272, %s274
      %p281 = scmp.eq.s32.totalorder %s33, 1
      %p282 = por %p280, %p281
      %p283 = scmp.ne.s32.totalorder %s274, %s275
      %p284 = scmp.eq.s32.totalorder %s33, 0
      %p285 = por %p283, %p284
      %p286 = scmp.ne.s32.totalorder %s274, %s275
      %p287 = scmp.eq.s32.totalorder %s34, 1
      %p288 = por %p286, %p287
      %p290 = scmp.ne.s32.totalorder %s275, %s289
      %p291 = scmp.eq.s32.totalorder %s34, 0
      %p292 = por %p290, %p291
      %s294 = sadd.s32 %s293, 1
      %p297 = scmp.eq.s32.totalorder %s28, 1
      %p298 = scmp.ne.s32.totalorder %s293, %s295
      %p299 = scmp.eq.s32.totalorder %s28, 0
      %p300 = por %p298, %p299
      %p301 = scmp.ne.s32.totalorder %s293, %s295
      %p302 = scmp.eq.s32.totalorder %s33, 1
      %p303 = por %p301, %p302
      %p304 = scmp.ne.s32.totalorder %s295, %s296
      %p305 = scmp.eq.s32.totalorder %s33, 0
      %p306 = por %p304, %p305
      %p307 = scmp.ne.s32.totalorder %s295, %s296
      %p308 = scmp.eq.s32.totalorder %s34, 1
      %p309 = por %p307, %p308
      %p311 = scmp.ne.s32.totalorder %s296, %s310
      %p312 = scmp.eq.s32.totalorder %s34, 0
      %p313 = por %p311, %p312
      %s315 = sadd.s32 %s314, 1
      %p318 = scmp.eq.s32.totalorder %s28, 1
      %p319 = scmp.ne.s32.totalorder %s314, %s316
      %p320 = scmp.eq.s32.totalorder %s28, 0
      %p321 = por %p319, %p320
      %p322 = scmp.ne.s32.totalorder %s314, %s316
      %p323 = scmp.eq.s32.totalorder %s33, 1
      %p324 = por %p322, %p323
      %p325 = scmp.ne.s32.totalorder %s316, %s317
      %p326 = scmp.eq.s32.totalorder %s33, 0
      %p327 = por %p325, %p326
      %p328 = scmp.ne.s32.totalorder %s316, %s317
      %p329 = scmp.eq.s32.totalorder %s34, 1
      %p330 = por %p328, %p329
      %p332 = scmp.ne.s32.totalorder %s317, %s331
      %p333 = scmp.eq.s32.totalorder %s34, 0
      %p334 = por %p332, %p333
      %s336 = sadd.s32 %s335, 1
      %p339 = scmp.eq.s32.totalorder %s28, 1
      %p340 = scmp.ne.s32.totalorder %s335, %s337
      %p341 = scmp.eq.s32.totalorder %s28, 0
      %p342 = por %p340, %p341
      %p343 = scmp.ne.s32.totalorder %s335, %s337
      %p344 = scmp.eq.s32.totalorder %s33, 1
      %p345 = por %p343, %p344
      %p346 = scmp.ne.s32.totalorder %s337, %s338
      %p347 = scmp.eq.s32.totalorder %s33, 0
      %p348 = por %p346, %p347
      %p349 = scmp.ne.s32.totalorder %s337, %s338
      %p350 = scmp.eq.s32.totalorder %s34, 1
      %p351 = por %p349, %p350
      %p353 = scmp.ne.s32.totalorder %s338, %s352
      %p354 = scmp.eq.s32.totalorder %s34, 0
      %p355 = por %p353, %p354
      %s356 = ssub.s32 %s28, %s35
      %p357 = scmp.eq.s32.totalorder %s356, 0
      %s359 = sadd.s32 %s358, 1
      %s360 = scalar_select %p357, %s358, %s359
      %p363 = pneg %p357
      %p364 = scmp.eq.s32.totalorder %s28, 1
      %p365 = por %p363, %p364
      %p366 = scmp.ne.s32.totalorder %s358, %s361
      %p367 = scmp.eq.s32.totalorder %s28, 0
      %p368 = por %p366, %p367
      %p369 = scmp.ne.s32.totalorder %s358, %s361
      %p370 = scmp.eq.s32.totalorder %s33, 1
      %p371 = por %p369, %p370
      %p372 = scmp.ne.s32.totalorder %s361, %s362
      %p373 = scmp.eq.s32.totalorder %s33, 0
      %p374 = por %p372, %p373
      %p375 = scmp.ne.s32.totalorder %s361, %s362
      %p376 = scmp.eq.s32.totalorder %s34, 1
      %p377 = por %p375, %p376
      %p379 = scmp.ne.s32.totalorder %s362, %s378
      %p380 = scmp.eq.s32.totalorder %s34, 0
      %p381 = por %p379, %p380
      %p382 = scmp.le.s32.totalorder 1, %s28
      %p383 = scmp.lt.s32.totalorder %s28, 3
      %p384 = pnand %p382, %p383
      %p385 = pneg %p384
      // Predicated region
      $region9: #{srnet_cbam_forward.1} parent=5 // pred_check
        _
      $region10: #{srnet_cbam_forward.1} parent=5 // pred_check_branch
        %387 = sbr.rel (%p384) target = $region12
      $region11: #{srnet_cbam_forward.1} parent=5 // pred_region
        %s388 = ssub.s32 %s28, 1
        // Predicated region
        $region13: #{srnet_cbam_forward.1} parent=11 // pred_check
          %p389 = pneg %p75
        $region14: #{srnet_cbam_forward.1} parent=11 // pred_check_branch
          %391 = sbr.rel (%p389) target = $region16
        $region15: #{srnet_cbam_forward.1} parent=11 // pred_region
          _
        $region16: #{srnet_cbam_forward.1} parent=11 // pred_fallthru
          _
        // Predicated region
        $region17: #{srnet_cbam_forward.1} parent=11 // pred_check
          %p392 = pneg %p96
        $region18: #{srnet_cbam_forward.1} parent=11 // pred_check_branch
          %394 = sbr.rel (%p392) target = $region20
        $region19: #{srnet_cbam_forward.1} parent=11 // pred_region
          %396 = vsyncadd [#allocation3], 0
          %s397 = sshll.u32 %s2, 4
          %s398 = int_to_ptr.hbm [resolvable:$true] %s397
          %s399 = sshll.u32 [#allocation2], 4
          %s400 = int_to_ptr.vmem [resolvable:$true] %s399
          %405 = dma.hbm_to_vmem [thread:$0]  %s398, 128, %s400, [#allocation3], 64, 64, 4
        $region20: #{srnet_cbam_forward.1} parent=11 // pred_fallthru
          _
        // Predicated region
        $region21: #{srnet_cbam_forward.1} parent=11 // pred_check
          %p406 = pneg %p117
        $region22: #{srnet_cbam_forward.1} parent=11 // pred_check_branch
          %408 = sbr.rel (%p406) target = $region24
        $region23: #{srnet_cbam_forward.1} parent=11 // pred_region
          %410 = vsyncadd [#allocation5], 0
          %s411 = sshll.u32 %s3, 4
          %s412 = int_to_ptr.hbm [resolvable:$true] %s411
          %s413 = sshll.u32 [#allocation4], 4
          %s414 = int_to_ptr.vmem [resolvable:$true] %s413
          %419 = dma.hbm_to_vmem [thread:$0]  %s412, 256, %s414, [#allocation5], 128, 128, 8
        $region24: #{srnet_cbam_forward.1} parent=11 // pred_fallthru
          _
        // Predicated region
        $region25: #{srnet_cbam_forward.1} parent=11 // pred_check
          %p420 = pneg %p138
        $region26: #{srnet_cbam_forward.1} parent=11 // pred_check_branch
          %422 = sbr.rel (%p420) target = $region28
        $region27: #{srnet_cbam_forward.1} parent=11 // pred_region
          %424 = vsyncadd [#allocation5], 0
          %s425 = sshll.u32 %s4, 4
          %s426 = int_to_ptr.hbm [resolvable:$true] %s425
          %s427 = sshll.u32 [#allocation6], 4
          %s428 = int_to_ptr.vmem [resolvable:$true] %s427
          %433 = dma.hbm_to_vmem [thread:$0]  %s426, 256, %s428, [#allocation5], 128, 128, 8
        $region28: #{srnet_cbam_forward.1} parent=11 // pred_fallthru
          _
        // Predicated region
        $region29: #{srnet_cbam_forward.1} parent=11 // pred_check
          %p434 = pneg %p159
        $region30: #{srnet_cbam_forward.1} parent=11 // pred_check_branch
          %436 = sbr.rel (%p434) target = $region32
        $region31: #{srnet_cbam_forward.1} parent=11 // pred_region
          %438 = vsyncadd [#allocation8], 0
          %s439 = sshll.u32 %s5, 4
          %s440 = int_to_ptr.hbm [resolvable:$true] %s439
          %s441 = sshll.u32 [#allocation7], 4
          %s442 = int_to_ptr.vmem [resolvable:$true] %s441
          %447 = dma.hbm_to_vmem [thread:$0]  %s440, 256, %s442, [#allocation8], 128, 128, 8
        $region32: #{srnet_cbam_forward.1} parent=11 // pred_fallthru
          _
        // Predicated region
        $region33: #{srnet_cbam_forward.1} parent=11 // pred_check
          %p448 = pneg %p180
        $region34: #{srnet_cbam_forward.1} parent=11 // pred_check_branch
          %450 = sbr.rel (%p448) target = $region36
        $region35: #{srnet_cbam_forward.1} parent=11 // pred_region
          %452 = vsyncadd [#allocation8], 0
          %s453 = sshll.u32 %s6, 4
          %s454 = int_to_ptr.hbm [resolvable:$true] %s453
          %s455 = sshll.u32 [#allocation9], 4
          %s456 = int_to_ptr.vmem [resolvable:$true] %s455
          %461 = dma.hbm_to_vmem [thread:$0]  %s454, 256, %s456, [#allocation8], 128, 128, 8
        $region36: #{srnet_cbam_forward.1} parent=11 // pred_fallthru
          _
        // Predicated region
        $region37: #{srnet_cbam_forward.1} parent=11 // pred_check
          %p462 = pneg %p201
        $region38: #{srnet_cbam_forward.1} parent=11 // pred_check_branch
          %464 = sbr.rel (%p462) target = $region40
        $region39: #{srnet_cbam_forward.1} parent=11 // pred_region
          %466 = vsyncadd [#allocation11], 0
          %s467 = sshll.u32 %s7, 4
          %s468 = int_to_ptr.hbm [resolvable:$true] %s467
          %s469 = sshll.u32 [#allocation10], 4
          %s470 = int_to_ptr.vmem [resolvable:$true] %s469
          %475 = dma.hbm_to_vmem [thread:$0]  %s468, 256, %s470, [#allocation11], 128, 128, 8
        $region40: #{srnet_cbam_forward.1} parent=11 // pred_fallthru
          _
        // Predicated region
        $region41: #{srnet_cbam_forward.1} parent=11 // pred_check
          %p476 = pneg %p222
        $region42: #{srnet_cbam_forward.1} parent=11 // pred_check_branch
          %478 = sbr.rel (%p476) target = $region44
        $region43: #{srnet_cbam_forward.1} parent=11 // pred_region
          %480 = vsyncadd [#allocation11], 0
          %s482 = sshll.u32 %s8, 4
          %s483 = int_to_ptr.hbm [resolvable:$true] %s482
          %s484 = sshll.u32 [#allocation12], 4
          %s485 = int_to_ptr.vmem [resolvable:$true] %s484
          %487 = dma.hbm_to_vmem [thread:$0]  %s483, 128, %s485, [#allocation11]
        $region44: #{srnet_cbam_forward.1} parent=11 // pred_fallthru
          _
        // Predicated region
        $region45: #{srnet_cbam_forward.1} parent=11 // pred_check
          %p488 = pneg %p243
        $region46: #{srnet_cbam_forward.1} parent=11 // pred_check_branch
          %490 = sbr.rel (%p488) target = $region48
        $region47: #{srnet_cbam_forward.1} parent=11 // pred_region
          %492 = vsyncadd [#allocation14], 0
          %s493 = sshll.u32 %s9, 4
          %s494 = int_to_ptr.hbm [resolvable:$true] %s493
          %s495 = sshll.u32 [#allocation13], 4
          %s496 = int_to_ptr.vmem [resolvable:$true] %s495
          %501 = dma.hbm_to_vmem [thread:$0]  %s494, 256, %s496, [#allocation14], 128, 128, 8
        $region48: #{srnet_cbam_forward.1} parent=11 // pred_fallthru
          _
        // Predicated region
        $region49: #{srnet_cbam_forward.1} parent=11 // pred_check
          %p502 = pneg %p264
        $region50: #{srnet_cbam_forward.1} parent=11 // pred_check_branch
          %504 = sbr.rel (%p502) target = $region52
        $region51: #{srnet_cbam_forward.1} parent=11 // pred_region
          %506 = vsyncadd [#allocation14], 0
          %s508 = sshll.u32 %s10, 4
          %s509 = int_to_ptr.hbm [resolvable:$true] %s508
          %s510 = sshll.u32 [#allocation15], 4
          %s511 = int_to_ptr.vmem [resolvable:$true] %s510
          %513 = dma.hbm_to_vmem [thread:$0]  %s509, 64, %s511, [#allocation14]
        $region52: #{srnet_cbam_forward.1} parent=11 // pred_fallthru
          _
        // Predicated region
        $region53: #{srnet_cbam_forward.1} parent=11 // pred_check
          %p514 = pneg %p285
        $region54: #{srnet_cbam_forward.1} parent=11 // pred_check_branch
          %516 = sbr.rel (%p514) target = $region56
        $region55: #{srnet_cbam_forward.1} parent=11 // pred_region
          %518 = vsyncadd [#allocation17], 0
          %s519 = sshll.u32 %s11, 4
          %s520 = int_to_ptr.hbm [resolvable:$true] %s519
          %s521 = sshll.u32 [#allocation16], 4
          %s522 = int_to_ptr.vmem [resolvable:$true] %s521
          %527 = dma.hbm_to_vmem [thread:$0]  %s520, 1024, %s522, [#allocation17], 128, 128, 8
        $region56: #{srnet_cbam_forward.1} parent=11 // pred_fallthru
          _
        // Predicated region
        $region57: #{srnet_cbam_forward.1} parent=11 // pred_check
          %p528 = pneg %p306
        $region58: #{srnet_cbam_forward.1} parent=11 // pred_check_branch
          %530 = sbr.rel (%p528) target = $region60
        $region59: #{srnet_cbam_forward.1} parent=11 // pred_region
          %532 = vsyncadd [#allocation17], 0
          %s533 = sshll.u32 %s12, 4
          %s534 = int_to_ptr.hbm [resolvable:$true] %s533
          %s535 = sshll.u32 [#allocation18], 4
          %s536 = int_to_ptr.vmem [resolvable:$true] %s535
          %541 = dma.hbm_to_vmem [thread:$0]  %s534, 1024, %s536, [#allocation17], 128, 128, 8
        $region60: #{srnet_cbam_forward.1} parent=11 // pred_fallthru
          _
        // Predicated region
        $region61: #{srnet_cbam_forward.1} parent=11 // pred_check
          %p542 = pneg %p327
        $region62: #{srnet_cbam_forward.1} parent=11 // pred_check_branch
          %544 = sbr.rel (%p542) target = $region64
        $region63: #{srnet_cbam_forward.1} parent=11 // pred_region
          %546 = vsyncadd [#allocation20], 0
          %s547 = sshll.u32 %s13, 4
          %s548 = int_to_ptr.hbm [resolvable:$true] %s547
          %s549 = sshll.u32 [#allocation19], 4
          %s550 = int_to_ptr.vmem [resolvable:$true] %s549
          %555 = dma.hbm_to_vmem [thread:$0]  %s548, 640, %s550, [#allocation20], 320, 320, 20
        $region64: #{srnet_cbam_forward.1} parent=11 // pred_fallthru
          _
        // Predicated region
        $region65: #{srnet_cbam_forward.1} parent=11 // pred_check
          %p556 = pneg %p348
        $region66: #{srnet_cbam_forward.1} parent=11 // pred_check_branch
          %558 = sbr.rel (%p556) target = $region68
        $region67: #{srnet_cbam_forward.1} parent=11 // pred_region
          %560 = vsyncadd [#allocation20], 0
          %s561 = sshll.u32 %s14, 4
          %s562 = int_to_ptr.hbm [resolvable:$true] %s561
          %s563 = sshll.u32 [#allocation21], 4
          %s564 = int_to_ptr.vmem [resolvable:$true] %s563
          %569 = dma.hbm_to_vmem [thread:$0]  %s562, 256, %s564, [#allocation20], 128, 128, 8
        $region68: #{srnet_cbam_forward.1} parent=11 // pred_fallthru
          _
      $region12: #{srnet_cbam_forward.1} parent=5 // pred_fallthru
        _
      %p570 = scmp.lt.s32.totalorder %s28, 2
      // Predicated region
      $region69: #{srnet_cbam_forward.1} parent=5 // pred_check
        %p571 = pneg %p570
      $region70: #{srnet_cbam_forward.1} parent=5 // pred_check_branch
        %573 = sbr.rel (%p571) target = $region72
      $region71: #{srnet_cbam_forward.1} parent=5 // pred_region
        // Predicated region
        $region73: #{srnet_cbam_forward.1} parent=71 // pred_check
          %p574 = pneg %p48
        $region74: #{srnet_cbam_forward.1} parent=71 // pred_check_branch
          %576 = sbr.rel (%p574) target = $region76
        $region75: #{srnet_cbam_forward.1} parent=71 // pred_region
          %p577 = scmp.lt.s32.totalorder %s28, 1
          %s578 = scalar_select %p577, %s28, 1
          %s579 = smul.addr %s578, 2
          %s580 = smul.addr %s579, 8
          %s581 = scalar_lea.vmem %s0, %s580
        $region76: #{srnet_cbam_forward.1} parent=71 // pred_fallthru
          _
      $region72: #{srnet_cbam_forward.1} parent=5 // pred_fallthru
        _
      %p582 = scmp.le.s32.totalorder 1, %s28
      %p583 = scmp.lt.s32.totalorder %s28, 3
      %p584 = pnand %p582, %p583
      %p585 = pneg %p584
      // Predicated region
      $region77: #{srnet_cbam_forward.1} parent=5 // pred_check
        _
      $region78: #{srnet_cbam_forward.1} parent=5 // pred_check_branch
        %587 = sbr.rel (%p584) target = $region80
      $region79: #{srnet_cbam_forward.1} parent=5 // pred_region
        %s588 = ssub.s32 %s28, 1
        // Predicated region
        $region81: #{srnet_cbam_forward.1} parent=79 // pred_check
          %p589 = pneg %p96
        $region82: #{srnet_cbam_forward.1} parent=79 // pred_check_branch
          %591 = sbr.rel (%p589) target = $region84
        $region83: #{srnet_cbam_forward.1} parent=79 // pred_region
          %593 = dma.done [#allocation3], 128
        $region84: #{srnet_cbam_forward.1} parent=79 // pred_fallthru
          _
        // Predicated region
        $region85: #{srnet_cbam_forward.1} parent=79 // pred_check
          %p594 = pneg %p117
        $region86: #{srnet_cbam_forward.1} parent=79 // pred_check_branch
          %596 = sbr.rel (%p594) target = $region88
        $region87: #{srnet_cbam_forward.1} parent=79 // pred_region
          %598 = dma.done [#allocation5], 256
        $region88: #{srnet_cbam_forward.1} parent=79 // pred_fallthru
          _
        // Predicated region
        $region89: #{srnet_cbam_forward.1} parent=79 // pred_check
          %p599 = pneg %p138
        $region90: #{srnet_cbam_forward.1} parent=79 // pred_check_branch
          %601 = sbr.rel (%p599) target = $region92
        $region91: #{srnet_cbam_forward.1} parent=79 // pred_region
          %603 = dma.done [#allocation5], 256
        $region92: #{srnet_cbam_forward.1} parent=79 // pred_fallthru
          _
        // Predicated region
        $region93: #{srnet_cbam_forward.1} parent=79 // pred_check
          %p604 = pneg %p159
        $region94: #{srnet_cbam_forward.1} parent=79 // pred_check_branch
          %606 = sbr.rel (%p604) target = $region96
        $region95: #{srnet_cbam_forward.1} parent=79 // pred_region
          %608 = dma.done [#allocation8], 256
        $region96: #{srnet_cbam_forward.1} parent=79 // pred_fallthru
          _
        // Predicated region
        $region97: #{srnet_cbam_forward.1} parent=79 // pred_check
          %p609 = pneg %p180
        $region98: #{srnet_cbam_forward.1} parent=79 // pred_check_branch
          %611 = sbr.rel (%p609) target = $region100
        $region99: #{srnet_cbam_forward.1} parent=79 // pred_region
          %613 = dma.done [#allocation8], 256
        $region100: #{srnet_cbam_forward.1} parent=79 // pred_fallthru
          _
        // Predicated region
        $region101: #{srnet_cbam_forward.1} parent=79 // pred_check
          %p614 = pneg %p201
        $region102: #{srnet_cbam_forward.1} parent=79 // pred_check_branch
          %616 = sbr.rel (%p614) target = $region104
        $region103: #{srnet_cbam_forward.1} parent=79 // pred_region
          %618 = dma.done [#allocation11], 256
        $region104: #{srnet_cbam_forward.1} parent=79 // pred_fallthru
          _
        // Predicated region
        $region105: #{srnet_cbam_forward.1} parent=79 // pred_check
          %p619 = pneg %p222
        $region106: #{srnet_cbam_forward.1} parent=79 // pred_check_branch
          %621 = sbr.rel (%p619) target = $region108
        $region107: #{srnet_cbam_forward.1} parent=79 // pred_region
          %623 = dma.done [#allocation11], 128
        $region108: #{srnet_cbam_forward.1} parent=79 // pred_fallthru
          _
        // Predicated region
        $region109: #{srnet_cbam_forward.1} parent=79 // pred_check
          %p624 = pneg %p243
        $region110: #{srnet_cbam_forward.1} parent=79 // pred_check_branch
          %626 = sbr.rel (%p624) target = $region112
        $region111: #{srnet_cbam_forward.1} parent=79 // pred_region
          %628 = dma.done [#allocation14], 256
        $region112: #{srnet_cbam_forward.1} parent=79 // pred_fallthru
          _
        // Predicated region
        $region113: #{srnet_cbam_forward.1} parent=79 // pred_check
          %p629 = pneg %p264
        $region114: #{srnet_cbam_forward.1} parent=79 // pred_check_branch
          %631 = sbr.rel (%p629) target = $region116
        $region115: #{srnet_cbam_forward.1} parent=79 // pred_region
          %633 = dma.done [#allocation14], 64
        $region116: #{srnet_cbam_forward.1} parent=79 // pred_fallthru
          _
        // Predicated region
        $region117: #{srnet_cbam_forward.1} parent=79 // pred_check
          %p634 = pneg %p285
        $region118: #{srnet_cbam_forward.1} parent=79 // pred_check_branch
          %636 = sbr.rel (%p634) target = $region120
        $region119: #{srnet_cbam_forward.1} parent=79 // pred_region
          %638 = dma.done [#allocation17], 1024
        $region120: #{srnet_cbam_forward.1} parent=79 // pred_fallthru
          _
        // Predicated region
        $region121: #{srnet_cbam_forward.1} parent=79 // pred_check
          %p639 = pneg %p306
        $region122: #{srnet_cbam_forward.1} parent=79 // pred_check_branch
          %641 = sbr.rel (%p639) target = $region124
        $region123: #{srnet_cbam_forward.1} parent=79 // pred_region
          %643 = dma.done [#allocation17], 1024
        $region124: #{srnet_cbam_forward.1} parent=79 // pred_fallthru
          _
        // Predicated region
        $region125: #{srnet_cbam_forward.1} parent=79 // pred_check
          %p644 = pneg %p327
        $region126: #{srnet_cbam_forward.1} parent=79 // pred_check_branch
          %646 = sbr.rel (%p644) target = $region128
        $region127: #{srnet_cbam_forward.1} parent=79 // pred_region
          %648 = dma.done [#allocation20], 640
        $region128: #{srnet_cbam_forward.1} parent=79 // pred_fallthru
          _
        // Predicated region
        $region129: #{srnet_cbam_forward.1} parent=79 // pred_check
          %p649 = pneg %p348
        $region130: #{srnet_cbam_forward.1} parent=79 // pred_check_branch
          %651 = sbr.rel (%p649) target = $region132
        $region131: #{srnet_cbam_forward.1} parent=79 // pred_region
          %653 = dma.done [#allocation20], 256
        $region132: #{srnet_cbam_forward.1} parent=79 // pred_fallthru
          _
        %p654 = scmp.lt.s32.totalorder %s33, 1
        %s655 = scalar_select %p654, %s33, 1
        %s656 = smul.addr %s655, 2
        %s657 = smul.addr %s656, 8
        %s658 = scalar_lea.vmem %s0, %s657
        %p659 = pneg %p54
        %p660 = pneg %p51
        %p661 = pneg %p75
        %p662 = pneg %p72
        %p663 = pneg %p96
        %p664 = pneg %p93
        %p665 = pneg %p117
        %p666 = pneg %p114
        %p667 = pneg %p138
        %p668 = pneg %p135
        %p669 = pneg %p159
        %p670 = pneg %p156
        %p671 = pneg %p180
        %p672 = pneg %p177
        %p673 = pneg %p201
        %p674 = pneg %p198
        %p675 = pneg %p222
        %p676 = pneg %p219
        %p677 = pneg %p243
        %p678 = pneg %p240
        %p679 = pneg %p264
        %p680 = pneg %p261
        %p681 = pneg %p285
        %p682 = pneg %p282
        %p683 = pneg %p306
        %p684 = pneg %p303
        %p685 = pneg %p327
        %p686 = pneg %p324
        %p687 = pneg %p348
        %p688 = pneg %p345
        %p689 = pneg %p374
        %p690 = pneg %p371
        %p691 = scmp.lt.s32.totalorder %s33, 1
        %s692 = scalar_select %p691, %s33, 1
        %s693 = smul.addr %s692, 4
        %s694 = smul.addr %s693, 8
        %s695 = scalar_lea.vmem %s15, %s694
        %p696 = scmp.lt.s32.totalorder %s33, 1
        %s697 = scalar_select %p696, %s33, 1
        %s698 = smul.addr %s697, 2
        %s699 = smul.addr %s698, 8
        %s700 = scalar_lea.vmem %s0, %s699
        %p701 = scmp.lt.s32.totalorder %s33, 1
        %s702 = scalar_select %p701, %s33, 1
        %s703 = smul.addr %s702, 4
        %s704 = smul.addr %s703, 8
        %s705 = scalar_lea.vmem %s15, %s704
        %v707 = vld [vmem:[%s700] sm:$0xff]
        %v708 = vld [vmem:[%s700 + $0x8] sm:$0xff]
        %v709 = vld [vmem:[#allocation2] sm:$0xf]
        %v710 = vld [vmem:[#allocation2 + $0x4] sm:$0xf]
        %711 = vrot.lane.b32.xlu0 %v707, 17
        %v712 = vpop.permute.xlu0 %711
        %713 = vrot.lane.b32.xlu0 %v708, 17
        %v714 = vpop.permute.xlu0 %713
        %v715 = vlaneseq
        %v716 = vand.u32 %v715, 127
        %vm717 = vcmp.lt.s32.totalorder %v716, 17
        %v718 = vsel %vm717, %v712, %v714
        %v719 = vsel %vm717, %v714, %v712
        %s720 = scalar_lea.vmem %s1, 32
        %v721 = vld [vmem:[%s720] ss:$8 sm:$0x3]
        %v723 = vperm.slane %v721, 0
        %v724 = vperm.slane %v721, 1
        %v727 = vmul.f32 %v719, %v723
        %v728 = vmul.f32 %v718, %v724
        %729 = vrot.lane.b32.xlu0 %v707, 16
        %v730 = vpop.permute.xlu0 %729
        %731 = vrot.lane.b32.xlu0 %v708, 16
        %v732 = vpop.permute.xlu0 %731
        %vm733 = vcmp.lt.s32.totalorder %v716, 16
        %v734 = vsel %vm733, %v730, %v732
        %v735 = vsel %vm733, %v732, %v730
        %s736 = scalar_lea.vmem %s1, 33
        %v737 = vld [vmem:[%s736] ss:$8 sm:$0x3]
        %v739 = vperm.slane %v737, 0
        %v740 = vperm.slane %v737, 1
        %v743 = vmul.f32 %v735, %v739
        %v744 = vmul.f32 %v734, %v740
        %745 = vrot.lane.b32.xlu0 %v707, 15
        %v746 = vpop.permute.xlu0 %745
        %747 = vrot.lane.b32.xlu0 %v708, 15
        %v748 = vpop.permute.xlu0 %747
        %vm749 = vcmp.lt.s32.totalorder %v716, 15
        %v750 = vsel %vm749, %v746, %v748
        %v751 = vsel %vm749, %v748, %v746
        %s752 = scalar_lea.vmem %s1, 34
        %v753 = vld [vmem:[%s752] ss:$8 sm:$0x3]
        %v755 = vperm.slane %v753, 0
        %v756 = vperm.slane %v753, 1
        %v759 = vmul.f32 %v751, %v755
        %v760 = vmul.f32 %v750, %v756
        %761 = vrot.lane.b32.xlu0 %v707, 1
        %v762 = vpop.permute.xlu0 %761
        %763 = vrot.lane.b32.xlu0 %v708, 1
        %v764 = vpop.permute.xlu0 %763
        %vm765 = vcmp.lt.s32.totalorder %v716, 1
        %v766 = vsel %vm765, %v762, %v764
        %v767 = vsel %vm765, %v764, %v762
        %s768 = scalar_lea.vmem %s1, 39
        %v769 = vld [vmem:[%s768] ss:$8 sm:$0x3]
        %v771 = vperm.slane %v769, 0
        %v772 = vperm.slane %v769, 1
        %v775 = vmul.f32 %v767, %v771
        %v776 = vmul.f32 %v766, %v772
        %777 = vrot.lane.b32.xlu0 %v707, 127
        %v778 = vpop.permute.xlu0 %777
        %779 = vrot.lane.b32.xlu0 %v708, 127
        %v780 = vpop.permute.xlu0 %779
        %vm781 = vcmp.lt.s32.totalorder %v716, 127
        %v782 = vsel %vm781, %v778, %v780
        %v783 = vsel %vm781, %v780, %v778
        %s784 = scalar_lea.vmem %s1, 49
        %v785 = vld [vmem:[%s784] ss:$8 sm:$0x3]
        %v787 = vperm.slane %v785, 0
        %v788 = vperm.slane %v785, 1
        %v791 = vmul.f32 %v782, %v787
        %v792 = vmul.f32 %v783, %v788
        %793 = vrot.lane.b32.xlu0 %v707, 113
        %v794 = vpop.permute.xlu0 %793
        %795 = vrot.lane.b32.xlu0 %v708, 113
        %v796 = vpop.permute.xlu0 %795
        %vm797 = vcmp.lt.s32.totalorder %v716, 113
        %v798 = vsel %vm797, %v794, %v796
        %v799 = vsel %vm797, %v796, %v794
        %s800 = scalar_lea.vmem %s1, 54
        %v801 = vld [vmem:[%s800] ss:$8 sm:$0x3]
        %v803 = vperm.slane %v801, 0
        %v804 = vperm.slane %v801, 1
        %v807 = vmul.f32 %v798, %v803
        %v808 = vmul.f32 %v799, %v804
        %809 = vrot.lane.b32.xlu0 %v707, 112
        %v810 = vpop.permute.xlu0 %809
        %811 = vrot.lane.b32.xlu0 %v708, 112
        %v812 = vpop.permute.xlu0 %811
        %vm813 = vcmp.lt.s32.totalorder %v716, 112
        %v814 = vsel %vm813, %v810, %v812
        %v815 = vsel %vm813, %v812, %v810
        %s816 = scalar_lea.vmem %s1, 55
        %v817 = vld [vmem:[%s816] ss:$8 sm:$0x3]
        %v819 = vperm.slane %v817, 0
        %v820 = vperm.slane %v817, 1
        %v823 = vmul.f32 %v814, %v819
        %v824 = vmul.f32 %v815, %v820
        %825 = vrot.lane.b32.xlu0 %v707, 111
        %v826 = vpop.permute.xlu0 %825
        %827 = vrot.lane.b32.xlu0 %v708, 111
        %v828 = vpop.permute.xlu0 %827
        %vm829 = vcmp.lt.s32.totalorder %v716, 111
        %v830 = vsel %vm829, %v826, %v828
        %v831 = vsel %vm829, %v828, %v826
        %s832 = scalar_lea.vmem %s1, 64
        %v833 = vld [vmem:[%s832] ss:$8 sm:$0x3]
        %v835 = vperm.slane %v833, 0
        %v836 = vperm.slane %v833, 1
        %v839 = vmul.f32 %v830, %v835
        %v840 = vmul.f32 %v831, %v836
        %v841 = vpack.c.bf16 %v743, %v727
        %v842 = vpack.c.bf16 %v744, %v728
        %v843 = vpack.c.bf16 %v775, %v759
        %v844 = vpack.c.bf16 %v776, %v760
        %v845 = vpack.c.bf16 %v791, %v707
        %v846 = vpack.c.bf16 %v792, %v708
        %v847 = vpack.c.bf16 %v823, %v807
        %v848 = vpack.c.bf16 %v824, %v808
        %v849 = vpack.c.bf16 %v839, %v839
        %v850 = vpack.c.bf16 %v840, %v840
        %v851 = vld [vmem:[#allocation4] sm:$0xff]
        %v852 = vld [vmem:[#allocation4 + $0x8] sm:$0xff]
        %854 = vset.pattern.permute.xlu0 0
        %855 = vperm.xlu0 %854, %v851
        %v856 = vpop.permute.xlu0 %855
        %859 = vset.pattern.permute.xlu0 0
        %860 = vperm.xlu0 %859, %v852
        %v861 = vpop.permute.xlu0 %860
        %v865 = vunpack.c.l.b16 %v709
        %v866 = vunpack.c.l.b16 %v710
        %v867 = vpack.c.b16 %v866, %v865
        %vm868 = vcmask 588800
        %v870 = vsel %vm868, %v867, 0
        %vm872 = vcmask 1043456
        %v874 = vsel %vm872, %v849, 0
        %v877 = vsel %vm872, %v850, 0
        %879 = vmatpush.bf16.msra.mxu0 0
        %880 = vmatpush.bf16.msra.mxu0 0
        %881 = vmatpush.bf16.msra.mxu0 0
        %882 = vmatpush.bf16.msra.mxu0 %v874
        %883 = vmatpush.bf16.msra.mxu0 %v847
        %884 = vmatpush.bf16.msra.mxu0 %v845
        %885 = vmatpush.bf16.msra.mxu0 %v843
        %886 = vmatpush.bf16.msra.mxu0 %v841
        %887 = vmatmul.bf16.gmra.mxu0 %v870
        %v888 = vpop.f32.mrf.mxu0
        %v889 = vadd.f32 %v856, %v888
        %v890 = vpop.f32.mrf.mxu0
        %v891 = vadd.f32 %v861, %v890
        %892 = vdwg.mxu0
        %893 = vmatpush.bf16.msra.mxu0 0
        %894 = vmatpush.bf16.msra.mxu0 0
        %895 = vmatpush.bf16.msra.mxu0 0
        %896 = vmatpush.bf16.msra.mxu0 %v877
        %897 = vmatpush.bf16.msra.mxu0 %v848
        %898 = vmatpush.bf16.msra.mxu0 %v846
        %899 = vmatpush.bf16.msra.mxu0 %v844
        %900 = vmatpush.bf16.msra.mxu0 %v842
        %901 = vmatmul.bf16.gmra.mxu0 %v870
        %v902 = vpop.f32.mrf.mxu0
        %v903 = vadd.f32 %v856, %v902
        %v904 = vpop.f32.mrf.mxu0
        %v905 = vadd.f32 %v861, %v904
        %906 = vdwg.mxu0
        %v907 = vmax.f32 %v889, 0.0
        %v908 = vmax.f32 %v903, 0.0
        %v909 = vmax.f32 %v891, 0.0
        %v910 = vmax.f32 %v905, 0.0
        %v911 = vld [vmem:[#allocation6] sm:$0xff]
        %v912 = vld [vmem:[#allocation6 + $0x8] sm:$0xff]
        %913 = vrot.lane.b32.xlu0 %v907, 17
        %v914 = vpop.permute.xlu0 %913
        %915 = vrot.lane.b32.xlu0 %v909, 17
        %v916 = vpop.permute.xlu0 %915
        %917 = vrot.lane.b32.xlu0 %v908, 17
        %v918 = vpop.permute.xlu0 %917
        %919 = vrot.lane.b32.xlu0 %v910, 17
        %v920 = vpop.permute.xlu0 %919
        %v921 = vsel %vm717, %v914, %v918
        %v922 = vsel %vm717, %v916, %v920
        %v923 = vsel %vm717, %v918, %v914
        %v924 = vsel %vm717, %v920, %v916
        %v925 = vmul.f32 %v923, %v723
        %v926 = vmul.f32 %v921, %v724
        %v927 = vmul.f32 %v924, %v723
        %v928 = vmul.f32 %v922, %v724
        %929 = vrot.lane.b32.xlu0 %v907, 16
        %v930 = vpop.permute.xlu0 %929
        %931 = vrot.lane.b32.xlu0 %v909, 16
        %v932 = vpop.permute.xlu0 %931
        %933 = vrot.lane.b32.xlu0 %v908, 16
        %v934 = vpop.permute.xlu0 %933
        %935 = vrot.lane.b32.xlu0 %v910, 16
        %v936 = vpop.permute.xlu0 %935
        %v937 = vsel %vm733, %v930, %v934
        %v938 = vsel %vm733, %v932, %v936
        %v939 = vsel %vm733, %v934, %v930
        %v940 = vsel %vm733, %v936, %v932
        %v941 = vmul.f32 %v939, %v739
        %v942 = vmul.f32 %v937, %v740
        %v943 = vmul.f32 %v940, %v739
        %v944 = vmul.f32 %v938, %v740
        %945 = vrot.lane.b32.xlu0 %v907, 15
        %v946 = vpop.permute.xlu0 %945
        %947 = vrot.lane.b32.xlu0 %v909, 15
        %v948 = vpop.permute.xlu0 %947
        %949 = vrot.lane.b32.xlu0 %v908, 15
        %v950 = vpop.permute.xlu0 %949
        %951 = vrot.lane.b32.xlu0 %v910, 15
        %v952 = vpop.permute.xlu0 %951
        %v953 = vsel %vm749, %v946, %v950
        %v954 = vsel %vm749, %v948, %v952
        %v955 = vsel %vm749, %v950, %v946
        %v956 = vsel %vm749, %v952, %v948
        %v957 = vmul.f32 %v955, %v755
        %v958 = vmul.f32 %v953, %v756
        %v959 = vmul.f32 %v956, %v755
        %v960 = vmul.f32 %v954, %v756
        %961 = vrot.lane.b32.xlu0 %v907, 1
        %v962 = vpop.permute.xlu0 %961
        %963 = vrot.lane.b32.xlu0 %v909, 1
        %v964 = vpop.permute.xlu0 %963
        %965 = vrot.lane.b32.xlu0 %v908, 1
        %v966 = vpop.permute.xlu0 %965
        %967 = vrot.lane.b32.xlu0 %v910, 1
        %v968 = vpop.permute.xlu0 %967
        %v969 = vsel %vm765, %v962, %v966
        %v970 = vsel %vm765, %v964, %v968
        %v971 = vsel %vm765, %v966, %v962
        %v972 = vsel %vm765, %v968, %v964
        %v973 = vmul.f32 %v971, %v771
        %v974 = vmul.f32 %v969, %v772
        %v975 = vmul.f32 %v972, %v771
        %v976 = vmul.f32 %v970, %v772
        %977 = vrot.lane.b32.xlu0 %v907, 127
        %v978 = vpop.permute.xlu0 %977
        %979 = vrot.lane.b32.xlu0 %v909, 127
        %v980 = vpop.permute.xlu0 %979
        %981 = vrot.lane.b32.xlu0 %v908, 127
        %v982 = vpop.permute.xlu0 %981
        %983 = vrot.lane.b32.xlu0 %v910, 127
        %v984 = vpop.permute.xlu0 %983
        %v985 = vsel %vm781, %v978, %v982
        %v986 = vsel %vm781, %v980, %v984
        %v987 = vsel %vm781, %v982, %v978
        %v988 = vsel %vm781, %v984, %v980
        %v989 = vmul.f32 %v985, %v787
        %v990 = vmul.f32 %v987, %v788
        %v991 = vmul.f32 %v986, %v787
        %v992 = vmul.f32 %v988, %v788
        %993 = vrot.lane.b32.xlu0 %v907, 113
        %v994 = vpop.permute.xlu0 %993
        %995 = vrot.lane.b32.xlu0 %v909, 113
        %v996 = vpop.permute.xlu0 %995
        %997 = vrot.lane.b32.xlu0 %v908, 113
        %v998 = vpop.permute.xlu0 %997
        %999 = vrot.lane.b32.xlu0 %v910, 113
        %v1000 = vpop.permute.xlu0 %999
        %v1001 = vsel %vm797, %v994, %v998
        %v1002 = vsel %vm797, %v996, %v1000
        %v1003 = vsel %vm797, %v998, %v994
        %v1004 = vsel %vm797, %v1000, %v996
        %v1005 = vmul.f32 %v1001, %v803
        %v1006 = vmul.f32 %v1003, %v804
        %v1007 = vmul.f32 %v1002, %v803
        %v1008 = vmul.f32 %v1004, %v804
        %1009 = vrot.lane.b32.xlu0 %v907, 112
        %v1010 = vpop.permute.xlu0 %1009
        %1011 = vrot.lane.b32.xlu0 %v909, 112
        %v1012 = vpop.permute.xlu0 %1011
        %1013 = vrot.lane.b32.xlu0 %v908, 112
        %v1014 = vpop.permute.xlu0 %1013
        %1015 = vrot.lane.b32.xlu0 %v910, 112
        %v1016 = vpop.permute.xlu0 %1015
        %v1017 = vsel %vm813, %v1010, %v1014
        %v1018 = vsel %vm813, %v1012, %v1016
        %v1019 = vsel %vm813, %v1014, %v1010
        %v1020 = vsel %vm813, %v1016, %v1012
        %v1021 = vmul.f32 %v1017, %v819
        %v1022 = vmul.f32 %v1019, %v820
        %v1023 = vmul.f32 %v1018, %v819
        %v1024 = vmul.f32 %v1020, %v820
        %1025 = vrot.lane.b32.xlu0 %v907, 111
        %v1026 = vpop.permute.xlu0 %1025
        %1027 = vrot.lane.b32.xlu0 %v909, 111
        %v1028 = vpop.permute.xlu0 %1027
        %1029 = vrot.lane.b32.xlu0 %v908, 111
        %v1030 = vpop.permute.xlu0 %1029
        %1031 = vrot.lane.b32.xlu0 %v910, 111
        %v1032 = vpop.permute.xlu0 %1031
        %v1033 = vsel %vm829, %v1026, %v1030
        %v1034 = vsel %vm829, %v1028, %v1032
        %v1035 = vsel %vm829, %v1030, %v1026
        %v1036 = vsel %vm829, %v1032, %v1028
        %v1037 = vmul.f32 %v1033, %v835
        %v1038 = vmul.f32 %v1035, %v836
        %v1039 = vmul.f32 %v1034, %v835
        %v1040 = vmul.f32 %v1036, %v836
        %v1041 = vpack.c.bf16 %v927, %v925
        %v1042 = vpack.c.bf16 %v928, %v926
        %v1043 = vpack.c.bf16 %v943, %v941
        %v1044 = vpack.c.bf16 %v944, %v942
        %v1045 = vpack.c.bf16 %v959, %v957
        %v1046 = vpack.c.bf16 %v960, %v958
        %v1047 = vpack.c.bf16 %v975, %v973
        %v1048 = vpack.c.bf16 %v976, %v974
        %v1049 = vpack.c.bf16 %v909, %v907
        %v1050 = vpack.c.bf16 %v910, %v908
        %v1051 = vpack.c.bf16 %v991, %v989
        %v1052 = vpack.c.bf16 %v992, %v990
        %v1053 = vpack.c.bf16 %v1007, %v1005
        %v1054 = vpack.c.bf16 %v1008, %v1006
        %v1055 = vpack.c.bf16 %v1023, %v1021
        %v1056 = vpack.c.bf16 %v1024, %v1022
        %v1057 = vpack.c.bf16 %v1039, %v1037
        %v1058 = vpack.c.bf16 %v1040, %v1038
        %v1059 = vld [vmem:[#allocation7] sm:$0xff]
        %v1060 = vld [vmem:[#allocation7 + $0x8] sm:$0xff]
        %1062 = vset.pattern.permute.xlu0 0
        %1063 = vperm.xlu0 %1062, %v1059
        %v1064 = vpop.permute.xlu0 %1063
        %1067 = vset.pattern.permute.xlu0 0
        %1068 = vperm.xlu0 %1067, %v1060
        %v1069 = vpop.permute.xlu0 %1068
        %v1073 = vunpack.c.l.b16 %v911
        %v1074 = vunpack.c.h.b16 %v911
        %v1075 = vunpack.c.l.b16 %v912
        %v1076 = vunpack.c.h.b16 %v912
        %v1077 = vpack.c.b16 %v1075, %v1073
        %v1078 = vpack.c.b16 %v1076, %v1074
        %vm1080 = vcmask 130048
        %v1082 = vsel %vm1080, %v1078, 0
        %1084 = vmatpush.bf16.msra.mxu0 %v1055
        %1085 = vmatpush.bf16.msra.mxu0 %v1053
        %1086 = vmatpush.bf16.msra.mxu0 %v1051
        %1087 = vmatpush.bf16.msra.mxu0 %v1049
        %1088 = vmatpush.bf16.msra.mxu0 %v1047
        %1089 = vmatpush.bf16.msra.mxu0 %v1045
        %1090 = vmatpush.bf16.msra.mxu0 %v1043
        %1091 = vmatpush.bf16.msra.mxu0 %v1041
        %1092 = vmatmul.bf16.gmra.mxu0 %v1077
        %v1093 = vpop.f32.mrf.mxu0
        %v1094 = vadd.f32 %v1064, %v1093
        %v1095 = vpop.f32.mrf.mxu0
        %v1096 = vadd.f32 %v1069, %v1095
        %1097 = vdwg.mxu0
        %1098 = vmatpush.bf16.msra.mxu0 0
        %1099 = vmatpush.bf16.msra.mxu0 0
        %1100 = vmatpush.bf16.msra.mxu0 0
        %1101 = vmatpush.bf16.msra.mxu0 0
        %1102 = vmatpush.bf16.msra.mxu0 0
        %1103 = vmatpush.bf16.msra.mxu0 0
        %1104 = vmatpush.bf16.msra.mxu0 0
        %1105 = vmatpush.bf16.msra.mxu0 %v1057
        %1106 = vmatmul.bf16.gmra.mxu0 %v1082
        %v1107 = vpop.f32.mrf.mxu0
        %v1108 = vadd.f32 %v1094, %v1107
        %v1109 = vpop.f32.mrf.mxu0
        %v1110 = vadd.f32 %v1096, %v1109
        %1111 = vdwg.mxu0
        %1112 = vmatpush.bf16.msra.mxu0 %v1056
        %1113 = vmatpush.bf16.msra.mxu0 %v1054
        %1114 = vmatpush.bf16.msra.mxu0 %v1052
        %1115 = vmatpush.bf16.msra.mxu0 %v1050
        %1116 = vmatpush.bf16.msra.mxu0 %v1048
        %1117 = vmatpush.bf16.msra.mxu0 %v1046
        %1118 = vmatpush.bf16.msra.mxu0 %v1044
        %1119 = vmatpush.bf16.msra.mxu0 %v1042
        %1120 = vmatmul.bf16.gmra.mxu0 %v1077
        %v1121 = vpop.f32.mrf.mxu0
        %v1122 = vadd.f32 %v1064, %v1121
        %v1123 = vpop.f32.mrf.mxu0
        %v1124 = vadd.f32 %v1069, %v1123
        %1125 = vdwg.mxu0
        %1126 = vmatpush.bf16.msra.mxu0 0
        %1127 = vmatpush.bf16.msra.mxu0 0
        %1128 = vmatpush.bf16.msra.mxu0 0
        %1129 = vmatpush.bf16.msra.mxu0 0
        %1130 = vmatpush.bf16.msra.mxu0 0
        %1131 = vmatpush.bf16.msra.mxu0 0
        %1132 = vmatpush.bf16.msra.mxu0 0
        %1133 = vmatpush.bf16.msra.mxu0 %v1058
        %1134 = vmatmul.bf16.gmra.mxu0 %v1082
        %v1135 = vpop.f32.mrf.mxu0
        %v1136 = vadd.f32 %v1122, %v1135
        %v1137 = vpop.f32.mrf.mxu0
        %v1138 = vadd.f32 %v1124, %v1137
        %1139 = vdwg.mxu0
        %v1140 = vmax.f32 %v1108, 0.0
        %v1141 = vmax.f32 %v1136, 0.0
        %v1142 = vmax.f32 %v1110, 0.0
        %v1143 = vmax.f32 %v1138, 0.0
        %v1144 = vld [vmem:[#allocation9] sm:$0xff]
        %v1145 = vld [vmem:[#allocation9 + $0x8] sm:$0xff]
        %1146 = vrot.lane.b32.xlu0 %v1140, 17
        %v1147 = vpop.permute.xlu0 %1146
        %1148 = vrot.lane.b32.xlu0 %v1142, 17
        %v1149 = vpop.permute.xlu0 %1148
        %1150 = vrot.lane.b32.xlu0 %v1141, 17
        %v1151 = vpop.permute.xlu0 %1150
        %1152 = vrot.lane.b32.xlu0 %v1143, 17
        %v1153 = vpop.permute.xlu0 %1152
        %v1154 = vsel %vm717, %v1147, %v1151
        %v1155 = vsel %vm717, %v1149, %v1153
        %v1156 = vsel %vm717, %v1151, %v1147
        %v1157 = vsel %vm717, %v1153, %v1149
        %v1158 = vmul.f32 %v1156, %v723
        %v1159 = vmul.f32 %v1154, %v724
        %v1160 = vmul.f32 %v1157, %v723
        %v1161 = vmul.f32 %v1155, %v724
        %1162 = vrot.lane.b32.xlu0 %v1140, 16
        %v1163 = vpop.permute.xlu0 %1162
        %1164 = vrot.lane.b32.xlu0 %v1142, 16
        %v1165 = vpop.permute.xlu0 %1164
        %1166 = vrot.lane.b32.xlu0 %v1141, 16
        %v1167 = vpop.permute.xlu0 %1166
        %1168 = vrot.lane.b32.xlu0 %v1143, 16
        %v1169 = vpop.permute.xlu0 %1168
        %v1170 = vsel %vm733, %v1163, %v1167
        %v1171 = vsel %vm733, %v1165, %v1169
        %v1172 = vsel %vm733, %v1167, %v1163
        %v1173 = vsel %vm733, %v1169, %v1165
        %v1174 = vmul.f32 %v1172, %v739
        %v1175 = vmul.f32 %v1170, %v740
        %v1176 = vmul.f32 %v1173, %v739
        %v1177 = vmul.f32 %v1171, %v740
        %1178 = vrot.lane.b32.xlu0 %v1140, 15
        %v1179 = vpop.permute.xlu0 %1178
        %1180 = vrot.lane.b32.xlu0 %v1142, 15
        %v1181 = vpop.permute.xlu0 %1180
        %1182 = vrot.lane.b32.xlu0 %v1141, 15
        %v1183 = vpop.permute.xlu0 %1182
        %1184 = vrot.lane.b32.xlu0 %v1143, 15
        %v1185 = vpop.permute.xlu0 %1184
        %v1186 = vsel %vm749, %v1179, %v1183
        %v1187 = vsel %vm749, %v1181, %v1185
        %v1188 = vsel %vm749, %v1183, %v1179
        %v1189 = vsel %vm749, %v1185, %v1181
        %v1190 = vmul.f32 %v1188, %v755
        %v1191 = vmul.f32 %v1186, %v756
        %v1192 = vmul.f32 %v1189, %v755
        %v1193 = vmul.f32 %v1187, %v756
        %1194 = vrot.lane.b32.xlu0 %v1140, 1
        %v1195 = vpop.permute.xlu0 %1194
        %1196 = vrot.lane.b32.xlu0 %v1142, 1
        %v1197 = vpop.permute.xlu0 %1196
        %1198 = vrot.lane.b32.xlu0 %v1141, 1
        %v1199 = vpop.permute.xlu0 %1198
        %1200 = vrot.lane.b32.xlu0 %v1143, 1
        %v1201 = vpop.permute.xlu0 %1200
        %v1202 = vsel %vm765, %v1195, %v1199
        %v1203 = vsel %vm765, %v1197, %v1201
        %v1204 = vsel %vm765, %v1199, %v1195
        %v1205 = vsel %vm765, %v1201, %v1197
        %v1206 = vmul.f32 %v1204, %v771
        %v1207 = vmul.f32 %v1202, %v772
        %v1208 = vmul.f32 %v1205, %v771
        %v1209 = vmul.f32 %v1203, %v772
        %1210 = vrot.lane.b32.xlu0 %v1140, 127
        %v1211 = vpop.permute.xlu0 %1210
        %1212 = vrot.lane.b32.xlu0 %v1142, 127
        %v1213 = vpop.permute.xlu0 %1212
        %1214 = vrot.lane.b32.xlu0 %v1141, 127
        %v1215 = vpop.permute.xlu0 %1214
        %1216 = vrot.lane.b32.xlu0 %v1143, 127
        %v1217 = vpop.permute.xlu0 %1216
        %v1218 = vsel %vm781, %v1211, %v1215
        %v1219 = vsel %vm781, %v1213, %v1217
        %v1220 = vsel %vm781, %v1215, %v1211
        %v1221 = vsel %vm781, %v1217, %v1213
        %v1222 = vmul.f32 %v1218, %v787
        %v1223 = vmul.f32 %v1220, %v788
        %v1224 = vmul.f32 %v1219, %v787
        %v1225 = vmul.f32 %v1221, %v788
        %1226 = vrot.lane.b32.xlu0 %v1140, 113
        %v1227 = vpop.permute.xlu0 %1226
        %1228 = vrot.lane.b32.xlu0 %v1142, 113
        %v1229 = vpop.permute.xlu0 %1228
        %1230 = vrot.lane.b32.xlu0 %v1141, 113
        %v1231 = vpop.permute.xlu0 %1230
        %1232 = vrot.lane.b32.xlu0 %v1143, 113
        %v1233 = vpop.permute.xlu0 %1232
        %v1234 = vsel %vm797, %v1227, %v1231
        %v1235 = vsel %vm797, %v1229, %v1233
        %v1236 = vsel %vm797, %v1231, %v1227
        %v1237 = vsel %vm797, %v1233, %v1229
        %v1238 = vmul.f32 %v1234, %v803
        %v1239 = vmul.f32 %v1236, %v804
        %v1240 = vmul.f32 %v1235, %v803
        %v1241 = vmul.f32 %v1237, %v804
        %1242 = vrot.lane.b32.xlu0 %v1140, 112
        %v1243 = vpop.permute.xlu0 %1242
        %1244 = vrot.lane.b32.xlu0 %v1142, 112
        %v1245 = vpop.permute.xlu0 %1244
        %1246 = vrot.lane.b32.xlu0 %v1141, 112
        %v1247 = vpop.permute.xlu0 %1246
        %1248 = vrot.lane.b32.xlu0 %v1143, 112
        %v1249 = vpop.permute.xlu0 %1248
        %v1250 = vsel %vm813, %v1243, %v1247
        %v1251 = vsel %vm813, %v1245, %v1249
        %v1252 = vsel %vm813, %v1247, %v1243
        %v1253 = vsel %vm813, %v1249, %v1245
        %v1254 = vmul.f32 %v1250, %v819
        %v1255 = vmul.f32 %v1252, %v820
        %v1256 = vmul.f32 %v1251, %v819
        %v1257 = vmul.f32 %v1253, %v820
        %1258 = vrot.lane.b32.xlu0 %v1140, 111
        %v1259 = vpop.permute.xlu0 %1258
        %1260 = vrot.lane.b32.xlu0 %v1142, 111
        %v1261 = vpop.permute.xlu0 %1260
        %1262 = vrot.lane.b32.xlu0 %v1141, 111
        %v1263 = vpop.permute.xlu0 %1262
        %1264 = vrot.lane.b32.xlu0 %v1143, 111
        %v1265 = vpop.permute.xlu0 %1264
        %v1266 = vsel %vm829, %v1259, %v1263
        %v1267 = vsel %vm829, %v1261, %v1265
        %v1268 = vsel %vm829, %v1263, %v1259
        %v1269 = vsel %vm829, %v1265, %v1261
        %v1270 = vmul.f32 %v1266, %v835
        %v1271 = vmul.f32 %v1268, %v836
        %v1272 = vmul.f32 %v1267, %v835
        %v1273 = vmul.f32 %v1269, %v836
        %v1274 = vpack.c.bf16 %v1160, %v1158
        %v1275 = vpack.c.bf16 %v1161, %v1159
        %v1276 = vpack.c.bf16 %v1176, %v1174
        %v1277 = vpack.c.bf16 %v1177, %v1175
        %v1278 = vpack.c.bf16 %v1192, %v1190
        %v1279 = vpack.c.bf16 %v1193, %v1191
        %v1280 = vpack.c.bf16 %v1208, %v1206
        %v1281 = vpack.c.bf16 %v1209, %v1207
        %v1282 = vpack.c.bf16 %v1142, %v1140
        %v1283 = vpack.c.bf16 %v1143, %v1141
        %v1284 = vpack.c.bf16 %v1224, %v1222
        %v1285 = vpack.c.bf16 %v1225, %v1223
        %v1286 = vpack.c.bf16 %v1240, %v1238
        %v1287 = vpack.c.bf16 %v1241, %v1239
        %v1288 = vpack.c.bf16 %v1256, %v1254
        %v1289 = vpack.c.bf16 %v1257, %v1255
        %v1290 = vpack.c.bf16 %v1272, %v1270
        %v1291 = vpack.c.bf16 %v1273, %v1271
        %v1292 = vld [vmem:[#allocation10] sm:$0xff]
        %v1293 = vld [vmem:[#allocation10 + $0x8] sm:$0xff]
        %1295 = vset.pattern.permute.xlu0 0
        %1296 = vperm.xlu0 %1295, %v1292
        %v1297 = vpop.permute.xlu0 %1296
        %1300 = vset.pattern.permute.xlu0 0
        %1301 = vperm.xlu0 %1300, %v1293
        %v1302 = vpop.permute.xlu0 %1301
        %v1306 = vunpack.c.l.b16 %v1144
        %v1307 = vunpack.c.h.b16 %v1144
        %v1308 = vunpack.c.l.b16 %v1145
        %v1309 = vunpack.c.h.b16 %v1145
        %v1310 = vpack.c.b16 %v1308, %v1306
        %v1311 = vpack.c.b16 %v1309, %v1307
        %v1314 = vsel %vm1080, %v1311, 0
        %1316 = vmatpush.bf16.msra.mxu0 %v1288
        %1317 = vmatpush.bf16.msra.mxu0 %v1286
        %1318 = vmatpush.bf16.msra.mxu0 %v1284
        %1319 = vmatpush.bf16.msra.mxu0 %v1282
        %1320 = vmatpush.bf16.msra.mxu0 %v1280
        %1321 = vmatpush.bf16.msra.mxu0 %v1278
        %1322 = vmatpush.bf16.msra.mxu0 %v1276
        %1323 = vmatpush.bf16.msra.mxu0 %v1274
        %1324 = vmatmul.bf16.gmra.mxu0 %v1310
        %v1325 = vpop.f32.mrf.mxu0
        %v1326 = vadd.f32 %v1297, %v1325
        %v1327 = vpop.f32.mrf.mxu0
        %v1328 = vadd.f32 %v1302, %v1327
        %1329 = vdwg.mxu0
        %1330 = vmatpush.bf16.msra.mxu0 0
        %1331 = vmatpush.bf16.msra.mxu0 0
        %1332 = vmatpush.bf16.msra.mxu0 0
        %1333 = vmatpush.bf16.msra.mxu0 0
        %1334 = vmatpush.bf16.msra.mxu0 0
        %1335 = vmatpush.bf16.msra.mxu0 0
        %1336 = vmatpush.bf16.msra.mxu0 0
        %1337 = vmatpush.bf16.msra.mxu0 %v1290
        %1338 = vmatmul.bf16.gmra.mxu0 %v1314
        %v1339 = vpop.f32.mrf.mxu0
        %v1340 = vadd.f32 %v1326, %v1339
        %v1341 = vpop.f32.mrf.mxu0
        %v1342 = vadd.f32 %v1328, %v1341
        %1343 = vdwg.mxu0
        %1344 = vmatpush.bf16.msra.mxu0 %v1289
        %1345 = vmatpush.bf16.msra.mxu0 %v1287
        %1346 = vmatpush.bf16.msra.mxu0 %v1285
        %1347 = vmatpush.bf16.msra.mxu0 %v1283
        %1348 = vmatpush.bf16.msra.mxu0 %v1281
        %1349 = vmatpush.bf16.msra.mxu0 %v1279
        %1350 = vmatpush.bf16.msra.mxu0 %v1277
        %1351 = vmatpush.bf16.msra.mxu0 %v1275
        %1352 = vmatmul.bf16.gmra.mxu0 %v1310
        %v1353 = vpop.f32.mrf.mxu0
        %v1354 = vadd.f32 %v1297, %v1353
        %v1355 = vpop.f32.mrf.mxu0
        %v1356 = vadd.f32 %v1302, %v1355
        %1357 = vdwg.mxu0
        %1358 = vmatpush.bf16.msra.mxu0 0
        %1359 = vmatpush.bf16.msra.mxu0 0
        %1360 = vmatpush.bf16.msra.mxu0 0
        %1361 = vmatpush.bf16.msra.mxu0 0
        %1362 = vmatpush.bf16.msra.mxu0 0
        %1363 = vmatpush.bf16.msra.mxu0 0
        %1364 = vmatpush.bf16.msra.mxu0 0
        %1365 = vmatpush.bf16.msra.mxu0 %v1291
        %1366 = vmatmul.bf16.gmra.mxu0 %v1314
        %v1367 = vpop.f32.mrf.mxu0
        %v1368 = vadd.f32 %v1354, %v1367
        %v1369 = vpop.f32.mrf.mxu0
        %v1370 = vadd.f32 %v1356, %v1369
        %1371 = vdwg.mxu0
        %v1372 = vmax.f32 %v1340, 0.0
        %v1373 = vmax.f32 %v1368, 0.0
        %v1374 = vmax.f32 %v1342, 0.0
        %v1375 = vmax.f32 %v1370, 0.0
        %1376 = vmatpush.msra.mxu0 0.00390625
        %1377 = vmatpush.msra.mxu0 0.00390625
        %1378 = vmatpush.msra.mxu0 0.00390625
        %1379 = vmatpush.msra.mxu0 0.00390625
        %1380 = vmatpush.msra.mxu0 0.00390625
        %1381 = vmatpush.msra.mxu0 0.00390625
        %1382 = vmatpush.msra.mxu0 0.00390625
        %1383 = vmatpush.msra.mxu0 0.00390625
        %1384 = vmatpush.msra.mxu0 0.00390625
        %1385 = vmatpush.msra.mxu0 0.00390625
        %1386 = vmatpush.msra.mxu0 0.00390625
        %1387 = vmatpush.msra.mxu0 0.00390625
        %1388 = vmatpush.msra.mxu0 0.00390625
        %1389 = vmatpush.msra.mxu0 0.00390625
        %1390 = vmatpush.msra.mxu0 0.00390625
        %1391 = vmatpush.msra.mxu0 0.00390625
        %1392 = vmatmul.f32.gmra.mxu0 %v1372
        %v1393 = vpop.f32.mrf.mxu0
        %v1394 = vadd.f32 0.0, %v1393
        %1395 = vmatmul.f32.gmra.mxu0 %v1374
        %v1396 = vpop.f32.mrf.mxu0
        %v1397 = vadd.f32 0.0, %v1396
        %1398 = vdwg.mxu0
        %1399 = vmatpush.msra.mxu0 0.00390625
        %1400 = vmatpush.msra.mxu0 0.00390625
        %1401 = vmatpush.msra.mxu0 0.00390625
        %1402 = vmatpush.msra.mxu0 0.00390625
        %1403 = vmatpush.msra.mxu0 0.00390625
        %1404 = vmatpush.msra.mxu0 0.00390625
        %1405 = vmatpush.msra.mxu0 0.00390625
        %1406 = vmatpush.msra.mxu0 0.00390625
        %1407 = vmatpush.msra.mxu0 0.00390625
        %1408 = vmatpush.msra.mxu0 0.00390625
        %1409 = vmatpush.msra.mxu0 0.00390625
        %1410 = vmatpush.msra.mxu0 0.00390625
        %1411 = vmatpush.msra.mxu0 0.00390625
        %1412 = vmatpush.msra.mxu0 0.00390625
        %1413 = vmatpush.msra.mxu0 0.00390625
        %1414 = vmatpush.msra.mxu0 0.00390625
        %1415 = vmatmul.f32.gmra.mxu0 %v1373
        %v1416 = vpop.f32.mrf.mxu0
        %v1417 = vadd.f32 %v1394, %v1416
        %1418 = vmatmul.f32.gmra.mxu0 %v1375
        %v1419 = vpop.f32.mrf.mxu0
        %v1420 = vadd.f32 %v1397, %v1419
        %1421 = vdwg.mxu0
        %v1422 = vld [vmem:[#allocation12] sm:$0xff]
        %v1424 = vsel %vm1080, %v1422, 0
        %1426 = vmatpush.msra.mxu0 0.0
        %1427 = vmatpush.msra.mxu0 0.0
        %1428 = vmatpush.msra.mxu0 0.0
        %1429 = vmatpush.msra.mxu0 0.0
        %1430 = vmatpush.msra.mxu0 0.0
        %1431 = vmatpush.msra.mxu0 0.0
        %1432 = vmatpush.msra.mxu0 0.0
        %1433 = vmatpush.msra.mxu0 0.0
        %1434 = vmatpush.msra.mxu0 0.0
        %1435 = vmatpush.msra.mxu0 0.0
        %1436 = vmatpush.msra.mxu0 0.0
        %1437 = vmatpush.msra.mxu0 0.0
        %1438 = vmatpush.msra.mxu0 0.0
        %1439 = vmatpush.msra.mxu0 0.0
        %1440 = vmatpush.msra.mxu0 %v1420
        %1441 = vmatpush.msra.mxu0 %v1417
        %1442 = vmatmul.f32.gmra.mxu0 %v1424
        %v1443 = vpop.f32.mrf.mxu0
        %v1444 = vadd.f32 0.0, %v1443
        %1445 = vdwg.mxu0
        %v1446 = vmax.f32 %v1444, 0.0
        %v1447 = vld [vmem:[#allocation13] sm:$0xff]
        %v1448 = vld [vmem:[#allocation13 + $0x8] sm:$0xff]
        %vm1449 = vcmask 64512
        %v1451 = vsel %vm1449, %v1447, 0
        %v1454 = vsel %vm1449, %v1448, 0
        %1456 = vmatpush.msra.mxu0 0.0
        %1457 = vmatpush.msra.mxu0 0.0
        %1458 = vmatpush.msra.mxu0 0.0
        %1459 = vmatpush.msra.mxu0 0.0
        %1460 = vmatpush.msra.mxu0 0.0
        %1461 = vmatpush.msra.mxu0 0.0
        %1462 = vmatpush.msra.mxu0 0.0
        %1463 = vmatpush.msra.mxu0 0.0
        %1464 = vmatpush.msra.mxu0 0.0
        %1465 = vmatpush.msra.mxu0 0.0
        %1466 = vmatpush.msra.mxu0 0.0
        %1467 = vmatpush.msra.mxu0 0.0
        %1468 = vmatpush.msra.mxu0 0.0
        %1469 = vmatpush.msra.mxu0 0.0
        %1470 = vmatpush.msra.mxu0 0.0
        %1471 = vmatpush.msra.mxu0 %v1446
        %1472 = vmatmul.f32.gmra.mxu0 %v1451
        %v1473 = vpop.f32.mrf.mxu0
        %v1474 = vadd.f32 0.0, %v1473
        %1475 = vmatmul.f32.gmra.mxu0 %v1454
        %v1476 = vpop.f32.mrf.mxu0
        %v1477 = vadd.f32 0.0, %v1476
        %1478 = vdwg.mxu0
        %v1479 = vxor.u32 %v1474, 2147483648
        %v1480 = vxor.u32 %v1477, 2147483648
        %v1481 = vmul.f32 %v1479, 1.442695
        %v1482 = vpow.pop %v1481
        %v1483 = vmul.f32 %v1480, 1.442695
        %v1484 = vpow.pop %v1483
        %v1485 = vadd.f32 %v1482, 1.0
        %v1486 = vadd.f32 %v1484, 1.0
        %v1487 = vrcp.pop %v1485
        %v1488 = vmul.f32 %v1485, %v1487
        %v1489 = vsub.f32 1.0, %v1488
        %v1490 = vmul.f32 %v1487, %v1489
        %v1491 = vadd.f32 %v1487, %v1490
        %vm1492 = vweird.f32 %v1485
        %vm1493 = vweird.f32 %v1487
        %vm1494 = vmor %vm1492, %vm1493
        %v1495 = vsel %vm1494, %v1487, %v1491
        %v1496 = vand.u32 2147483647, %v1485
        %vm1497 = vcmp.eq.f32.partialorder %v1496, 8.507059e+37
        %v1498 = vand.u32 %v1485, 2147483648
        %v1499 = vor.u32 1.1754944e-38, %v1498
        %v1500 = vsel %vm1497, %v1499, %v1495
        %v1501 = vmul.f32 1.0, %v1500
        %v1502 = vrcp.pop %v1486
        %v1503 = vmul.f32 %v1486, %v1502
        %v1504 = vsub.f32 1.0, %v1503
        %v1505 = vmul.f32 %v1502, %v1504
        %v1506 = vadd.f32 %v1502, %v1505
        %vm1507 = vweird.f32 %v1486
        %vm1508 = vweird.f32 %v1502
        %vm1509 = vmor %vm1507, %vm1508
        %v1510 = vsel %vm1509, %v1502, %v1506
        %v1511 = vand.u32 2147483647, %v1486
        %vm1512 = vcmp.eq.f32.partialorder %v1511, 8.507059e+37
        %v1513 = vand.u32 %v1486, 2147483648
        %v1514 = vor.u32 1.1754944e-38, %v1513
        %v1515 = vsel %vm1512, %v1514, %v1510
        %v1516 = vmul.f32 1.0, %v1515
        %1518 = vset.pattern.permute.xlu0 0
        %1519 = vperm.xlu0 %1518, %v1501
        %v1520 = vpop.permute.xlu0 %1519
        %1523 = vset.pattern.permute.xlu0 0
        %1524 = vperm.xlu0 %1523, %v1516
        %v1525 = vpop.permute.xlu0 %1524
        %v1527 = vmul.f32 %v1372, %v1520
        %v1528 = vmul.f32 %v1373, %v1520
        %v1529 = vmul.f32 %v1374, %v1525
        %v1530 = vmul.f32 %v1375, %v1525
        %v1532 = vsel %vm1080, 0.0625, 0
        %1534 = vmatpush.msra.mxu0 0.0
        %1535 = vmatpush.msra.mxu0 0.0
        %1536 = vmatpush.msra.mxu0 0.0
        %1537 = vmatpush.msra.mxu0 0.0
        %1538 = vmatpush.msra.mxu0 0.0
        %1539 = vmatpush.msra.mxu0 0.0
        %1540 = vmatpush.msra.mxu0 0.0
        %1541 = vmatpush.msra.mxu0 0.0
        %1542 = vmatpush.msra.mxu0 0.0
        %1543 = vmatpush.msra.mxu0 0.0
        %1544 = vmatpush.msra.mxu0 0.0
        %1545 = vmatpush.msra.mxu0 0.0
        %1546 = vmatpush.msra.mxu0 0.0
        %1547 = vmatpush.msra.mxu0 0.0
        %1548 = vmatpush.msra.mxu0 %v1529
        %1549 = vmatpush.msra.mxu0 %v1527
        %1550 = vmatmul.f32.gmra.mxu0 %v1532
        %v1551 = vpop.f32.mrf.mxu0
        %v1552 = vadd.f32 0.0, %v1551
        %1553 = vdwg.mxu0
        %1554 = vmatpush.msra.mxu0 0.0
        %1555 = vmatpush.msra.mxu0 0.0
        %1556 = vmatpush.msra.mxu0 0.0
        %1557 = vmatpush.msra.mxu0 0.0
        %1558 = vmatpush.msra.mxu0 0.0
        %1559 = vmatpush.msra.mxu0 0.0
        %1560 = vmatpush.msra.mxu0 0.0
        %1561 = vmatpush.msra.mxu0 0.0
        %1562 = vmatpush.msra.mxu0 0.0
        %1563 = vmatpush.msra.mxu0 0.0
        %1564 = vmatpush.msra.mxu0 0.0
        %1565 = vmatpush.msra.mxu0 0.0
        %1566 = vmatpush.msra.mxu0 0.0
        %1567 = vmatpush.msra.mxu0 0.0
        %1568 = vmatpush.msra.mxu0 %v1530
        %1569 = vmatpush.msra.mxu0 %v1528
        %1570 = vmatmul.f32.gmra.mxu0 %v1532
        %v1571 = vpop.f32.mrf.mxu0
        %v1572 = vadd.f32 0.0, %v1571
        %1573 = vdwg.mxu0
        %v1574 = vmax.f32 %v1527, %v1529
        %v1575 = vrot.slane %v1574, 4
        %v1576 = vmax.f32 %v1574, %v1575
        %v1577 = vrot.slane %v1576, 2
        %v1578 = vmax.f32 %v1576, %v1577
        %v1579 = vrot.slane %v1578, 1
        %v1580 = vmax.f32 %v1578, %v1579
        %v1581 = vmax.f32 %v1528, %v1530
        %v1582 = vrot.slane %v1581, 4
        %v1583 = vmax.f32 %v1581, %v1582
        %v1584 = vrot.slane %v1583, 2
        %v1585 = vmax.f32 %v1583, %v1584
        %v1586 = vrot.slane %v1585, 1
        %v1587 = vmax.f32 %v1585, %v1586
        %v1588 = vlaneseq
        %v1589 = vshrl.u32 %v1588, 7
        %vm1590 = vcmp.eq.s32.totalorder %v1589, 0
        %v1591 = vsel %vm1590, 1, 0
        %vm1592 = vcmp.eq.s32.totalorder %v1591, 1
        %v1593 = vperm.slane %v1552, 0
        %v1594 = vperm.slane %v1572, 0
        %v1595 = vsel %vm1592, %v1593, 0.0
        %v1596 = vsel %vm1592, %v1594, 0.0
        %vm1597 = vcmp.eq.s32.totalorder %v1589, 1
        %v1598 = vsel %vm1597, 1, 0
        %vm1599 = vcmp.eq.s32.totalorder %v1598, 1
        %v1600 = vsel %vm1599, %v1580, 0.0
        %v1601 = vsel %vm1599, %v1587, 0.0
        %v1602 = vadd.f32 %v1595, %v1600
        %v1603 = vadd.f32 %v1596, %v1601
        %v1604 = vld [vmem:[#allocation15] sm:$0xf]
        %1605 = vrot.lane.b32.xlu0 %v1602, 51
        %v1606 = vpop.permute.xlu0 %1605
        %1607 = vrot.lane.b32.xlu0 %v1603, 51
        %v1608 = vpop.permute.xlu0 %1607
        %vm1609 = vcmp.lt.s32.totalorder %v716, 51
        %v1610 = vsel %vm1609, %v1606, %v1608
        %v1611 = vsel %vm1609, %v1608, %v1606
        %v1612 = vld [vmem:[%s1] ss:$8 sm:$0x3]
        %v1614 = vperm.slane %v1612, 0
        %v1615 = vperm.slane %v1612, 1
        %v1618 = vmul.f32 %v1611, %v1614
        %v1619 = vmul.f32 %v1610, %v1615
        %1620 = vrot.lane.b32.xlu0 %v1602, 50
        %v1621 = vpop.permute.xlu0 %1620
        %1622 = vrot.lane.b32.xlu0 %v1603, 50
        %v1623 = vpop.permute.xlu0 %1622
        %vm1624 = vcmp.lt.s32.totalorder %v716, 50
        %v1625 = vsel %vm1624, %v1621, %v1623
        %v1626 = vsel %vm1624, %v1623, %v1621
        %s1627 = scalar_lea.vmem %s1, 1
        %v1628 = vld [vmem:[%s1627] ss:$8 sm:$0x3]
        %v1630 = vperm.slane %v1628, 0
        %v1631 = vperm.slane %v1628, 1
        %v1634 = vmul.f32 %v1626, %v1630
        %v1635 = vmul.f32 %v1625, %v1631
        %1636 = vrot.lane.b32.xlu0 %v1602, 49
        %v1637 = vpop.permute.xlu0 %1636
        %1638 = vrot.lane.b32.xlu0 %v1603, 49
        %v1639 = vpop.permute.xlu0 %1638
        %vm1640 = vcmp.lt.s32.totalorder %v716, 49
        %v1641 = vsel %vm1640, %v1637, %v1639
        %v1642 = vsel %vm1640, %v1639, %v1637
        %s1643 = scalar_lea.vmem %s1, 2
        %v1644 = vld [vmem:[%s1643] ss:$8 sm:$0x3]
        %v1646 = vperm.slane %v1644, 0
        %v1647 = vperm.slane %v1644, 1
        %v1650 = vmul.f32 %v1642, %v1646
        %v1651 = vmul.f32 %v1641, %v1647
        %1652 = vrot.lane.b32.xlu0 %v1602, 48
        %v1653 = vpop.permute.xlu0 %1652
        %1654 = vrot.lane.b32.xlu0 %v1603, 48
        %v1655 = vpop.permute.xlu0 %1654
        %vm1656 = vcmp.lt.s32.totalorder %v716, 48
        %v1657 = vsel %vm1656, %v1653, %v1655
        %v1658 = vsel %vm1656, %v1655, %v1653
        %s1659 = scalar_lea.vmem %s1, 3
        %v1660 = vld [vmem:[%s1659] ss:$8 sm:$0x3]
        %v1662 = vperm.slane %v1660, 0
        %v1663 = vperm.slane %v1660, 1
        %v1666 = vmul.f32 %v1658, %v1662
        %v1667 = vmul.f32 %v1657, %v1663
        %1668 = vrot.lane.b32.xlu0 %v1602, 47
        %v1669 = vpop.permute.xlu0 %1668
        %1670 = vrot.lane.b32.xlu0 %v1603, 47
        %v1671 = vpop.permute.xlu0 %1670
        %vm1672 = vcmp.lt.s32.totalorder %v716, 47
        %v1673 = vsel %vm1672, %v1669, %v1671
        %v1674 = vsel %vm1672, %v1671, %v1669
        %s1675 = scalar_lea.vmem %s1, 4
        %v1676 = vld [vmem:[%s1675] ss:$8 sm:$0x3]
        %v1678 = vperm.slane %v1676, 0
        %v1679 = vperm.slane %v1676, 1
        %v1682 = vmul.f32 %v1674, %v1678
        %v1683 = vmul.f32 %v1673, %v1679
        %1684 = vrot.lane.b32.xlu0 %v1602, 46
        %v1685 = vpop.permute.xlu0 %1684
        %1686 = vrot.lane.b32.xlu0 %v1603, 46
        %v1687 = vpop.permute.xlu0 %1686
        %vm1688 = vcmp.lt.s32.totalorder %v716, 46
        %v1689 = vsel %vm1688, %v1685, %v1687
        %v1690 = vsel %vm1688, %v1687, %v1685
        %s1691 = scalar_lea.vmem %s1, 5
        %v1692 = vld [vmem:[%s1691] ss:$8 sm:$0x3]
        %v1694 = vperm.slane %v1692, 0
        %v1695 = vperm.slane %v1692, 1
        %v1698 = vmul.f32 %v1690, %v1694
        %v1699 = vmul.f32 %v1689, %v1695
        %1700 = vrot.lane.b32.xlu0 %v1602, 45
        %v1701 = vpop.permute.xlu0 %1700
        %1702 = vrot.lane.b32.xlu0 %v1603, 45
        %v1703 = vpop.permute.xlu0 %1702
        %vm1704 = vcmp.lt.s32.totalorder %v716, 45
        %v1705 = vsel %vm1704, %v1701, %v1703
        %v1706 = vsel %vm1704, %v1703, %v1701
        %s1707 = scalar_lea.vmem %s1, 6
        %v1708 = vld [vmem:[%s1707] ss:$8 sm:$0x3]
        %v1710 = vperm.slane %v1708, 0
        %v1711 = vperm.slane %v1708, 1
        %v1714 = vmul.f32 %v1706, %v1710
        %v1715 = vmul.f32 %v1705, %v1711
        %1716 = vrot.lane.b32.xlu0 %v1602, 35
        %v1717 = vpop.permute.xlu0 %1716
        %1718 = vrot.lane.b32.xlu0 %v1603, 35
        %v1719 = vpop.permute.xlu0 %1718
        %vm1720 = vcmp.lt.s32.totalorder %v716, 35
        %v1721 = vsel %vm1720, %v1717, %v1719
        %v1722 = vsel %vm1720, %v1719, %v1717
        %s1723 = scalar_lea.vmem %s1, 7
        %v1724 = vld [vmem:[%s1723] ss:$8 sm:$0x3]
        %v1726 = vperm.slane %v1724, 0
        %v1727 = vperm.slane %v1724, 1
        %v1730 = vmul.f32 %v1722, %v1726
        %v1731 = vmul.f32 %v1721, %v1727
        %1732 = vrot.lane.b32.xlu0 %v1602, 34
        %v1733 = vpop.permute.xlu0 %1732
        %1734 = vrot.lane.b32.xlu0 %v1603, 34
        %v1735 = vpop.permute.xlu0 %1734
        %vm1736 = vcmp.lt.s32.totalorder %v716, 34
        %v1737 = vsel %vm1736, %v1733, %v1735
        %v1738 = vsel %vm1736, %v1735, %v1733
        %s1739 = scalar_lea.vmem %s1, 16
        %v1740 = vld [vmem:[%s1739] ss:$8 sm:$0x3]
        %v1742 = vperm.slane %v1740, 0
        %v1743 = vperm.slane %v1740, 1
        %v1746 = vmul.f32 %v1738, %v1742
        %v1747 = vmul.f32 %v1737, %v1743
        %1748 = vrot.lane.b32.xlu0 %v1602, 33
        %v1749 = vpop.permute.xlu0 %1748
        %1750 = vrot.lane.b32.xlu0 %v1603, 33
        %v1751 = vpop.permute.xlu0 %1750
        %vm1752 = vcmp.lt.s32.totalorder %v716, 33
        %v1753 = vsel %vm1752, %v1749, %v1751
        %v1754 = vsel %vm1752, %v1751, %v1749
        %s1755 = scalar_lea.vmem %s1, 17
        %v1756 = vld [vmem:[%s1755] ss:$8 sm:$0x3]
        %v1758 = vperm.slane %v1756, 0
        %v1759 = vperm.slane %v1756, 1
        %v1762 = vmul.f32 %v1754, %v1758
        %v1763 = vmul.f32 %v1753, %v1759
        %1764 = vrot.lane.b32.xlu0 %v1602, 32
        %v1765 = vpop.permute.xlu0 %1764
        %1766 = vrot.lane.b32.xlu0 %v1603, 32
        %v1767 = vpop.permute.xlu0 %1766
        %vm1768 = vcmp.lt.s32.totalorder %v716, 32
        %v1769 = vsel %vm1768, %v1765, %v1767
        %v1770 = vsel %vm1768, %v1767, %v1765
        %s1771 = scalar_lea.vmem %s1, 18
        %v1772 = vld [vmem:[%s1771] ss:$8 sm:$0x3]
        %v1774 = vperm.slane %v1772, 0
        %v1775 = vperm.slane %v1772, 1
        %v1778 = vmul.f32 %v1770, %v1774
        %v1779 = vmul.f32 %v1769, %v1775
        %1780 = vrot.lane.b32.xlu0 %v1602, 31
        %v1781 = vpop.permute.xlu0 %1780
        %1782 = vrot.lane.b32.xlu0 %v1603, 31
        %v1783 = vpop.permute.xlu0 %1782
        %vm1784 = vcmp.lt.s32.totalorder %v716, 31
        %v1785 = vsel %vm1784, %v1781, %v1783
        %v1786 = vsel %vm1784, %v1783, %v1781
        %s1787 = scalar_lea.vmem %s1, 19
        %v1788 = vld [vmem:[%s1787] ss:$8 sm:$0x3]
        %v1790 = vperm.slane %v1788, 0
        %v1791 = vperm.slane %v1788, 1
        %v1794 = vmul.f32 %v1786, %v1790
        %v1795 = vmul.f32 %v1785, %v1791
        %1796 = vrot.lane.b32.xlu0 %v1602, 30
        %v1797 = vpop.permute.xlu0 %1796
        %1798 = vrot.lane.b32.xlu0 %v1603, 30
        %v1799 = vpop.permute.xlu0 %1798
        %vm1800 = vcmp.lt.s32.totalorder %v716, 30
        %v1801 = vsel %vm1800, %v1797, %v1799
        %v1802 = vsel %vm1800, %v1799, %v1797
        %s1803 = scalar_lea.vmem %s1, 20
        %v1804 = vld [vmem:[%s1803] ss:$8 sm:$0x3]
        %v1806 = vperm.slane %v1804, 0
        %v1807 = vperm.slane %v1804, 1
        %v1810 = vmul.f32 %v1802, %v1806
        %v1811 = vmul.f32 %v1801, %v1807
        %1812 = vrot.lane.b32.xlu0 %v1602, 29
        %v1813 = vpop.permute.xlu0 %1812
        %1814 = vrot.lane.b32.xlu0 %v1603, 29
        %v1815 = vpop.permute.xlu0 %1814
        %vm1816 = vcmp.lt.s32.totalorder %v716, 29
        %v1817 = vsel %vm1816, %v1813, %v1815
        %v1818 = vsel %vm1816, %v1815, %v1813
        %s1819 = scalar_lea.vmem %s1, 21
        %v1820 = vld [vmem:[%s1819] ss:$8 sm:$0x3]
        %v1822 = vperm.slane %v1820, 0
        %v1823 = vperm.slane %v1820, 1
        %v1826 = vmul.f32 %v1818, %v1822
        %v1827 = vmul.f32 %v1817, %v1823
        %1828 = vrot.lane.b32.xlu0 %v1602, 19
        %v1829 = vpop.permute.xlu0 %1828
        %1830 = vrot.lane.b32.xlu0 %v1603, 19
        %v1831 = vpop.permute.xlu0 %1830
        %vm1832 = vcmp.lt.s32.totalorder %v716, 19
        %v1833 = vsel %vm1832, %v1829, %v1831
        %v1834 = vsel %vm1832, %v1831, %v1829
        %s1835 = scalar_lea.vmem %s1, 22
        %v1836 = vld [vmem:[%s1835] ss:$8 sm:$0x3]
        %v1838 = vperm.slane %v1836, 0
        %v1839 = vperm.slane %v1836, 1
        %v1842 = vmul.f32 %v1834, %v1838
        %v1843 = vmul.f32 %v1833, %v1839
        %1844 = vrot.lane.b32.xlu0 %v1602, 18
        %v1845 = vpop.permute.xlu0 %1844
        %1846 = vrot.lane.b32.xlu0 %v1603, 18
        %v1847 = vpop.permute.xlu0 %1846
        %vm1848 = vcmp.lt.s32.totalorder %v716, 18
        %v1849 = vsel %vm1848, %v1845, %v1847
        %v1850 = vsel %vm1848, %v1847, %v1845
        %s1851 = scalar_lea.vmem %s1, 23
        %v1852 = vld [vmem:[%s1851] ss:$8 sm:$0x3]
        %v1854 = vperm.slane %v1852, 0
        %v1855 = vperm.slane %v1852, 1
        %v1858 = vmul.f32 %v1850, %v1854
        %v1859 = vmul.f32 %v1849, %v1855
        %1860 = vrot.lane.b32.xlu0 %v1602, 17
        %v1861 = vpop.permute.xlu0 %1860
        %1862 = vrot.lane.b32.xlu0 %v1603, 17
        %v1863 = vpop.permute.xlu0 %1862
        %v1864 = vsel %vm717, %v1861, %v1863
        %v1865 = vsel %vm717, %v1863, %v1861
        %v1866 = vmul.f32 %v1865, %v723
        %v1867 = vmul.f32 %v1864, %v724
        %1868 = vrot.lane.b32.xlu0 %v1602, 16
        %v1869 = vpop.permute.xlu0 %1868
        %1870 = vrot.lane.b32.xlu0 %v1603, 16
        %v1871 = vpop.permute.xlu0 %1870
        %v1872 = vsel %vm733, %v1869, %v1871
        %v1873 = vsel %vm733, %v1871, %v1869
        %v1874 = vmul.f32 %v1873, %v739
        %v1875 = vmul.f32 %v1872, %v740
        %1876 = vrot.lane.b32.xlu0 %v1602, 15
        %v1877 = vpop.permute.xlu0 %1876
        %1878 = vrot.lane.b32.xlu0 %v1603, 15
        %v1879 = vpop.permute.xlu0 %1878
        %v1880 = vsel %vm749, %v1877, %v1879
        %v1881 = vsel %vm749, %v1879, %v1877
        %v1882 = vmul.f32 %v1881, %v755
        %v1883 = vmul.f32 %v1880, %v756
        %1884 = vrot.lane.b32.xlu0 %v1602, 14
        %v1885 = vpop.permute.xlu0 %1884
        %1886 = vrot.lane.b32.xlu0 %v1603, 14
        %v1887 = vpop.permute.xlu0 %1886
        %vm1888 = vcmp.lt.s32.totalorder %v716, 14
        %v1889 = vsel %vm1888, %v1885, %v1887
        %v1890 = vsel %vm1888, %v1887, %v1885
        %s1891 = scalar_lea.vmem %s1, 35
        %v1892 = vld [vmem:[%s1891] ss:$8 sm:$0x3]
        %v1894 = vperm.slane %v1892, 0
        %v1895 = vperm.slane %v1892, 1
        %v1898 = vmul.f32 %v1890, %v1894
        %v1899 = vmul.f32 %v1889, %v1895
        %1900 = vrot.lane.b32.xlu0 %v1602, 13
        %v1901 = vpop.permute.xlu0 %1900
        %1902 = vrot.lane.b32.xlu0 %v1603, 13
        %v1903 = vpop.permute.xlu0 %1902
        %vm1904 = vcmp.lt.s32.totalorder %v716, 13
        %v1905 = vsel %vm1904, %v1901, %v1903
        %v1906 = vsel %vm1904, %v1903, %v1901
        %s1907 = scalar_lea.vmem %s1, 36
        %v1908 = vld [vmem:[%s1907] ss:$8 sm:$0x3]
        %v1910 = vperm.slane %v1908, 0
        %v1911 = vperm.slane %v1908, 1
        %v1914 = vmul.f32 %v1906, %v1910
        %v1915 = vmul.f32 %v1905, %v1911
        %1916 = vrot.lane.b32.xlu0 %v1602, 3
        %v1917 = vpop.permute.xlu0 %1916
        %1918 = vrot.lane.b32.xlu0 %v1603, 3
        %v1919 = vpop.permute.xlu0 %1918
        %vm1920 = vcmp.lt.s32.totalorder %v716, 3
        %v1921 = vsel %vm1920, %v1917, %v1919
        %v1922 = vsel %vm1920, %v1919, %v1917
        %s1923 = scalar_lea.vmem %s1, 37
        %v1924 = vld [vmem:[%s1923] ss:$8 sm:$0x3]
        %v1926 = vperm.slane %v1924, 0
        %v1927 = vperm.slane %v1924, 1
        %v1930 = vmul.f32 %v1922, %v1926
        %v1931 = vmul.f32 %v1921, %v1927
        %1932 = vrot.lane.b32.xlu0 %v1602, 2
        %v1933 = vpop.permute.xlu0 %1932
        %1934 = vrot.lane.b32.xlu0 %v1603, 2
        %v1935 = vpop.permute.xlu0 %1934
        %vm1936 = vcmp.lt.s32.totalorder %v716, 2
        %v1937 = vsel %vm1936, %v1933, %v1935
        %v1938 = vsel %vm1936, %v1935, %v1933
        %s1939 = scalar_lea.vmem %s1, 38
        %v1940 = vld [vmem:[%s1939] ss:$8 sm:$0x3]
        %v1942 = vperm.slane %v1940, 0
        %v1943 = vperm.slane %v1940, 1
        %v1946 = vmul.f32 %v1938, %v1942
        %v1947 = vmul.f32 %v1937, %v1943
        %1948 = vrot.lane.b32.xlu0 %v1602, 1
        %v1949 = vpop.permute.xlu0 %1948
        %1950 = vrot.lane.b32.xlu0 %v1603, 1
        %v1951 = vpop.permute.xlu0 %1950
        %v1952 = vsel %vm765, %v1949, %v1951
        %v1953 = vsel %vm765, %v1951, %v1949
        %v1954 = vmul.f32 %v1953, %v771
        %v1955 = vmul.f32 %v1952, %v772
        %1956 = vrot.lane.b32.xlu0 %v1602, 127
        %v1957 = vpop.permute.xlu0 %1956
        %1958 = vrot.lane.b32.xlu0 %v1603, 127
        %v1959 = vpop.permute.xlu0 %1958
        %v1960 = vsel %vm781, %v1957, %v1959
        %v1961 = vsel %vm781, %v1959, %v1957
        %v1962 = vmul.f32 %v1960, %v787
        %v1963 = vmul.f32 %v1961, %v788
        %1964 = vrot.lane.b32.xlu0 %v1602, 126
        %v1965 = vpop.permute.xlu0 %1964
        %1966 = vrot.lane.b32.xlu0 %v1603, 126
        %v1967 = vpop.permute.xlu0 %1966
        %vm1968 = vcmp.lt.s32.totalorder %v716, 126
        %v1969 = vsel %vm1968, %v1965, %v1967
        %v1970 = vsel %vm1968, %v1967, %v1965
        %s1971 = scalar_lea.vmem %s1, 50
        %v1972 = vld [vmem:[%s1971] ss:$8 sm:$0x3]
        %v1974 = vperm.slane %v1972, 0
        %v1975 = vperm.slane %v1972, 1
        %v1978 = vmul.f32 %v1969, %v1974
        %v1979 = vmul.f32 %v1970, %v1975
        %1980 = vrot.lane.b32.xlu0 %v1602, 125
        %v1981 = vpop.permute.xlu0 %1980
        %1982 = vrot.lane.b32.xlu0 %v1603, 125
        %v1983 = vpop.permute.xlu0 %1982
        %vm1984 = vcmp.lt.s32.totalorder %v716, 125
        %v1985 = vsel %vm1984, %v1981, %v1983
        %v1986 = vsel %vm1984, %v1983, %v1981
        %s1987 = scalar_lea.vmem %s1, 51
        %v1988 = vld [vmem:[%s1987] ss:$8 sm:$0x3]
        %v1990 = vperm.slane %v1988, 0
        %v1991 = vperm.slane %v1988, 1
        %v1994 = vmul.f32 %v1985, %v1990
        %v1995 = vmul.f32 %v1986, %v1991
        %1996 = vrot.lane.b32.xlu0 %v1602, 115
        %v1997 = vpop.permute.xlu0 %1996
        %1998 = vrot.lane.b32.xlu0 %v1603, 115
        %v1999 = vpop.permute.xlu0 %1998
        %vm2000 = vcmp.lt.s32.totalorder %v716, 115
        %v2001 = vsel %vm2000, %v1997, %v1999
        %v2002 = vsel %vm2000, %v1999, %v1997
        %s2003 = scalar_lea.vmem %s1, 52
        %v2004 = vld [vmem:[%s2003] ss:$8 sm:$0x3]
        %v2006 = vperm.slane %v2004, 0
        %v2007 = vperm.slane %v2004, 1
        %v2010 = vmul.f32 %v2001, %v2006
        %v2011 = vmul.f32 %v2002, %v2007
        %2012 = vrot.lane.b32.xlu0 %v1602, 114
        %v2013 = vpop.permute.xlu0 %2012
        %2014 = vrot.lane.b32.xlu0 %v1603, 114
        %v2015 = vpop.permute.xlu0 %2014
        %vm2016 = vcmp.lt.s32.totalorder %v716, 114
        %v2017 = vsel %vm2016, %v2013, %v2015
        %v2018 = vsel %vm2016, %v2015, %v2013
        %s2019 = scalar_lea.vmem %s1, 53
        %v2020 = vld [vmem:[%s2019] ss:$8 sm:$0x3]
        %v2022 = vperm.slane %v2020, 0
        %v2023 = vperm.slane %v2020, 1
        %v2026 = vmul.f32 %v2017, %v2022
        %v2027 = vmul.f32 %v2018, %v2023
        %2028 = vrot.lane.b32.xlu0 %v1602, 113
        %v2029 = vpop.permute.xlu0 %2028
        %2030 = vrot.lane.b32.xlu0 %v1603, 113
        %v2031 = vpop.permute.xlu0 %2030
        %v2032 = vsel %vm797, %v2029, %v2031
        %v2033 = vsel %vm797, %v2031, %v2029
        %v2034 = vmul.f32 %v2032, %v803
        %v2035 = vmul.f32 %v2033, %v804
        %2036 = vrot.lane.b32.xlu0 %v1602, 112
        %v2037 = vpop.permute.xlu0 %2036
        %2038 = vrot.lane.b32.xlu0 %v1603, 112
        %v2039 = vpop.permute.xlu0 %2038
        %v2040 = vsel %vm813, %v2037, %v2039
        %v2041 = vsel %vm813, %v2039, %v2037
        %v2042 = vmul.f32 %v2040, %v819
        %v2043 = vmul.f32 %v2041, %v820
        %2044 = vrot.lane.b32.xlu0 %v1602, 111
        %v2045 = vpop.permute.xlu0 %2044
        %2046 = vrot.lane.b32.xlu0 %v1603, 111
        %v2047 = vpop.permute.xlu0 %2046
        %v2048 = vsel %vm829, %v2045, %v2047
        %v2049 = vsel %vm829, %v2047, %v2045
        %v2050 = vmul.f32 %v2048, %v835
        %v2051 = vmul.f32 %v2049, %v836
        %2052 = vrot.lane.b32.xlu0 %v1602, 110
        %v2053 = vpop.permute.xlu0 %2052
        %2054 = vrot.lane.b32.xlu0 %v1603, 110
        %v2055 = vpop.permute.xlu0 %2054
        %vm2056 = vcmp.lt.s32.totalorder %v716, 110
        %v2057 = vsel %vm2056, %v2053, %v2055
        %v2058 = vsel %vm2056, %v2055, %v2053
        %s2059 = scalar_lea.vmem %s1, 65
        %v2060 = vld [vmem:[%s2059] ss:$8 sm:$0x3]
        %v2062 = vperm.slane %v2060, 0
        %v2063 = vperm.slane %v2060, 1
        %v2066 = vmul.f32 %v2057, %v2062
        %v2067 = vmul.f32 %v2058, %v2063
        %2068 = vrot.lane.b32.xlu0 %v1602, 109
        %v2069 = vpop.permute.xlu0 %2068
        %2070 = vrot.lane.b32.xlu0 %v1603, 109
        %v2071 = vpop.permute.xlu0 %2070
        %vm2072 = vcmp.lt.s32.totalorder %v716, 109
        %v2073 = vsel %vm2072, %v2069, %v2071
        %v2074 = vsel %vm2072, %v2071, %v2069
        %s2075 = scalar_lea.vmem %s1, 66
        %v2076 = vld [vmem:[%s2075] ss:$8 sm:$0x3]
        %v2078 = vperm.slane %v2076, 0
        %v2079 = vperm.slane %v2076, 1
        %v2082 = vmul.f32 %v2073, %v2078
        %v2083 = vmul.f32 %v2074, %v2079
        %2084 = vrot.lane.b32.xlu0 %v1602, 99
        %v2085 = vpop.permute.xlu0 %2084
        %2086 = vrot.lane.b32.xlu0 %v1603, 99
        %v2087 = vpop.permute.xlu0 %2086
        %vm2088 = vcmp.lt.s32.totalorder %v716, 99
        %v2089 = vsel %vm2088, %v2085, %v2087
        %v2090 = vsel %vm2088, %v2087, %v2085
        %s2091 = scalar_lea.vmem %s1, 67
        %v2092 = vld [vmem:[%s2091] ss:$8 sm:$0x3]
        %v2094 = vperm.slane %v2092, 0
        %v2095 = vperm.slane %v2092, 1
        %v2098 = vmul.f32 %v2089, %v2094
        %v2099 = vmul.f32 %v2090, %v2095
        %2100 = vrot.lane.b32.xlu0 %v1602, 98
        %v2101 = vpop.permute.xlu0 %2100
        %2102 = vrot.lane.b32.xlu0 %v1603, 98
        %v2103 = vpop.permute.xlu0 %2102
        %vm2104 = vcmp.lt.s32.totalorder %v716, 98
        %v2105 = vsel %vm2104, %v2101, %v2103
        %v2106 = vsel %vm2104, %v2103, %v2101
        %s2107 = scalar_lea.vmem %s1, 68
        %v2108 = vld [vmem:[%s2107] ss:$8 sm:$0x3]
        %v2110 = vperm.slane %v2108, 0
        %v2111 = vperm.slane %v2108, 1
        %v2114 = vmul.f32 %v2105, %v2110
        %v2115 = vmul.f32 %v2106, %v2111
        %2116 = vrot.lane.b32.xlu0 %v1602, 97
        %v2117 = vpop.permute.xlu0 %2116
        %2118 = vrot.lane.b32.xlu0 %v1603, 97
        %v2119 = vpop.permute.xlu0 %2118
        %vm2120 = vcmp.lt.s32.totalorder %v716, 97
        %v2121 = vsel %vm2120, %v2117, %v2119
        %v2122 = vsel %vm2120, %v2119, %v2117
        %s2123 = scalar_lea.vmem %s1, 69
        %v2124 = vld [vmem:[%s2123] ss:$8 sm:$0x3]
        %v2126 = vperm.slane %v2124, 0
        %v2127 = vperm.slane %v2124, 1
        %v2130 = vmul.f32 %v2121, %v2126
        %v2131 = vmul.f32 %v2122, %v2127
        %2132 = vrot.lane.b32.xlu0 %v1602, 96
        %v2133 = vpop.permute.xlu0 %2132
        %2134 = vrot.lane.b32.xlu0 %v1603, 96
        %v2135 = vpop.permute.xlu0 %2134
        %vm2136 = vcmp.lt.s32.totalorder %v716, 96
        %v2137 = vsel %vm2136, %v2133, %v2135
        %v2138 = vsel %vm2136, %v2135, %v2133
        %s2139 = scalar_lea.vmem %s1, 70
        %v2140 = vld [vmem:[%s2139] ss:$8 sm:$0x3]
        %v2142 = vperm.slane %v2140, 0
        %v2143 = vperm.slane %v2140, 1
        %v2146 = vmul.f32 %v2137, %v2142
        %v2147 = vmul.f32 %v2138, %v2143
        %2148 = vrot.lane.b32.xlu0 %v1602, 95
        %v2149 = vpop.permute.xlu0 %2148
        %2150 = vrot.lane.b32.xlu0 %v1603, 95
        %v2151 = vpop.permute.xlu0 %2150
        %vm2152 = vcmp.lt.s32.totalorder %v716, 95
        %v2153 = vsel %vm2152, %v2149, %v2151
        %v2154 = vsel %vm2152, %v2151, %v2149
        %s2155 = scalar_lea.vmem %s1, 71
        %v2156 = vld [vmem:[%s2155] ss:$8 sm:$0x3]
        %v2158 = vperm.slane %v2156, 0
        %v2159 = vperm.slane %v2156, 1
        %v2162 = vmul.f32 %v2153, %v2158
        %v2163 = vmul.f32 %v2154, %v2159
        %2164 = vrot.lane.b32.xlu0 %v1602, 94
        %v2165 = vpop.permute.xlu0 %2164
        %2166 = vrot.lane.b32.xlu0 %v1603, 94
        %v2167 = vpop.permute.xlu0 %2166
        %vm2168 = vcmp.lt.s32.totalorder %v716, 94
        %v2169 = vsel %vm2168, %v2165, %v2167
        %v2170 = vsel %vm2168, %v2167, %v2165
        %s2171 = scalar_lea.vmem %s1, 80
        %v2172 = vld [vmem:[%s2171] ss:$8 sm:$0x3]
        %v2174 = vperm.slane %v2172, 0
        %v2175 = vperm.slane %v2172, 1
        %v2178 = vmul.f32 %v2169, %v2174
        %v2179 = vmul.f32 %v2170, %v2175
        %2180 = vrot.lane.b32.xlu0 %v1602, 93
        %v2181 = vpop.permute.xlu0 %2180
        %2182 = vrot.lane.b32.xlu0 %v1603, 93
        %v2183 = vpop.permute.xlu0 %2182
        %vm2184 = vcmp.lt.s32.totalorder %v716, 93
        %v2185 = vsel %vm2184, %v2181, %v2183
        %v2186 = vsel %vm2184, %v2183, %v2181
        %s2187 = scalar_lea.vmem %s1, 81
        %v2188 = vld [vmem:[%s2187] ss:$8 sm:$0x3]
        %v2190 = vperm.slane %v2188, 0
        %v2191 = vperm.slane %v2188, 1
        %v2194 = vmul.f32 %v2185, %v2190
        %v2195 = vmul.f32 %v2186, %v2191
        %2196 = vrot.lane.b32.xlu0 %v1602, 83
        %v2197 = vpop.permute.xlu0 %2196
        %2198 = vrot.lane.b32.xlu0 %v1603, 83
        %v2199 = vpop.permute.xlu0 %2198
        %vm2200 = vcmp.lt.s32.totalorder %v716, 83
        %v2201 = vsel %vm2200, %v2197, %v2199
        %v2202 = vsel %vm2200, %v2199, %v2197
        %s2203 = scalar_lea.vmem %s1, 82
        %v2204 = vld [vmem:[%s2203] ss:$8 sm:$0x3]
        %v2206 = vperm.slane %v2204, 0
        %v2207 = vperm.slane %v2204, 1
        %v2210 = vmul.f32 %v2201, %v2206
        %v2211 = vmul.f32 %v2202, %v2207
        %2212 = vrot.lane.b32.xlu0 %v1602, 82
        %v2213 = vpop.permute.xlu0 %2212
        %2214 = vrot.lane.b32.xlu0 %v1603, 82
        %v2215 = vpop.permute.xlu0 %2214
        %vm2216 = vcmp.lt.s32.totalorder %v716, 82
        %v2217 = vsel %vm2216, %v2213, %v2215
        %v2218 = vsel %vm2216, %v2215, %v2213
        %s2219 = scalar_lea.vmem %s1, 83
        %v2220 = vld [vmem:[%s2219] ss:$8 sm:$0x3]
        %v2222 = vperm.slane %v2220, 0
        %v2223 = vperm.slane %v2220, 1
        %v2226 = vmul.f32 %v2217, %v2222
        %v2227 = vmul.f32 %v2218, %v2223
        %2228 = vrot.lane.b32.xlu0 %v1602, 81
        %v2229 = vpop.permute.xlu0 %2228
        %2230 = vrot.lane.b32.xlu0 %v1603, 81
        %v2231 = vpop.permute.xlu0 %2230
        %vm2232 = vcmp.lt.s32.totalorder %v716, 81
        %v2233 = vsel %vm2232, %v2229, %v2231
        %v2234 = vsel %vm2232, %v2231, %v2229
        %s2235 = scalar_lea.vmem %s1, 84
        %v2236 = vld [vmem:[%s2235] ss:$8 sm:$0x3]
        %v2238 = vperm.slane %v2236, 0
        %v2239 = vperm.slane %v2236, 1
        %v2242 = vmul.f32 %v2233, %v2238
        %v2243 = vmul.f32 %v2234, %v2239
        %2244 = vrot.lane.b32.xlu0 %v1602, 80
        %v2245 = vpop.permute.xlu0 %2244
        %2246 = vrot.lane.b32.xlu0 %v1603, 80
        %v2247 = vpop.permute.xlu0 %2246
        %vm2248 = vcmp.lt.s32.totalorder %v716, 80
        %v2249 = vsel %vm2248, %v2245, %v2247
        %v2250 = vsel %vm2248, %v2247, %v2245
        %s2251 = scalar_lea.vmem %s1, 85
        %v2252 = vld [vmem:[%s2251] ss:$8 sm:$0x3]
        %v2254 = vperm.slane %v2252, 0
        %v2255 = vperm.slane %v2252, 1
        %v2258 = vmul.f32 %v2249, %v2254
        %v2259 = vmul.f32 %v2250, %v2255
        %2260 = vrot.lane.b32.xlu0 %v1602, 79
        %v2261 = vpop.permute.xlu0 %2260
        %2262 = vrot.lane.b32.xlu0 %v1603, 79
        %v2263 = vpop.permute.xlu0 %2262
        %vm2264 = vcmp.lt.s32.totalorder %v716, 79
        %v2265 = vsel %vm2264, %v2261, %v2263
        %v2266 = vsel %vm2264, %v2263, %v2261
        %s2267 = scalar_lea.vmem %s1, 86
        %v2268 = vld [vmem:[%s2267] ss:$8 sm:$0x3]
        %v2270 = vperm.slane %v2268, 0
        %v2271 = vperm.slane %v2268, 1
        %v2274 = vmul.f32 %v2265, %v2270
        %v2275 = vmul.f32 %v2266, %v2271
        %2276 = vrot.lane.b32.xlu0 %v1602, 78
        %v2277 = vpop.permute.xlu0 %2276
        %2278 = vrot.lane.b32.xlu0 %v1603, 78
        %v2279 = vpop.permute.xlu0 %2278
        %vm2280 = vcmp.lt.s32.totalorder %v716, 78
        %v2281 = vsel %vm2280, %v2277, %v2279
        %v2282 = vsel %vm2280, %v2279, %v2277
        %s2283 = scalar_lea.vmem %s1, 87
        %v2284 = vld [vmem:[%s2283] ss:$8 sm:$0x3]
        %v2286 = vperm.slane %v2284, 0
        %v2287 = vperm.slane %v2284, 1
        %v2290 = vmul.f32 %v2281, %v2286
        %v2291 = vmul.f32 %v2282, %v2287
        %2292 = vrot.lane.b32.xlu0 %v1602, 77
        %v2293 = vpop.permute.xlu0 %2292
        %2294 = vrot.lane.b32.xlu0 %v1603, 77
        %v2295 = vpop.permute.xlu0 %2294
        %vm2296 = vcmp.lt.s32.totalorder %v716, 77
        %v2297 = vsel %vm2296, %v2293, %v2295
        %v2298 = vsel %vm2296, %v2295, %v2293
        %s2299 = scalar_lea.vmem %s1, 96
        %v2300 = vld [vmem:[%s2299] ss:$8 sm:$0x3]
        %v2302 = vperm.slane %v2300, 0
        %v2303 = vperm.slane %v2300, 1
        %v2306 = vmul.f32 %v2297, %v2302
        %v2307 = vmul.f32 %v2298, %v2303
        %v2308 = vpack.c.bf16 %v1634, %v1618
        %v2309 = vpack.c.bf16 %v1635, %v1619
        %v2310 = vpack.c.bf16 %v1666, %v1650
        %v2311 = vpack.c.bf16 %v1667, %v1651
        %v2312 = vpack.c.bf16 %v1698, %v1682
        %v2313 = vpack.c.bf16 %v1699, %v1683
        %v2314 = vpack.c.bf16 %v1730, %v1714
        %v2315 = vpack.c.bf16 %v1731, %v1715
        %v2316 = vpack.c.bf16 %v1762, %v1746
        %v2317 = vpack.c.bf16 %v1763, %v1747
        %v2318 = vpack.c.bf16 %v1794, %v1778
        %v2319 = vpack.c.bf16 %v1795, %v1779
        %v2320 = vpack.c.bf16 %v1826, %v1810
        %v2321 = vpack.c.bf16 %v1827, %v1811
        %v2322 = vpack.c.bf16 %v1858, %v1842
        %v2323 = vpack.c.bf16 %v1859, %v1843
        %v2324 = vpack.c.bf16 %v1874, %v1866
        %v2325 = vpack.c.bf16 %v1875, %v1867
        %v2326 = vpack.c.bf16 %v1898, %v1882
        %v2327 = vpack.c.bf16 %v1899, %v1883
        %v2328 = vpack.c.bf16 %v1930, %v1914
        %v2329 = vpack.c.bf16 %v1931, %v1915
        %v2330 = vpack.c.bf16 %v1954, %v1946
        %v2331 = vpack.c.bf16 %v1955, %v1947
        %v2332 = vpack.c.bf16 %v1962, %v1602
        %v2333 = vpack.c.bf16 %v1963, %v1603
        %v2334 = vpack.c.bf16 %v1994, %v1978
        %v2335 = vpack.c.bf16 %v1995, %v1979
        %v2336 = vpack.c.bf16 %v2026, %v2010
        %v2337 = vpack.c.bf16 %v2027, %v2011
        %v2338 = vpack.c.bf16 %v2042, %v2034
        %v2339 = vpack.c.bf16 %v2043, %v2035
        %v2340 = vpack.c.bf16 %v2066, %v2050
        %v2341 = vpack.c.bf16 %v2067, %v2051
        %v2342 = vpack.c.bf16 %v2098, %v2082
        %v2343 = vpack.c.bf16 %v2099, %v2083
        %v2344 = vpack.c.bf16 %v2130, %v2114
        %v2345 = vpack.c.bf16 %v2131, %v2115
        %v2346 = vpack.c.bf16 %v2162, %v2146
        %v2347 = vpack.c.bf16 %v2163, %v2147
        %v2348 = vpack.c.bf16 %v2194, %v2178
        %v2349 = vpack.c.bf16 %v2195, %v2179
        %v2350 = vpack.c.bf16 %v2226, %v2210
        %v2351 = vpack.c.bf16 %v2227, %v2211
        %v2352 = vpack.c.bf16 %v2258, %v2242
        %v2353 = vpack.c.bf16 %v2259, %v2243
        %v2354 = vpack.c.bf16 %v2290, %v2274
        %v2355 = vpack.c.bf16 %v2291, %v2275
        %v2356 = vpack.c.bf16 %v2306, %v2306
        %v2357 = vpack.c.bf16 %v2307, %v2307
        %2359 = vst [vmem:[#allocation1] ss:$9 sm:$0xff] %v1604
        %v2360 = vld [vmem:[#allocation1] sm:$0xff]
        %v2361 = vld [vmem:[#allocation1 + $0x9] sm:$0xff]
        %v2362 = vld [vmem:[#allocation1 + $0x12] sm:$0xff]
        %v2363 = vld [vmem:[#allocation1 + $0x1b] sm:$0xff]
        %v2367 = vsel %vm1449, %v2363, 0
        %v2370 = vsel %vm872, %v2356, 0
        %v2373 = vsel %vm872, %v2357, 0
        %2375 = vmatpush.bf16.msra.mxu0 %v2322
        %2376 = vmatpush.bf16.msra.mxu0 %v2320
        %2377 = vmatpush.bf16.msra.mxu0 %v2318
        %2378 = vmatpush.bf16.msra.mxu0 %v2316
        %2379 = vmatpush.bf16.msra.mxu0 %v2314
        %2380 = vmatpush.bf16.msra.mxu0 %v2312
        %2381 = vmatpush.bf16.msra.mxu0 %v2310
        %2382 = vmatpush.bf16.msra.mxu0 %v2308
        %2383 = vmatmul.bf16.gmra.mxu0 %v2360
        %v2384 = vpop.f32.mrf.mxu0
        %v2385 = vadd.f32 0.0, %v2384
        %v2386 = vpop.f32.mrf.mxu0
        %2387 = vdwg.mxu0
        %2388 = vmatpush.bf16.msra.mxu0 %v2338
        %2389 = vmatpush.bf16.msra.mxu0 %v2336
        %2390 = vmatpush.bf16.msra.mxu0 %v2334
        %2391 = vmatpush.bf16.msra.mxu0 %v2332
        %2392 = vmatpush.bf16.msra.mxu0 %v2330
        %2393 = vmatpush.bf16.msra.mxu0 %v2328
        %2394 = vmatpush.bf16.msra.mxu0 %v2326
        %2395 = vmatpush.bf16.msra.mxu0 %v2324
        %2396 = vmatmul.bf16.gmra.mxu0 %v2361
        %v2397 = vpop.f32.mrf.mxu0
        %v2398 = vadd.f32 %v2385, %v2397
        %v2399 = vpop.f32.mrf.mxu0
        %2400 = vdwg.mxu0
        %2401 = vmatpush.bf16.msra.mxu0 %v2354
        %2402 = vmatpush.bf16.msra.mxu0 %v2352
        %2403 = vmatpush.bf16.msra.mxu0 %v2350
        %2404 = vmatpush.bf16.msra.mxu0 %v2348
        %2405 = vmatpush.bf16.msra.mxu0 %v2346
        %2406 = vmatpush.bf16.msra.mxu0 %v2344
        %2407 = vmatpush.bf16.msra.mxu0 %v2342
        %2408 = vmatpush.bf16.msra.mxu0 %v2340
        %2409 = vmatmul.bf16.gmra.mxu0 %v2362
        %v2410 = vpop.f32.mrf.mxu0
        %v2411 = vadd.f32 %v2398, %v2410
        %v2412 = vpop.f32.mrf.mxu0
        %2413 = vdwg.mxu0
        %2414 = vmatpush.bf16.msra.mxu0 0
        %2415 = vmatpush.bf16.msra.mxu0 0
        %2416 = vmatpush.bf16.msra.mxu0 0
        %2417 = vmatpush.bf16.msra.mxu0 0
        %2418 = vmatpush.bf16.msra.mxu0 0
        %2419 = vmatpush.bf16.msra.mxu0 0
        %2420 = vmatpush.bf16.msra.mxu0 0
        %2421 = vmatpush.bf16.msra.mxu0 %v2370
        %2422 = vmatmul.bf16.gmra.mxu0 %v2367
        %v2423 = vpop.f32.mrf.mxu0
        %v2424 = vadd.f32 %v2411, %v2423
        %v2425 = vpop.f32.mrf.mxu0
        %2426 = vdwg.mxu0
        %2427 = vmatpush.bf16.msra.mxu0 %v2323
        %2428 = vmatpush.bf16.msra.mxu0 %v2321
        %2429 = vmatpush.bf16.msra.mxu0 %v2319
        %2430 = vmatpush.bf16.msra.mxu0 %v2317
        %2431 = vmatpush.bf16.msra.mxu0 %v2315
        %2432 = vmatpush.bf16.msra.mxu0 %v2313
        %2433 = vmatpush.bf16.msra.mxu0 %v2311
        %2434 = vmatpush.bf16.msra.mxu0 %v2309
        %2435 = vmatmul.bf16.gmra.mxu0 %v2360
        %v2436 = vpop.f32.mrf.mxu0
        %v2437 = vadd.f32 0.0, %v2436
        %v2438 = vpop.f32.mrf.mxu0
        %2439 = vdwg.mxu0
        %2440 = vmatpush.bf16.msra.mxu0 %v2339
        %2441 = vmatpush.bf16.msra.mxu0 %v2337
        %2442 = vmatpush.bf16.msra.mxu0 %v2335
        %2443 = vmatpush.bf16.msra.mxu0 %v2333
        %2444 = vmatpush.bf16.msra.mxu0 %v2331
        %2445 = vmatpush.bf16.msra.mxu0 %v2329
        %2446 = vmatpush.bf16.msra.mxu0 %v2327
        %2447 = vmatpush.bf16.msra.mxu0 %v2325
        %2448 = vmatmul.bf16.gmra.mxu0 %v2361
        %v2449 = vpop.f32.mrf.mxu0
        %v2450 = vadd.f32 %v2437, %v2449
        %v2451 = vpop.f32.mrf.mxu0
        %2452 = vdwg.mxu0
        %2453 = vmatpush.bf16.msra.mxu0 %v2355
        %2454 = vmatpush.bf16.msra.mxu0 %v2353
        %2455 = vmatpush.bf16.msra.mxu0 %v2351
        %2456 = vmatpush.bf16.msra.mxu0 %v2349
        %2457 = vmatpush.bf16.msra.mxu0 %v2347
        %2458 = vmatpush.bf16.msra.mxu0 %v2345
        %2459 = vmatpush.bf16.msra.mxu0 %v2343
        %2460 = vmatpush.bf16.msra.mxu0 %v2341
        %2461 = vmatmul.bf16.gmra.mxu0 %v2362
        %v2462 = vpop.f32.mrf.mxu0
        %v2463 = vadd.f32 %v2450, %v2462
        %v2464 = vpop.f32.mrf.mxu0
        %2465 = vdwg.mxu0
        %2466 = vmatpush.bf16.msra.mxu0 0
        %2467 = vmatpush.bf16.msra.mxu0 0
        %2468 = vmatpush.bf16.msra.mxu0 0
        %2469 = vmatpush.bf16.msra.mxu0 0
        %2470 = vmatpush.bf16.msra.mxu0 0
        %2471 = vmatpush.bf16.msra.mxu0 0
        %2472 = vmatpush.bf16.msra.mxu0 0
        %2473 = vmatpush.bf16.msra.mxu0 %v2373
        %2474 = vmatmul.bf16.gmra.mxu0 %v2367
        %v2475 = vpop.f32.mrf.mxu0
        %v2476 = vadd.f32 %v2463, %v2475
        %v2477 = vpop.f32.mrf.mxu0
        %2478 = vdwg.mxu0
        %v2479 = vxor.u32 %v2424, 2147483648
        %v2480 = vxor.u32 %v2476, 2147483648
        %v2481 = vmul.f32 %v2479, 1.442695
        %v2482 = vpow.pop %v2481
        %v2483 = vmul.f32 %v2480, 1.442695
        %v2484 = vpow.pop %v2483
        %v2485 = vadd.f32 %v2482, 1.0
        %v2486 = vadd.f32 %v2484, 1.0
        %v2487 = vrcp.pop %v2485
        %v2488 = vmul.f32 %v2485, %v2487
        %v2489 = vsub.f32 1.0, %v2488
        %v2490 = vmul.f32 %v2487, %v2489
        %v2491 = vadd.f32 %v2487, %v2490
        %vm2492 = vweird.f32 %v2485
        %vm2493 = vweird.f32 %v2487
        %vm2494 = vmor %vm2492, %vm2493
        %v2495 = vsel %vm2494, %v2487, %v2491
        %v2496 = vand.u32 2147483647, %v2485
        %vm2497 = vcmp.eq.f32.partialorder %v2496, 8.507059e+37
        %v2498 = vand.u32 %v2485, 2147483648
        %v2499 = vor.u32 1.1754944e-38, %v2498
        %v2500 = vsel %vm2497, %v2499, %v2495
        %v2501 = vmul.f32 1.0, %v2500
        %v2502 = vrcp.pop %v2486
        %v2503 = vmul.f32 %v2486, %v2502
        %v2504 = vsub.f32 1.0, %v2503
        %v2505 = vmul.f32 %v2502, %v2504
        %v2506 = vadd.f32 %v2502, %v2505
        %vm2507 = vweird.f32 %v2486
        %vm2508 = vweird.f32 %v2502
        %vm2509 = vmor %vm2507, %vm2508
        %v2510 = vsel %vm2509, %v2502, %v2506
        %v2511 = vand.u32 2147483647, %v2486
        %vm2512 = vcmp.eq.f32.partialorder %v2511, 8.507059e+37
        %v2513 = vand.u32 %v2486, 2147483648
        %v2514 = vor.u32 1.1754944e-38, %v2513
        %v2515 = vsel %vm2512, %v2514, %v2510
        %v2516 = vmul.f32 1.0, %v2515
        %v2517 = vperm.slane %v2501, 0
        %v2518 = vperm.slane %v2516, 0
        %v2519 = vmul.f32 %v1527, %v2517
        %v2520 = vmul.f32 %v1528, %v2518
        %v2521 = vmul.f32 %v1529, %v2517
        %v2522 = vmul.f32 %v1530, %v2518
        %v2523 = vld [vmem:[#allocation16] sm:$0xff]
        %v2524 = vld [vmem:[#allocation16 + $0x8] sm:$0xff]
        %v2525 = vld [vmem:[#allocation16 + $0x10] sm:$0xff]
        %v2526 = vld [vmem:[#allocation16 + $0x18] sm:$0xff]
        %v2527 = vld [vmem:[#allocation16 + $0x20] sm:$0xff]
        %v2528 = vld [vmem:[#allocation16 + $0x28] sm:$0xff]
        %v2529 = vld [vmem:[#allocation16 + $0x30] sm:$0xff]
        %v2530 = vld [vmem:[#allocation16 + $0x38] sm:$0xff]
        %2531 = vrot.lane.b32.xlu0 %v2519, 17
        %v2532 = vpop.permute.xlu0 %2531
        %2533 = vrot.lane.b32.xlu0 %v2521, 17
        %v2534 = vpop.permute.xlu0 %2533
        %2535 = vrot.lane.b32.xlu0 %v2520, 17
        %v2536 = vpop.permute.xlu0 %2535
        %2537 = vrot.lane.b32.xlu0 %v2522, 17
        %v2538 = vpop.permute.xlu0 %2537
        %v2539 = vsel %vm717, %v2532, %v2536
        %v2540 = vsel %vm717, %v2534, %v2538
        %v2541 = vsel %vm717, %v2536, %v2532
        %v2542 = vsel %vm717, %v2538, %v2534
        %v2543 = vmul.f32 %v2541, %v723
        %v2544 = vmul.f32 %v2539, %v724
        %v2545 = vmul.f32 %v2542, %v723
        %v2546 = vmul.f32 %v2540, %v724
        %2547 = vrot.lane.b32.xlu0 %v2519, 16
        %v2548 = vpop.permute.xlu0 %2547
        %2549 = vrot.lane.b32.xlu0 %v2521, 16
        %v2550 = vpop.permute.xlu0 %2549
        %2551 = vrot.lane.b32.xlu0 %v2520, 16
        %v2552 = vpop.permute.xlu0 %2551
        %2553 = vrot.lane.b32.xlu0 %v2522, 16
        %v2554 = vpop.permute.xlu0 %2553
        %v2555 = vsel %vm733, %v2548, %v2552
        %v2556 = vsel %vm733, %v2550, %v2554
        %v2557 = vsel %vm733, %v2552, %v2548
        %v2558 = vsel %vm733, %v2554, %v2550
        %v2559 = vmul.f32 %v2557, %v739
        %v2560 = vmul.f32 %v2555, %v740
        %v2561 = vmul.f32 %v2558, %v739
        %v2562 = vmul.f32 %v2556, %v740
        %2563 = vrot.lane.b32.xlu0 %v2519, 15
        %v2564 = vpop.permute.xlu0 %2563
        %2565 = vrot.lane.b32.xlu0 %v2521, 15
        %v2566 = vpop.permute.xlu0 %2565
        %2567 = vrot.lane.b32.xlu0 %v2520, 15
        %v2568 = vpop.permute.xlu0 %2567
        %2569 = vrot.lane.b32.xlu0 %v2522, 15
        %v2570 = vpop.permute.xlu0 %2569
        %v2571 = vsel %vm749, %v2564, %v2568
        %v2572 = vsel %vm749, %v2566, %v2570
        %v2573 = vsel %vm749, %v2568, %v2564
        %v2574 = vsel %vm749, %v2570, %v2566
        %v2575 = vmul.f32 %v2573, %v755
        %v2576 = vmul.f32 %v2571, %v756
        %v2577 = vmul.f32 %v2574, %v755
        %v2578 = vmul.f32 %v2572, %v756
        %2579 = vrot.lane.b32.xlu0 %v2519, 1
        %v2580 = vpop.permute.xlu0 %2579
        %2581 = vrot.lane.b32.xlu0 %v2521, 1
        %v2582 = vpop.permute.xlu0 %2581
        %2583 = vrot.lane.b32.xlu0 %v2520, 1
        %v2584 = vpop.permute.xlu0 %2583
        %2585 = vrot.lane.b32.xlu0 %v2522, 1
        %v2586 = vpop.permute.xlu0 %2585
        %v2587 = vsel %vm765, %v2580, %v2584
        %v2588 = vsel %vm765, %v2582, %v2586
        %v2589 = vsel %vm765, %v2584, %v2580
        %v2590 = vsel %vm765, %v2586, %v2582
        %v2591 = vmul.f32 %v2589, %v771
        %v2592 = vmul.f32 %v2587, %v772
        %v2593 = vmul.f32 %v2590, %v771
        %v2594 = vmul.f32 %v2588, %v772
        %2595 = vrot.lane.b32.xlu0 %v2519, 127
        %v2596 = vpop.permute.xlu0 %2595
        %2597 = vrot.lane.b32.xlu0 %v2521, 127
        %v2598 = vpop.permute.xlu0 %2597
        %2599 = vrot.lane.b32.xlu0 %v2520, 127
        %v2600 = vpop.permute.xlu0 %2599
        %2601 = vrot.lane.b32.xlu0 %v2522, 127
        %v2602 = vpop.permute.xlu0 %2601
        %v2603 = vsel %vm781, %v2596, %v2600
        %v2604 = vsel %vm781, %v2598, %v2602
        %v2605 = vsel %vm781, %v2600, %v2596
        %v2606 = vsel %vm781, %v2602, %v2598
        %v2607 = vmul.f32 %v2603, %v787
        %v2608 = vmul.f32 %v2605, %v788
        %v2609 = vmul.f32 %v2604, %v787
        %v2610 = vmul.f32 %v2606, %v788
        %2611 = vrot.lane.b32.xlu0 %v2519, 113
        %v2612 = vpop.permute.xlu0 %2611
        %2613 = vrot.lane.b32.xlu0 %v2521, 113
        %v2614 = vpop.permute.xlu0 %2613
        %2615 = vrot.lane.b32.xlu0 %v2520, 113
        %v2616 = vpop.permute.xlu0 %2615
        %2617 = vrot.lane.b32.xlu0 %v2522, 113
        %v2618 = vpop.permute.xlu0 %2617
        %v2619 = vsel %vm797, %v2612, %v2616
        %v2620 = vsel %vm797, %v2614, %v2618
        %v2621 = vsel %vm797, %v2616, %v2612
        %v2622 = vsel %vm797, %v2618, %v2614
        %v2623 = vmul.f32 %v2619, %v803
        %v2624 = vmul.f32 %v2621, %v804
        %v2625 = vmul.f32 %v2620, %v803
        %v2626 = vmul.f32 %v2622, %v804
        %2627 = vrot.lane.b32.xlu0 %v2519, 112
        %v2628 = vpop.permute.xlu0 %2627
        %2629 = vrot.lane.b32.xlu0 %v2521, 112
        %v2630 = vpop.permute.xlu0 %2629
        %2631 = vrot.lane.b32.xlu0 %v2520, 112
        %v2632 = vpop.permute.xlu0 %2631
        %2633 = vrot.lane.b32.xlu0 %v2522, 112
        %v2634 = vpop.permute.xlu0 %2633
        %v2635 = vsel %vm813, %v2628, %v2632
        %v2636 = vsel %vm813, %v2630, %v2634
        %v2637 = vsel %vm813, %v2632, %v2628
        %v2638 = vsel %vm813, %v2634, %v2630
        %v2639 = vmul.f32 %v2635, %v819
        %v2640 = vmul.f32 %v2637, %v820
        %v2641 = vmul.f32 %v2636, %v819
        %v2642 = vmul.f32 %v2638, %v820
        %2643 = vrot.lane.b32.xlu0 %v2519, 111
        %v2644 = vpop.permute.xlu0 %2643
        %2645 = vrot.lane.b32.xlu0 %v2521, 111
        %v2646 = vpop.permute.xlu0 %2645
        %2647 = vrot.lane.b32.xlu0 %v2520, 111
        %v2648 = vpop.permute.xlu0 %2647
        %2649 = vrot.lane.b32.xlu0 %v2522, 111
        %v2650 = vpop.permute.xlu0 %2649
        %v2651 = vsel %vm829, %v2644, %v2648
        %v2652 = vsel %vm829, %v2646, %v2650
        %v2653 = vsel %vm829, %v2648, %v2644
        %v2654 = vsel %vm829, %v2650, %v2646
        %v2655 = vmul.f32 %v2651, %v835
        %v2656 = vmul.f32 %v2653, %v836
        %v2657 = vmul.f32 %v2652, %v835
        %v2658 = vmul.f32 %v2654, %v836
        %v2659 = vpack.c.bf16 %v2545, %v2543
        %v2660 = vpack.c.bf16 %v2546, %v2544
        %v2661 = vpack.c.bf16 %v2561, %v2559
        %v2662 = vpack.c.bf16 %v2562, %v2560
        %v2663 = vpack.c.bf16 %v2577, %v2575
        %v2664 = vpack.c.bf16 %v2578, %v2576
        %v2665 = vpack.c.bf16 %v2593, %v2591
        %v2666 = vpack.c.bf16 %v2594, %v2592
        %v2667 = vpack.c.bf16 %v2521, %v2519
        %v2668 = vpack.c.bf16 %v2522, %v2520
        %v2669 = vpack.c.bf16 %v2609, %v2607
        %v2670 = vpack.c.bf16 %v2610, %v2608
        %v2671 = vpack.c.bf16 %v2625, %v2623
        %v2672 = vpack.c.bf16 %v2626, %v2624
        %v2673 = vpack.c.bf16 %v2641, %v2639
        %v2674 = vpack.c.bf16 %v2642, %v2640
        %v2675 = vpack.c.bf16 %v2657, %v2655
        %v2676 = vpack.c.bf16 %v2658, %v2656
        %v2677 = vld [vmem:[#allocation18] sm:$0xff]
        %v2678 = vld [vmem:[#allocation18 + $0x8] sm:$0xff]
        %v2679 = vld [vmem:[#allocation18 + $0x10] sm:$0xff]
        %v2680 = vld [vmem:[#allocation18 + $0x18] sm:$0xff]
        %v2681 = vld [vmem:[#allocation18 + $0x20] sm:$0xff]
        %v2682 = vld [vmem:[#allocation18 + $0x28] sm:$0xff]
        %v2683 = vld [vmem:[#allocation18 + $0x30] sm:$0xff]
        %v2684 = vld [vmem:[#allocation18 + $0x38] sm:$0xff]
        %2686 = vset.pattern.permute.xlu0 0
        %2687 = vperm.xlu0 %2686, %v2677
        %v2688 = vpop.permute.xlu0 %2687
        %2691 = vset.pattern.permute.xlu0 0
        %2692 = vperm.xlu0 %2691, %v2678
        %v2693 = vpop.permute.xlu0 %2692
        %2696 = vset.pattern.permute.xlu0 0
        %2697 = vperm.xlu0 %2696, %v2679
        %v2698 = vpop.permute.xlu0 %2697
        %2701 = vset.pattern.permute.xlu0 0
        %2702 = vperm.xlu0 %2701, %v2680
        %v2703 = vpop.permute.xlu0 %2702
        %2706 = vset.pattern.permute.xlu0 0
        %2707 = vperm.xlu0 %2706, %v2681
        %v2708 = vpop.permute.xlu0 %2707
        %2711 = vset.pattern.permute.xlu0 0
        %2712 = vperm.xlu0 %2711, %v2682
        %v2713 = vpop.permute.xlu0 %2712
        %2716 = vset.pattern.permute.xlu0 0
        %2717 = vperm.xlu0 %2716, %v2683
        %v2718 = vpop.permute.xlu0 %2717
        %2721 = vset.pattern.permute.xlu0 0
        %2722 = vperm.xlu0 %2721, %v2684
        %v2723 = vpop.permute.xlu0 %2722
        %v2733 = vunpack.c.l.b16 %v2523
        %v2734 = vunpack.c.h.b16 %v2523
        %v2735 = vunpack.c.l.b16 %v2524
        %v2736 = vunpack.c.h.b16 %v2524
        %v2737 = vunpack.c.l.b16 %v2525
        %v2738 = vunpack.c.h.b16 %v2525
        %v2739 = vunpack.c.l.b16 %v2526
        %v2740 = vunpack.c.h.b16 %v2526
        %v2741 = vunpack.c.l.b16 %v2527
        %v2742 = vunpack.c.h.b16 %v2527
        %v2743 = vunpack.c.l.b16 %v2528
        %v2744 = vunpack.c.h.b16 %v2528
        %v2745 = vunpack.c.l.b16 %v2529
        %v2746 = vunpack.c.h.b16 %v2529
        %v2747 = vunpack.c.l.b16 %v2530
        %v2748 = vunpack.c.h.b16 %v2530
        %v2749 = vpack.c.b16 %v2735, %v2733
        %v2750 = vpack.c.b16 %v2736, %v2734
        %v2751 = vpack.c.b16 %v2739, %v2737
        %v2752 = vpack.c.b16 %v2740, %v2738
        %v2753 = vpack.c.b16 %v2743, %v2741
        %v2754 = vpack.c.b16 %v2744, %v2742
        %v2755 = vpack.c.b16 %v2747, %v2745
        %v2756 = vpack.c.b16 %v2748, %v2746
        %v2762 = vsel %vm1080, %v2750, 0
        %v2765 = vsel %vm1080, %v2752, 0
        %v2768 = vsel %vm1080, %v2754, 0
        %v2771 = vsel %vm1080, %v2756, 0
        %2773 = vmatpush.bf16.msra.mxu0 %v2673
        %2774 = vmatpush.bf16.msra.mxu0 %v2671
        %2775 = vmatpush.bf16.msra.mxu0 %v2669
        %2776 = vmatpush.bf16.msra.mxu0 %v2667
        %2777 = vmatpush.bf16.msra.mxu0 %v2665
        %2778 = vmatpush.bf16.msra.mxu0 %v2663
        %2779 = vmatpush.bf16.msra.mxu0 %v2661
        %2780 = vmatpush.bf16.msra.mxu0 %v2659
        %2781 = vmatmul.bf16.gmra.mxu0 %v2749
        %v2782 = vpop.f32.mrf.mxu0
        %v2783 = vadd.f32 %v2688, %v2782
        %v2784 = vpop.f32.mrf.mxu0
        %v2785 = vadd.f32 %v2693, %v2784
        %2786 = vmatmul.bf16.gmra.mxu0 %v2751
        %v2787 = vpop.f32.mrf.mxu0
        %v2788 = vadd.f32 %v2698, %v2787
        %v2789 = vpop.f32.mrf.mxu0
        %v2790 = vadd.f32 %v2703, %v2789
        %2791 = vmatmul.bf16.gmra.mxu0 %v2753
        %v2792 = vpop.f32.mrf.mxu0
        %v2793 = vadd.f32 %v2708, %v2792
        %v2794 = vpop.f32.mrf.mxu0
        %v2795 = vadd.f32 %v2713, %v2794
        %2796 = vmatmul.bf16.gmra.mxu0 %v2755
        %v2797 = vpop.f32.mrf.mxu0
        %v2798 = vadd.f32 %v2718, %v2797
        %v2799 = vpop.f32.mrf.mxu0
        %v2800 = vadd.f32 %v2723, %v2799
        %2801 = vdwg.mxu0
        %2802 = vmatpush.bf16.msra.mxu0 0
        %2803 = vmatpush.bf16.msra.mxu0 0
        %2804 = vmatpush.bf16.msra.mxu0 0
        %2805 = vmatpush.bf16.msra.mxu0 0
        %2806 = vmatpush.bf16.msra.mxu0 0
        %2807 = vmatpush.bf16.msra.mxu0 0
        %2808 = vmatpush.bf16.msra.mxu0 0
        %2809 = vmatpush.bf16.msra.mxu0 %v2675
        %2810 = vmatmul.bf16.gmra.mxu0 %v2762
        %v2811 = vpop.f32.mrf.mxu0
        %v2812 = vadd.f32 %v2783, %v2811
        %v2813 = vpop.f32.mrf.mxu0
        %v2814 = vadd.f32 %v2785, %v2813
        %2815 = vmatmul.bf16.gmra.mxu0 %v2765
        %v2816 = vpop.f32.mrf.mxu0
        %v2817 = vadd.f32 %v2788, %v2816
        %v2818 = vpop.f32.mrf.mxu0
        %v2819 = vadd.f32 %v2790, %v2818
        %2820 = vmatmul.bf16.gmra.mxu0 %v2768
        %v2821 = vpop.f32.mrf.mxu0
        %v2822 = vadd.f32 %v2793, %v2821
        %v2823 = vpop.f32.mrf.mxu0
        %v2824 = vadd.f32 %v2795, %v2823
        %2825 = vmatmul.bf16.gmra.mxu0 %v2771
        %v2826 = vpop.f32.mrf.mxu0
        %v2827 = vadd.f32 %v2798, %v2826
        %v2828 = vpop.f32.mrf.mxu0
        %v2829 = vadd.f32 %v2800, %v2828
        %2830 = vdwg.mxu0
        %2831 = vmatpush.bf16.msra.mxu0 %v2674
        %2832 = vmatpush.bf16.msra.mxu0 %v2672
        %2833 = vmatpush.bf16.msra.mxu0 %v2670
        %2834 = vmatpush.bf16.msra.mxu0 %v2668
        %2835 = vmatpush.bf16.msra.mxu0 %v2666
        %2836 = vmatpush.bf16.msra.mxu0 %v2664
        %2837 = vmatpush.bf16.msra.mxu0 %v2662
        %2838 = vmatpush.bf16.msra.mxu0 %v2660
        %2839 = vmatmul.bf16.gmra.mxu0 %v2749
        %v2840 = vpop.f32.mrf.mxu0
        %v2841 = vadd.f32 %v2688, %v2840
        %v2842 = vpop.f32.mrf.mxu0
        %v2843 = vadd.f32 %v2693, %v2842
        %2844 = vmatmul.bf16.gmra.mxu0 %v2751
        %v2845 = vpop.f32.mrf.mxu0
        %v2846 = vadd.f32 %v2698, %v2845
        %v2847 = vpop.f32.mrf.mxu0
        %v2848 = vadd.f32 %v2703, %v2847
        %2849 = vmatmul.bf16.gmra.mxu0 %v2753
        %v2850 = vpop.f32.mrf.mxu0
        %v2851 = vadd.f32 %v2708, %v2850
        %v2852 = vpop.f32.mrf.mxu0
        %v2853 = vadd.f32 %v2713, %v2852
        %2854 = vmatmul.bf16.gmra.mxu0 %v2755
        %v2855 = vpop.f32.mrf.mxu0
        %v2856 = vadd.f32 %v2718, %v2855
        %v2857 = vpop.f32.mrf.mxu0
        %v2858 = vadd.f32 %v2723, %v2857
        %2859 = vdwg.mxu0
        %2860 = vmatpush.bf16.msra.mxu0 0
        %2861 = vmatpush.bf16.msra.mxu0 0
        %2862 = vmatpush.bf16.msra.mxu0 0
        %2863 = vmatpush.bf16.msra.mxu0 0
        %2864 = vmatpush.bf16.msra.mxu0 0
        %2865 = vmatpush.bf16.msra.mxu0 0
        %2866 = vmatpush.bf16.msra.mxu0 0
        %2867 = vmatpush.bf16.msra.mxu0 %v2676
        %2868 = vmatmul.bf16.gmra.mxu0 %v2762
        %v2869 = vpop.f32.mrf.mxu0
        %v2870 = vadd.f32 %v2841, %v2869
        %v2871 = vpop.f32.mrf.mxu0
        %v2872 = vadd.f32 %v2843, %v2871
        %2873 = vmatmul.bf16.gmra.mxu0 %v2765
        %v2874 = vpop.f32.mrf.mxu0
        %v2875 = vadd.f32 %v2846, %v2874
        %v2876 = vpop.f32.mrf.mxu0
        %v2877 = vadd.f32 %v2848, %v2876
        %2878 = vmatmul.bf16.gmra.mxu0 %v2768
        %v2879 = vpop.f32.mrf.mxu0
        %v2880 = vadd.f32 %v2851, %v2879
        %v2881 = vpop.f32.mrf.mxu0
        %v2882 = vadd.f32 %v2853, %v2881
        %2883 = vmatmul.bf16.gmra.mxu0 %v2771
        %v2884 = vpop.f32.mrf.mxu0
        %v2885 = vadd.f32 %v2856, %v2884
        %v2886 = vpop.f32.mrf.mxu0
        %v2887 = vadd.f32 %v2858, %v2886
        %2888 = vdwg.mxu0
        %v2889 = vld [vmem:[#allocation19] sm:$0xff]
        %v2890 = vld [vmem:[#allocation19 + $0x8] sm:$0xff]
        %v2891 = vld [vmem:[#allocation19 + $0x10] sm:$0xf]
        %v2892 = vld [vmem:[#allocation19 + $0x14] sm:$0xff]
        %v2893 = vld [vmem:[#allocation19 + $0x1c] sm:$0xff]
        %v2894 = vld [vmem:[#allocation19 + $0x24] sm:$0xf]
        %2895 = vrot.lane.b32.xlu0 %v2812, 17
        %v2896 = vpop.permute.xlu0 %2895
        %2897 = vrot.lane.b32.xlu0 %v2814, 17
        %v2898 = vpop.permute.xlu0 %2897
        %2899 = vrot.lane.b32.xlu0 %v2817, 17
        %v2900 = vpop.permute.xlu0 %2899
        %2901 = vrot.lane.b32.xlu0 %v2819, 17
        %v2902 = vpop.permute.xlu0 %2901
        %2903 = vrot.lane.b32.xlu0 %v2822, 17
        %v2904 = vpop.permute.xlu0 %2903
        %2905 = vrot.lane.b32.xlu0 %v2824, 17
        %v2906 = vpop.permute.xlu0 %2905
        %2907 = vrot.lane.b32.xlu0 %v2827, 17
        %v2908 = vpop.permute.xlu0 %2907
        %2909 = vrot.lane.b32.xlu0 %v2829, 17
        %v2910 = vpop.permute.xlu0 %2909
        %2911 = vrot.lane.b32.xlu0 %v2870, 17
        %v2912 = vpop.permute.xlu0 %2911
        %2913 = vrot.lane.b32.xlu0 %v2872, 17
        %v2914 = vpop.permute.xlu0 %2913
        %2915 = vrot.lane.b32.xlu0 %v2875, 17
        %v2916 = vpop.permute.xlu0 %2915
        %2917 = vrot.lane.b32.xlu0 %v2877, 17
        %v2918 = vpop.permute.xlu0 %2917
        %2919 = vrot.lane.b32.xlu0 %v2880, 17
        %v2920 = vpop.permute.xlu0 %2919
        %2921 = vrot.lane.b32.xlu0 %v2882, 17
        %v2922 = vpop.permute.xlu0 %2921
        %2923 = vrot.lane.b32.xlu0 %v2885, 17
        %v2924 = vpop.permute.xlu0 %2923
        %2925 = vrot.lane.b32.xlu0 %v2887, 17
        %v2926 = vpop.permute.xlu0 %2925
        %v2927 = vsel %vm717, %v2896, %v2912
        %v2928 = vsel %vm717, %v2898, %v2914
        %v2929 = vsel %vm717, %v2900, %v2916
        %v2930 = vsel %vm717, %v2902, %v2918
        %v2931 = vsel %vm717, %v2904, %v2920
        %v2932 = vsel %vm717, %v2906, %v2922
        %v2933 = vsel %vm717, %v2908, %v2924
        %v2934 = vsel %vm717, %v2910, %v2926
        %v2935 = vsel %vm717, %v2912, %v2896
        %v2936 = vsel %vm717, %v2914, %v2898
        %v2937 = vsel %vm717, %v2916, %v2900
        %v2938 = vsel %vm717, %v2918, %v2902
        %v2939 = vsel %vm717, %v2920, %v2904
        %v2940 = vsel %vm717, %v2922, %v2906
        %v2941 = vsel %vm717, %v2924, %v2908
        %v2942 = vsel %vm717, %v2926, %v2910
        %v2943 = vmul.f32 %v2935, %v723
        %v2944 = vmul.f32 %v2927, %v724
        %v2945 = vmul.f32 %v2936, %v723
        %v2946 = vmul.f32 %v2928, %v724
        %v2947 = vmul.f32 %v2937, %v723
        %v2948 = vmul.f32 %v2929, %v724
        %v2949 = vmul.f32 %v2938, %v723
        %v2950 = vmul.f32 %v2930, %v724
        %v2951 = vmul.f32 %v2939, %v723
        %v2952 = vmul.f32 %v2931, %v724
        %v2953 = vmul.f32 %v2940, %v723
        %v2954 = vmul.f32 %v2932, %v724
        %v2955 = vmul.f32 %v2941, %v723
        %v2956 = vmul.f32 %v2933, %v724
        %v2957 = vmul.f32 %v2942, %v723
        %v2958 = vmul.f32 %v2934, %v724
        %2959 = vrot.lane.b32.xlu0 %v2812, 16
        %v2960 = vpop.permute.xlu0 %2959
        %2961 = vrot.lane.b32.xlu0 %v2814, 16
        %v2962 = vpop.permute.xlu0 %2961
        %2963 = vrot.lane.b32.xlu0 %v2817, 16
        %v2964 = vpop.permute.xlu0 %2963
        %2965 = vrot.lane.b32.xlu0 %v2819, 16
        %v2966 = vpop.permute.xlu0 %2965
        %2967 = vrot.lane.b32.xlu0 %v2822, 16
        %v2968 = vpop.permute.xlu0 %2967
        %2969 = vrot.lane.b32.xlu0 %v2824, 16
        %v2970 = vpop.permute.xlu0 %2969
        %2971 = vrot.lane.b32.xlu0 %v2827, 16
        %v2972 = vpop.permute.xlu0 %2971
        %2973 = vrot.lane.b32.xlu0 %v2829, 16
        %v2974 = vpop.permute.xlu0 %2973
        %2975 = vrot.lane.b32.xlu0 %v2870, 16
        %v2976 = vpop.permute.xlu0 %2975
        %2977 = vrot.lane.b32.xlu0 %v2872, 16
        %v2978 = vpop.permute.xlu0 %2977
        %2979 = vrot.lane.b32.xlu0 %v2875, 16
        %v2980 = vpop.permute.xlu0 %2979
        %2981 = vrot.lane.b32.xlu0 %v2877, 16
        %v2982 = vpop.permute.xlu0 %2981
        %2983 = vrot.lane.b32.xlu0 %v2880, 16
        %v2984 = vpop.permute.xlu0 %2983
        %2985 = vrot.lane.b32.xlu0 %v2882, 16
        %v2986 = vpop.permute.xlu0 %2985
        %2987 = vrot.lane.b32.xlu0 %v2885, 16
        %v2988 = vpop.permute.xlu0 %2987
        %2989 = vrot.lane.b32.xlu0 %v2887, 16
        %v2990 = vpop.permute.xlu0 %2989
        %v2991 = vsel %vm733, %v2960, %v2976
        %v2992 = vsel %vm733, %v2962, %v2978
        %v2993 = vsel %vm733, %v2964, %v2980
        %v2994 = vsel %vm733, %v2966, %v2982
        %v2995 = vsel %vm733, %v2968, %v2984
        %v2996 = vsel %vm733, %v2970, %v2986
        %v2997 = vsel %vm733, %v2972, %v2988
        %v2998 = vsel %vm733, %v2974, %v2990
        %v2999 = vsel %vm733, %v2976, %v2960
        %v3000 = vsel %vm733, %v2978, %v2962
        %v3001 = vsel %vm733, %v2980, %v2964
        %v3002 = vsel %vm733, %v2982, %v2966
        %v3003 = vsel %vm733, %v2984, %v2968
        %v3004 = vsel %vm733, %v2986, %v2970
        %v3005 = vsel %vm733, %v2988, %v2972
        %v3006 = vsel %vm733, %v2990, %v2974
        %v3007 = vmul.f32 %v2999, %v739
        %v3008 = vmul.f32 %v2991, %v740
        %v3009 = vmul.f32 %v3000, %v739
        %v3010 = vmul.f32 %v2992, %v740
        %v3011 = vmul.f32 %v3001, %v739
        %v3012 = vmul.f32 %v2993, %v740
        %v3013 = vmul.f32 %v3002, %v739
        %v3014 = vmul.f32 %v2994, %v740
        %v3015 = vmul.f32 %v3003, %v739
        %v3016 = vmul.f32 %v2995, %v740
        %v3017 = vmul.f32 %v3004, %v739
        %v3018 = vmul.f32 %v2996, %v740
        %v3019 = vmul.f32 %v3005, %v739
        %v3020 = vmul.f32 %v2997, %v740
        %v3021 = vmul.f32 %v3006, %v739
        %v3022 = vmul.f32 %v2998, %v740
        %3023 = vrot.lane.b32.xlu0 %v2812, 15
        %v3024 = vpop.permute.xlu0 %3023
        %3025 = vrot.lane.b32.xlu0 %v2814, 15
        %v3026 = vpop.permute.xlu0 %3025
        %3027 = vrot.lane.b32.xlu0 %v2817, 15
        %v3028 = vpop.permute.xlu0 %3027
        %3029 = vrot.lane.b32.xlu0 %v2819, 15
        %v3030 = vpop.permute.xlu0 %3029
        %3031 = vrot.lane.b32.xlu0 %v2822, 15
        %v3032 = vpop.permute.xlu0 %3031
        %3033 = vrot.lane.b32.xlu0 %v2824, 15
        %v3034 = vpop.permute.xlu0 %3033
        %3035 = vrot.lane.b32.xlu0 %v2827, 15
        %v3036 = vpop.permute.xlu0 %3035
        %3037 = vrot.lane.b32.xlu0 %v2829, 15
        %v3038 = vpop.permute.xlu0 %3037
        %3039 = vrot.lane.b32.xlu0 %v2870, 15
        %v3040 = vpop.permute.xlu0 %3039
        %3041 = vrot.lane.b32.xlu0 %v2872, 15
        %v3042 = vpop.permute.xlu0 %3041
        %3043 = vrot.lane.b32.xlu0 %v2875, 15
        %v3044 = vpop.permute.xlu0 %3043
        %3045 = vrot.lane.b32.xlu0 %v2877, 15
        %v3046 = vpop.permute.xlu0 %3045
        %3047 = vrot.lane.b32.xlu0 %v2880, 15
        %v3048 = vpop.permute.xlu0 %3047
        %3049 = vrot.lane.b32.xlu0 %v2882, 15
        %v3050 = vpop.permute.xlu0 %3049
        %3051 = vrot.lane.b32.xlu0 %v2885, 15
        %v3052 = vpop.permute.xlu0 %3051
        %3053 = vrot.lane.b32.xlu0 %v2887, 15
        %v3054 = vpop.permute.xlu0 %3053
        %v3055 = vsel %vm749, %v3024, %v3040
        %v3056 = vsel %vm749, %v3026, %v3042
        %v3057 = vsel %vm749, %v3028, %v3044
        %v3058 = vsel %vm749, %v3030, %v3046
        %v3059 = vsel %vm749, %v3032, %v3048
        %v3060 = vsel %vm749, %v3034, %v3050
        %v3061 = vsel %vm749, %v3036, %v3052
        %v3062 = vsel %vm749, %v3038, %v3054
        %v3063 = vsel %vm749, %v3040, %v3024
        %v3064 = vsel %vm749, %v3042, %v3026
        %v3065 = vsel %vm749, %v3044, %v3028
        %v3066 = vsel %vm749, %v3046, %v3030
        %v3067 = vsel %vm749, %v3048, %v3032
        %v3068 = vsel %vm749, %v3050, %v3034
        %v3069 = vsel %vm749, %v3052, %v3036
        %v3070 = vsel %vm749, %v3054, %v3038
        %v3071 = vmul.f32 %v3063, %v755
        %v3072 = vmul.f32 %v3055, %v756
        %v3073 = vmul.f32 %v3064, %v755
        %v3074 = vmul.f32 %v3056, %v756
        %v3075 = vmul.f32 %v3065, %v755
        %v3076 = vmul.f32 %v3057, %v756
        %v3077 = vmul.f32 %v3066, %v755
        %v3078 = vmul.f32 %v3058, %v756
        %v3079 = vmul.f32 %v3067, %v755
        %v3080 = vmul.f32 %v3059, %v756
        %v3081 = vmul.f32 %v3068, %v755
        %v3082 = vmul.f32 %v3060, %v756
        %v3083 = vmul.f32 %v3069, %v755
        %v3084 = vmul.f32 %v3061, %v756
        %v3085 = vmul.f32 %v3070, %v755
        %v3086 = vmul.f32 %v3062, %v756
        %3087 = vrot.lane.b32.xlu0 %v2812, 1
        %v3088 = vpop.permute.xlu0 %3087
        %3089 = vrot.lane.b32.xlu0 %v2814, 1
        %v3090 = vpop.permute.xlu0 %3089
        %3091 = vrot.lane.b32.xlu0 %v2817, 1
        %v3092 = vpop.permute.xlu0 %3091
        %3093 = vrot.lane.b32.xlu0 %v2819, 1
        %v3094 = vpop.permute.xlu0 %3093
        %3095 = vrot.lane.b32.xlu0 %v2822, 1
        %v3096 = vpop.permute.xlu0 %3095
        %3097 = vrot.lane.b32.xlu0 %v2824, 1
        %v3098 = vpop.permute.xlu0 %3097
        %3099 = vrot.lane.b32.xlu0 %v2827, 1
        %v3100 = vpop.permute.xlu0 %3099
        %3101 = vrot.lane.b32.xlu0 %v2829, 1
        %v3102 = vpop.permute.xlu0 %3101
        %3103 = vrot.lane.b32.xlu0 %v2870, 1
        %v3104 = vpop.permute.xlu0 %3103
        %3105 = vrot.lane.b32.xlu0 %v2872, 1
        %v3106 = vpop.permute.xlu0 %3105
        %3107 = vrot.lane.b32.xlu0 %v2875, 1
        %v3108 = vpop.permute.xlu0 %3107
        %3109 = vrot.lane.b32.xlu0 %v2877, 1
        %v3110 = vpop.permute.xlu0 %3109
        %3111 = vrot.lane.b32.xlu0 %v2880, 1
        %v3112 = vpop.permute.xlu0 %3111
        %3113 = vrot.lane.b32.xlu0 %v2882, 1
        %v3114 = vpop.permute.xlu0 %3113
        %3115 = vrot.lane.b32.xlu0 %v2885, 1
        %v3116 = vpop.permute.xlu0 %3115
        %3117 = vrot.lane.b32.xlu0 %v2887, 1
        %v3118 = vpop.permute.xlu0 %3117
        %v3119 = vsel %vm765, %v3088, %v3104
        %v3120 = vsel %vm765, %v3090, %v3106
        %v3121 = vsel %vm765, %v3092, %v3108
        %v3122 = vsel %vm765, %v3094, %v3110
        %v3123 = vsel %vm765, %v3096, %v3112
        %v3124 = vsel %vm765, %v3098, %v3114
        %v3125 = vsel %vm765, %v3100, %v3116
        %v3126 = vsel %vm765, %v3102, %v3118
        %v3127 = vsel %vm765, %v3104, %v3088
        %v3128 = vsel %vm765, %v3106, %v3090
        %v3129 = vsel %vm765, %v3108, %v3092
        %v3130 = vsel %vm765, %v3110, %v3094
        %v3131 = vsel %vm765, %v3112, %v3096
        %v3132 = vsel %vm765, %v3114, %v3098
        %v3133 = vsel %vm765, %v3116, %v3100
        %v3134 = vsel %vm765, %v3118, %v3102
        %v3135 = vmul.f32 %v3127, %v771
        %v3136 = vmul.f32 %v3119, %v772
        %v3137 = vmul.f32 %v3128, %v771
        %v3138 = vmul.f32 %v3120, %v772
        %v3139 = vmul.f32 %v3129, %v771
        %v3140 = vmul.f32 %v3121, %v772
        %v3141 = vmul.f32 %v3130, %v771
        %v3142 = vmul.f32 %v3122, %v772
        %v3143 = vmul.f32 %v3131, %v771
        %v3144 = vmul.f32 %v3123, %v772
        %v3145 = vmul.f32 %v3132, %v771
        %v3146 = vmul.f32 %v3124, %v772
        %v3147 = vmul.f32 %v3133, %v771
        %v3148 = vmul.f32 %v3125, %v772
        %v3149 = vmul.f32 %v3134, %v771
        %v3150 = vmul.f32 %v3126, %v772
        %3151 = vrot.lane.b32.xlu0 %v2812, 127
        %v3152 = vpop.permute.xlu0 %3151
        %3153 = vrot.lane.b32.xlu0 %v2814, 127
        %v3154 = vpop.permute.xlu0 %3153
        %3155 = vrot.lane.b32.xlu0 %v2817, 127
        %v3156 = vpop.permute.xlu0 %3155
        %3157 = vrot.lane.b32.xlu0 %v2819, 127
        %v3158 = vpop.permute.xlu0 %3157
        %3159 = vrot.lane.b32.xlu0 %v2822, 127
        %v3160 = vpop.permute.xlu0 %3159
        %3161 = vrot.lane.b32.xlu0 %v2824, 127
        %v3162 = vpop.permute.xlu0 %3161
        %3163 = vrot.lane.b32.xlu0 %v2827, 127
        %v3164 = vpop.permute.xlu0 %3163
        %3165 = vrot.lane.b32.xlu0 %v2829, 127
        %v3166 = vpop.permute.xlu0 %3165
        %3167 = vrot.lane.b32.xlu0 %v2870, 127
        %v3168 = vpop.permute.xlu0 %3167
        %3169 = vrot.lane.b32.xlu0 %v2872, 127
        %v3170 = vpop.permute.xlu0 %3169
        %3171 = vrot.lane.b32.xlu0 %v2875, 127
        %v3172 = vpop.permute.xlu0 %3171
        %3173 = vrot.lane.b32.xlu0 %v2877, 127
        %v3174 = vpop.permute.xlu0 %3173
        %3175 = vrot.lane.b32.xlu0 %v2880, 127
        %v3176 = vpop.permute.xlu0 %3175
        %3177 = vrot.lane.b32.xlu0 %v2882, 127
        %v3178 = vpop.permute.xlu0 %3177
        %3179 = vrot.lane.b32.xlu0 %v2885, 127
        %v3180 = vpop.permute.xlu0 %3179
        %3181 = vrot.lane.b32.xlu0 %v2887, 127
        %v3182 = vpop.permute.xlu0 %3181
        %v3183 = vsel %vm781, %v3152, %v3168
        %v3184 = vsel %vm781, %v3154, %v3170
        %v3185 = vsel %vm781, %v3156, %v3172
        %v3186 = vsel %vm781, %v3158, %v3174
        %v3187 = vsel %vm781, %v3160, %v3176
        %v3188 = vsel %vm781, %v3162, %v3178
        %v3189 = vsel %vm781, %v3164, %v3180
        %v3190 = vsel %vm781, %v3166, %v3182
        %v3191 = vsel %vm781, %v3168, %v3152
        %v3192 = vsel %vm781, %v3170, %v3154
        %v3193 = vsel %vm781, %v3172, %v3156
        %v3194 = vsel %vm781, %v3174, %v3158
        %v3195 = vsel %vm781, %v3176, %v3160
        %v3196 = vsel %vm781, %v3178, %v3162
        %v3197 = vsel %vm781, %v3180, %v3164
        %v3198 = vsel %vm781, %v3182, %v3166
        %v3199 = vmul.f32 %v3183, %v787
        %v3200 = vmul.f32 %v3191, %v788
        %v3201 = vmul.f32 %v3184, %v787
        %v3202 = vmul.f32 %v3192, %v788
        %v3203 = vmul.f32 %v3185, %v787
        %v3204 = vmul.f32 %v3193, %v788
        %v3205 = vmul.f32 %v3186, %v787
        %v3206 = vmul.f32 %v3194, %v788
        %v3207 = vmul.f32 %v3187, %v787
        %v3208 = vmul.f32 %v3195, %v788
        %v3209 = vmul.f32 %v3188, %v787
        %v3210 = vmul.f32 %v3196, %v788
        %v3211 = vmul.f32 %v3189, %v787
        %v3212 = vmul.f32 %v3197, %v788
        %v3213 = vmul.f32 %v3190, %v787
        %v3214 = vmul.f32 %v3198, %v788
        %3215 = vrot.lane.b32.xlu0 %v2812, 113
        %v3216 = vpop.permute.xlu0 %3215
        %3217 = vrot.lane.b32.xlu0 %v2814, 113
        %v3218 = vpop.permute.xlu0 %3217
        %3219 = vrot.lane.b32.xlu0 %v2817, 113
        %v3220 = vpop.permute.xlu0 %3219
        %3221 = vrot.lane.b32.xlu0 %v2819, 113
        %v3222 = vpop.permute.xlu0 %3221
        %3223 = vrot.lane.b32.xlu0 %v2822, 113
        %v3224 = vpop.permute.xlu0 %3223
        %3225 = vrot.lane.b32.xlu0 %v2824, 113
        %v3226 = vpop.permute.xlu0 %3225
        %3227 = vrot.lane.b32.xlu0 %v2827, 113
        %v3228 = vpop.permute.xlu0 %3227
        %3229 = vrot.lane.b32.xlu0 %v2829, 113
        %v3230 = vpop.permute.xlu0 %3229
        %3231 = vrot.lane.b32.xlu0 %v2870, 113
        %v3232 = vpop.permute.xlu0 %3231
        %3233 = vrot.lane.b32.xlu0 %v2872, 113
        %v3234 = vpop.permute.xlu0 %3233
        %3235 = vrot.lane.b32.xlu0 %v2875, 113
        %v3236 = vpop.permute.xlu0 %3235
        %3237 = vrot.lane.b32.xlu0 %v2877, 113
        %v3238 = vpop.permute.xlu0 %3237
        %3239 = vrot.lane.b32.xlu0 %v2880, 113
        %v3240 = vpop.permute.xlu0 %3239
        %3241 = vrot.lane.b32.xlu0 %v2882, 113
        %v3242 = vpop.permute.xlu0 %3241
        %3243 = vrot.lane.b32.xlu0 %v2885, 113
        %v3244 = vpop.permute.xlu0 %3243
        %3245 = vrot.lane.b32.xlu0 %v2887, 113
        %v3246 = vpop.permute.xlu0 %3245
        %v3247 = vsel %vm797, %v3216, %v3232
        %v3248 = vsel %vm797, %v3218, %v3234
        %v3249 = vsel %vm797, %v3220, %v3236
        %v3250 = vsel %vm797, %v3222, %v3238
        %v3251 = vsel %vm797, %v3224, %v3240
        %v3252 = vsel %vm797, %v3226, %v3242
        %v3253 = vsel %vm797, %v3228, %v3244
        %v3254 = vsel %vm797, %v3230, %v3246
        %v3255 = vsel %vm797, %v3232, %v3216
        %v3256 = vsel %vm797, %v3234, %v3218
        %v3257 = vsel %vm797, %v3236, %v3220
        %v3258 = vsel %vm797, %v3238, %v3222
        %v3259 = vsel %vm797, %v3240, %v3224
        %v3260 = vsel %vm797, %v3242, %v3226
        %v3261 = vsel %vm797, %v3244, %v3228
        %v3262 = vsel %vm797, %v3246, %v3230
        %v3263 = vmul.f32 %v3247, %v803
        %v3264 = vmul.f32 %v3255, %v804
        %v3265 = vmul.f32 %v3248, %v803
        %v3266 = vmul.f32 %v3256, %v804
        %v3267 = vmul.f32 %v3249, %v803
        %v3268 = vmul.f32 %v3257, %v804
        %v3269 = vmul.f32 %v3250, %v803
        %v3270 = vmul.f32 %v3258, %v804
        %v3271 = vmul.f32 %v3251, %v803
        %v3272 = vmul.f32 %v3259, %v804
        %v3273 = vmul.f32 %v3252, %v803
        %v3274 = vmul.f32 %v3260, %v804
        %v3275 = vmul.f32 %v3253, %v803
        %v3276 = vmul.f32 %v3261, %v804
        %v3277 = vmul.f32 %v3254, %v803
        %v3278 = vmul.f32 %v3262, %v804
        %3279 = vrot.lane.b32.xlu0 %v2812, 112
        %v3280 = vpop.permute.xlu0 %3279
        %3281 = vrot.lane.b32.xlu0 %v2814, 112
        %v3282 = vpop.permute.xlu0 %3281
        %3283 = vrot.lane.b32.xlu0 %v2817, 112
        %v3284 = vpop.permute.xlu0 %3283
        %3285 = vrot.lane.b32.xlu0 %v2819, 112
        %v3286 = vpop.permute.xlu0 %3285
        %3287 = vrot.lane.b32.xlu0 %v2822, 112
        %v3288 = vpop.permute.xlu0 %3287
        %3289 = vrot.lane.b32.xlu0 %v2824, 112
        %v3290 = vpop.permute.xlu0 %3289
        %3291 = vrot.lane.b32.xlu0 %v2827, 112
        %v3292 = vpop.permute.xlu0 %3291
        %3293 = vrot.lane.b32.xlu0 %v2829, 112
        %v3294 = vpop.permute.xlu0 %3293
        %3295 = vrot.lane.b32.xlu0 %v2870, 112
        %v3296 = vpop.permute.xlu0 %3295
        %3297 = vrot.lane.b32.xlu0 %v2872, 112
        %v3298 = vpop.permute.xlu0 %3297
        %3299 = vrot.lane.b32.xlu0 %v2875, 112
        %v3300 = vpop.permute.xlu0 %3299
        %3301 = vrot.lane.b32.xlu0 %v2877, 112
        %v3302 = vpop.permute.xlu0 %3301
        %3303 = vrot.lane.b32.xlu0 %v2880, 112
        %v3304 = vpop.permute.xlu0 %3303
        %3305 = vrot.lane.b32.xlu0 %v2882, 112
        %v3306 = vpop.permute.xlu0 %3305
        %3307 = vrot.lane.b32.xlu0 %v2885, 112
        %v3308 = vpop.permute.xlu0 %3307
        %3309 = vrot.lane.b32.xlu0 %v2887, 112
        %v3310 = vpop.permute.xlu0 %3309
        %v3311 = vsel %vm813, %v3280, %v3296
        %v3312 = vsel %vm813, %v3282, %v3298
        %v3313 = vsel %vm813, %v3284, %v3300
        %v3314 = vsel %vm813, %v3286, %v3302
        %v3315 = vsel %vm813, %v3288, %v3304
        %v3316 = vsel %vm813, %v3290, %v3306
        %v3317 = vsel %vm813, %v3292, %v3308
        %v3318 = vsel %vm813, %v3294, %v3310
        %v3319 = vsel %vm813, %v3296, %v3280
        %v3320 = vsel %vm813, %v3298, %v3282
        %v3321 = vsel %vm813, %v3300, %v3284
        %v3322 = vsel %vm813, %v3302, %v3286
        %v3323 = vsel %vm813, %v3304, %v3288
        %v3324 = vsel %vm813, %v3306, %v3290
        %v3325 = vsel %vm813, %v3308, %v3292
        %v3326 = vsel %vm813, %v3310, %v3294
        %v3327 = vmul.f32 %v3311, %v819
        %v3328 = vmul.f32 %v3319, %v820
        %v3329 = vmul.f32 %v3312, %v819
        %v3330 = vmul.f32 %v3320, %v820
        %v3331 = vmul.f32 %v3313, %v819
        %v3332 = vmul.f32 %v3321, %v820
        %v3333 = vmul.f32 %v3314, %v819
        %v3334 = vmul.f32 %v3322, %v820
        %v3335 = vmul.f32 %v3315, %v819
        %v3336 = vmul.f32 %v3323, %v820
        %v3337 = vmul.f32 %v3316, %v819
        %v3338 = vmul.f32 %v3324, %v820
        %v3339 = vmul.f32 %v3317, %v819
        %v3340 = vmul.f32 %v3325, %v820
        %v3341 = vmul.f32 %v3318, %v819
        %v3342 = vmul.f32 %v3326, %v820
        %3343 = vrot.lane.b32.xlu0 %v2812, 111
        %v3344 = vpop.permute.xlu0 %3343
        %3345 = vrot.lane.b32.xlu0 %v2814, 111
        %v3346 = vpop.permute.xlu0 %3345
        %3347 = vrot.lane.b32.xlu0 %v2817, 111
        %v3348 = vpop.permute.xlu0 %3347
        %3349 = vrot.lane.b32.xlu0 %v2819, 111
        %v3350 = vpop.permute.xlu0 %3349
        %3351 = vrot.lane.b32.xlu0 %v2822, 111
        %v3352 = vpop.permute.xlu0 %3351
        %3353 = vrot.lane.b32.xlu0 %v2824, 111
        %v3354 = vpop.permute.xlu0 %3353
        %3355 = vrot.lane.b32.xlu0 %v2827, 111
        %v3356 = vpop.permute.xlu0 %3355
        %3357 = vrot.lane.b32.xlu0 %v2829, 111
        %v3358 = vpop.permute.xlu0 %3357
        %3359 = vrot.lane.b32.xlu0 %v2870, 111
        %v3360 = vpop.permute.xlu0 %3359
        %3361 = vrot.lane.b32.xlu0 %v2872, 111
        %v3362 = vpop.permute.xlu0 %3361
        %3363 = vrot.lane.b32.xlu0 %v2875, 111
        %v3364 = vpop.permute.xlu0 %3363
        %3365 = vrot.lane.b32.xlu0 %v2877, 111
        %v3366 = vpop.permute.xlu0 %3365
        %3367 = vrot.lane.b32.xlu0 %v2880, 111
        %v3368 = vpop.permute.xlu0 %3367
        %3369 = vrot.lane.b32.xlu0 %v2882, 111
        %v3370 = vpop.permute.xlu0 %3369
        %3371 = vrot.lane.b32.xlu0 %v2885, 111
        %v3372 = vpop.permute.xlu0 %3371
        %3373 = vrot.lane.b32.xlu0 %v2887, 111
        %v3374 = vpop.permute.xlu0 %3373
        %v3375 = vsel %vm829, %v3344, %v3360
        %v3376 = vsel %vm829, %v3346, %v3362
        %v3377 = vsel %vm829, %v3348, %v3364
        %v3378 = vsel %vm829, %v3350, %v3366
        %v3379 = vsel %vm829, %v3352, %v3368
        %v3380 = vsel %vm829, %v3354, %v3370
        %v3381 = vsel %vm829, %v3356, %v3372
        %v3382 = vsel %vm829, %v3358, %v3374
        %v3383 = vsel %vm829, %v3360, %v3344
        %v3384 = vsel %vm829, %v3362, %v3346
        %v3385 = vsel %vm829, %v3364, %v3348
        %v3386 = vsel %vm829, %v3366, %v3350
        %v3387 = vsel %vm829, %v3368, %v3352
        %v3388 = vsel %vm829, %v3370, %v3354
        %v3389 = vsel %vm829, %v3372, %v3356
        %v3390 = vsel %vm829, %v3374, %v3358
        %v3391 = vmul.f32 %v3375, %v835
        %v3392 = vmul.f32 %v3383, %v836
        %v3393 = vmul.f32 %v3376, %v835
        %v3394 = vmul.f32 %v3384, %v836
        %v3395 = vmul.f32 %v3377, %v835
        %v3396 = vmul.f32 %v3385, %v836
        %v3397 = vmul.f32 %v3378, %v835
        %v3398 = vmul.f32 %v3386, %v836
        %v3399 = vmul.f32 %v3379, %v835
        %v3400 = vmul.f32 %v3387, %v836
        %v3401 = vmul.f32 %v3380, %v835
        %v3402 = vmul.f32 %v3388, %v836
        %v3403 = vmul.f32 %v3381, %v835
        %v3404 = vmul.f32 %v3389, %v836
        %v3405 = vmul.f32 %v3382, %v835
        %v3406 = vmul.f32 %v3390, %v836
        %v3407 = vpack.c.bf16 %v2945, %v2943
        %v3408 = vpack.c.bf16 %v2946, %v2944
        %v3409 = vpack.c.bf16 %v2949, %v2947
        %v3410 = vpack.c.bf16 %v2950, %v2948
        %v3411 = vpack.c.bf16 %v2953, %v2951
        %v3412 = vpack.c.bf16 %v2954, %v2952
        %v3413 = vpack.c.bf16 %v2957, %v2955
        %v3414 = vpack.c.bf16 %v2958, %v2956
        %v3415 = vpack.c.bf16 %v3009, %v3007
        %v3416 = vpack.c.bf16 %v3010, %v3008
        %v3417 = vpack.c.bf16 %v3013, %v3011
        %v3418 = vpack.c.bf16 %v3014, %v3012
        %v3419 = vpack.c.bf16 %v3017, %v3015
        %v3420 = vpack.c.bf16 %v3018, %v3016
        %v3421 = vpack.c.bf16 %v3021, %v3019
        %v3422 = vpack.c.bf16 %v3022, %v3020
        %v3423 = vpack.c.bf16 %v3073, %v3071
        %v3424 = vpack.c.bf16 %v3074, %v3072
        %v3425 = vpack.c.bf16 %v3077, %v3075
        %v3426 = vpack.c.bf16 %v3078, %v3076
        %v3427 = vpack.c.bf16 %v3081, %v3079
        %v3428 = vpack.c.bf16 %v3082, %v3080
        %v3429 = vpack.c.bf16 %v3085, %v3083
        %v3430 = vpack.c.bf16 %v3086, %v3084
        %v3431 = vpack.c.bf16 %v3137, %v3135
        %v3432 = vpack.c.bf16 %v3138, %v3136
        %v3433 = vpack.c.bf16 %v3141, %v3139
        %v3434 = vpack.c.bf16 %v3142, %v3140
        %v3435 = vpack.c.bf16 %v3145, %v3143
        %v3436 = vpack.c.bf16 %v3146, %v3144
        %v3437 = vpack.c.bf16 %v3149, %v3147
        %v3438 = vpack.c.bf16 %v3150, %v3148
        %v3439 = vpack.c.bf16 %v2814, %v2812
        %v3440 = vpack.c.bf16 %v2872, %v2870
        %v3441 = vpack.c.bf16 %v2819, %v2817
        %v3442 = vpack.c.bf16 %v2877, %v2875
        %v3443 = vpack.c.bf16 %v2824, %v2822
        %v3444 = vpack.c.bf16 %v2882, %v2880
        %v3445 = vpack.c.bf16 %v2829, %v2827
        %v3446 = vpack.c.bf16 %v2887, %v2885
        %v3447 = vpack.c.bf16 %v3201, %v3199
        %v3448 = vpack.c.bf16 %v3202, %v3200
        %v3449 = vpack.c.bf16 %v3205, %v3203
        %v3450 = vpack.c.bf16 %v3206, %v3204
        %v3451 = vpack.c.bf16 %v3209, %v3207
        %v3452 = vpack.c.bf16 %v3210, %v3208
        %v3453 = vpack.c.bf16 %v3213, %v3211
        %v3454 = vpack.c.bf16 %v3214, %v3212
        %v3455 = vpack.c.bf16 %v3265, %v3263
        %v3456 = vpack.c.bf16 %v3266, %v3264
        %v3457 = vpack.c.bf16 %v3269, %v3267
        %v3458 = vpack.c.bf16 %v3270, %v3268
        %v3459 = vpack.c.bf16 %v3273, %v3271
        %v3460 = vpack.c.bf16 %v3274, %v3272
        %v3461 = vpack.c.bf16 %v3277, %v3275
        %v3462 = vpack.c.bf16 %v3278, %v3276
        %v3463 = vpack.c.bf16 %v3329, %v3327
        %v3464 = vpack.c.bf16 %v3330, %v3328
        %v3465 = vpack.c.bf16 %v3333, %v3331
        %v3466 = vpack.c.bf16 %v3334, %v3332
        %v3467 = vpack.c.bf16 %v3337, %v3335
        %v3468 = vpack.c.bf16 %v3338, %v3336
        %v3469 = vpack.c.bf16 %v3341, %v3339
        %v3470 = vpack.c.bf16 %v3342, %v3340
        %v3471 = vpack.c.bf16 %v3393, %v3391
        %v3472 = vpack.c.bf16 %v3394, %v3392
        %v3473 = vpack.c.bf16 %v3397, %v3395
        %v3474 = vpack.c.bf16 %v3398, %v3396
        %v3475 = vpack.c.bf16 %v3401, %v3399
        %v3476 = vpack.c.bf16 %v3402, %v3400
        %v3477 = vpack.c.bf16 %v3405, %v3403
        %v3478 = vpack.c.bf16 %v3406, %v3404
        %v3479 = vld [vmem:[#allocation21] sm:$0xff]
        %v3480 = vld [vmem:[#allocation21 + $0x8] sm:$0xff]
        %3482 = vset.pattern.permute.xlu0 0
        %3483 = vperm.xlu0 %3482, %v3479
        %v3484 = vpop.permute.xlu0 %3483
        %3487 = vset.pattern.permute.xlu0 0
        %3488 = vperm.xlu0 %3487, %v3480
        %v3489 = vpop.permute.xlu0 %3488
        %v3497 = vunpack.c.l.b16 %v2889
        %v3498 = vunpack.c.h.b16 %v2889
        %v3499 = vunpack.c.l.b16 %v2890
        %v3500 = vunpack.c.h.b16 %v2890
        %v3501 = vunpack.c.l.b16 %v2891
        %v3502 = vunpack.c.l.b16 %v2892
        %v3503 = vunpack.c.h.b16 %v2892
        %v3504 = vunpack.c.l.b16 %v2893
        %v3505 = vunpack.c.h.b16 %v2893
        %v3506 = vunpack.c.l.b16 %v2894
        %v3507 = vpack.c.b16 %v3502, %v3497
        %v3508 = vpack.c.b16 %v3503, %v3498
        %v3509 = vpack.c.b16 %v3504, %v3499
        %v3510 = vpack.c.b16 %v3505, %v3500
        %v3511 = vpack.c.b16 %v3506, %v3501
        %vm3516 = vcmask 523264
        %v3518 = vsel %vm3516, %v3511, 0
        %3520 = vmatpush.bf16.msra.mxu0 %v3421
        %3521 = vmatpush.bf16.msra.mxu0 %v3419
        %3522 = vmatpush.bf16.msra.mxu0 %v3417
        %3523 = vmatpush.bf16.msra.mxu0 %v3415
        %3524 = vmatpush.bf16.msra.mxu0 %v3413
        %3525 = vmatpush.bf16.msra.mxu0 %v3411
        %3526 = vmatpush.bf16.msra.mxu0 %v3409
        %3527 = vmatpush.bf16.msra.mxu0 %v3407
        %3528 = vmatmul.bf16.gmra.mxu0 %v3507
        %v3529 = vpop.f32.mrf.mxu0
        %v3530 = vadd.f32 %v3484, %v3529
        %v3531 = vpop.f32.mrf.mxu0
        %v3532 = vadd.f32 %v3489, %v3531
        %3533 = vdwg.mxu0
        %3534 = vmatpush.bf16.msra.mxu0 %v3437
        %3535 = vmatpush.bf16.msra.mxu0 %v3435
        %3536 = vmatpush.bf16.msra.mxu0 %v3433
        %3537 = vmatpush.bf16.msra.mxu0 %v3431
        %3538 = vmatpush.bf16.msra.mxu0 %v3429
        %3539 = vmatpush.bf16.msra.mxu0 %v3427
        %3540 = vmatpush.bf16.msra.mxu0 %v3425
        %3541 = vmatpush.bf16.msra.mxu0 %v3423
        %3542 = vmatmul.bf16.gmra.mxu0 %v3508
        %v3543 = vpop.f32.mrf.mxu0
        %v3544 = vadd.f32 %v3530, %v3543
        %v3545 = vpop.f32.mrf.mxu0
        %v3546 = vadd.f32 %v3532, %v3545
        %3547 = vdwg.mxu0
        %3548 = vmatpush.bf16.msra.mxu0 %v3453
        %3549 = vmatpush.bf16.msra.mxu0 %v3451
        %3550 = vmatpush.bf16.msra.mxu0 %v3449
        %3551 = vmatpush.bf16.msra.mxu0 %v3447
        %3552 = vmatpush.bf16.msra.mxu0 %v3445
        %3553 = vmatpush.bf16.msra.mxu0 %v3443
        %3554 = vmatpush.bf16.msra.mxu0 %v3441
        %3555 = vmatpush.bf16.msra.mxu0 %v3439
        %3556 = vmatmul.bf16.gmra.mxu0 %v3509
        %v3557 = vpop.f32.mrf.mxu0
        %v3558 = vadd.f32 %v3544, %v3557
        %v3559 = vpop.f32.mrf.mxu0
        %v3560 = vadd.f32 %v3546, %v3559
        %3561 = vdwg.mxu0
        %3562 = vmatpush.bf16.msra.mxu0 %v3469
        %3563 = vmatpush.bf16.msra.mxu0 %v3467
        %3564 = vmatpush.bf16.msra.mxu0 %v3465
        %3565 = vmatpush.bf16.msra.mxu0 %v3463
        %3566 = vmatpush.bf16.msra.mxu0 %v3461
        %3567 = vmatpush.bf16.msra.mxu0 %v3459
        %3568 = vmatpush.bf16.msra.mxu0 %v3457
        %3569 = vmatpush.bf16.msra.mxu0 %v3455
        %3570 = vmatmul.bf16.gmra.mxu0 %v3510
        %v3571 = vpop.f32.mrf.mxu0
        %v3572 = vadd.f32 %v3558, %v3571
        %v3573 = vpop.f32.mrf.mxu0
        %v3574 = vadd.f32 %v3560, %v3573
        %3575 = vdwg.mxu0
        %3576 = vmatpush.bf16.msra.mxu0 0
        %3577 = vmatpush.bf16.msra.mxu0 0
        %3578 = vmatpush.bf16.msra.mxu0 0
        %3579 = vmatpush.bf16.msra.mxu0 0
        %3580 = vmatpush.bf16.msra.mxu0 %v3477
        %3581 = vmatpush.bf16.msra.mxu0 %v3475
        %3582 = vmatpush.bf16.msra.mxu0 %v3473
        %3583 = vmatpush.bf16.msra.mxu0 %v3471
        %3584 = vmatmul.bf16.gmra.mxu0 %v3518
        %v3585 = vpop.f32.mrf.mxu0
        %v3586 = vadd.f32 %v3572, %v3585
        %v3587 = vpop.f32.mrf.mxu0
        %v3588 = vadd.f32 %v3574, %v3587
        %3589 = vdwg.mxu0
        %3590 = vmatpush.bf16.msra.mxu0 %v3422
        %3591 = vmatpush.bf16.msra.mxu0 %v3420
        %3592 = vmatpush.bf16.msra.mxu0 %v3418
        %3593 = vmatpush.bf16.msra.mxu0 %v3416
        %3594 = vmatpush.bf16.msra.mxu0 %v3414
        %3595 = vmatpush.bf16.msra.mxu0 %v3412
        %3596 = vmatpush.bf16.msra.mxu0 %v3410
        %3597 = vmatpush.bf16.msra.mxu0 %v3408
        %3598 = vmatmul.bf16.gmra.mxu0 %v3507
        %v3599 = vpop.f32.mrf.mxu0
        %v3600 = vadd.f32 %v3484, %v3599
        %v3601 = vpop.f32.mrf.mxu0
        %v3602 = vadd.f32 %v3489, %v3601
        %3603 = vdwg.mxu0
        %3604 = vmatpush.bf16.msra.mxu0 %v3438
        %3605 = vmatpush.bf16.msra.mxu0 %v3436
        %3606 = vmatpush.bf16.msra.mxu0 %v3434
        %3607 = vmatpush.bf16.msra.mxu0 %v3432
        %3608 = vmatpush.bf16.msra.mxu0 %v3430
        %3609 = vmatpush.bf16.msra.mxu0 %v3428
        %3610 = vmatpush.bf16.msra.mxu0 %v3426
        %3611 = vmatpush.bf16.msra.mxu0 %v3424
        %3612 = vmatmul.bf16.gmra.mxu0 %v3508
        %v3613 = vpop.f32.mrf.mxu0
        %v3614 = vadd.f32 %v3600, %v3613
        %v3615 = vpop.f32.mrf.mxu0
        %v3616 = vadd.f32 %v3602, %v3615
        %3617 = vdwg.mxu0
        %3618 = vmatpush.bf16.msra.mxu0 %v3454
        %3619 = vmatpush.bf16.msra.mxu0 %v3452
        %3620 = vmatpush.bf16.msra.mxu0 %v3450
        %3621 = vmatpush.bf16.msra.mxu0 %v3448
        %3622 = vmatpush.bf16.msra.mxu0 %v3446
        %3623 = vmatpush.bf16.msra.mxu0 %v3444
        %3624 = vmatpush.bf16.msra.mxu0 %v3442
        %3625 = vmatpush.bf16.msra.mxu0 %v3440
        %3626 = vmatmul.bf16.gmra.mxu0 %v3509
        %v3627 = vpop.f32.mrf.mxu0
        %v3628 = vadd.f32 %v3614, %v3627
        %v3629 = vpop.f32.mrf.mxu0
        %v3630 = vadd.f32 %v3616, %v3629
        %3631 = vdwg.mxu0
        %3632 = vmatpush.bf16.msra.mxu0 %v3470
        %3633 = vmatpush.bf16.msra.mxu0 %v3468
        %3634 = vmatpush.bf16.msra.mxu0 %v3466
        %3635 = vmatpush.bf16.msra.mxu0 %v3464
        %3636 = vmatpush.bf16.msra.mxu0 %v3462
        %3637 = vmatpush.bf16.msra.mxu0 %v3460
        %3638 = vmatpush.bf16.msra.mxu0 %v3458
        %3639 = vmatpush.bf16.msra.mxu0 %v3456
        %3640 = vmatmul.bf16.gmra.mxu0 %v3510
        %v3641 = vpop.f32.mrf.mxu0
        %v3642 = vadd.f32 %v3628, %v3641
        %v3643 = vpop.f32.mrf.mxu0
        %v3644 = vadd.f32 %v3630, %v3643
        %3645 = vdwg.mxu0
        %3646 = vmatpush.bf16.msra.mxu0 0
        %3647 = vmatpush.bf16.msra.mxu0 0
        %3648 = vmatpush.bf16.msra.mxu0 0
        %3649 = vmatpush.bf16.msra.mxu0 0
        %3650 = vmatpush.bf16.msra.mxu0 %v3478
        %3651 = vmatpush.bf16.msra.mxu0 %v3476
        %3652 = vmatpush.bf16.msra.mxu0 %v3474
        %3653 = vmatpush.bf16.msra.mxu0 %v3472
        %3654 = vmatmul.bf16.gmra.mxu0 %v3518
        %v3655 = vpop.f32.mrf.mxu0
        %v3656 = vadd.f32 %v3642, %v3655
        %v3657 = vpop.f32.mrf.mxu0
        %v3658 = vadd.f32 %v3644, %v3657
        %3659 = vdwg.mxu0
        %3660 = vst [vmem:[%s705] sm:$0xff] %v3586
        %3661 = vst [vmem:[%s705 + $0x8] sm:$0xff] %v3656
        %3662 = vst [vmem:[%s705 + $0x10] sm:$0xff] %v3588
        %3663 = vst [vmem:[%s705 + $0x18] sm:$0xff] %v3658
        %p3664 = scmp.lt.s32.totalorder %s33, 1
        %s3665 = scalar_select %p3664, %s33, 1
        %s3666 = smul.addr %s3665, 4
        %s3667 = smul.addr %s3666, 8
        %s3668 = scalar_lea.vmem %s15, %s3667
        // Predicated region
        $region133: #{srnet_cbam_forward.1} parent=79 // pred_check
          %p3669 = pneg %p371
        $region134: #{srnet_cbam_forward.1} parent=79 // pred_check_branch
          %3671 = sbr.rel (%p3669) target = $region136
        $region135: #{srnet_cbam_forward.1} parent=79 // pred_region
          _
        $region136: #{srnet_cbam_forward.1} parent=79 // pred_fallthru
          _
      $region80: #{srnet_cbam_forward.1} parent=5 // pred_fallthru
        _
      %p3672 = scmp.le.s32.totalorder 2, %s28
      // Predicated region
      $region137: #{srnet_cbam_forward.1} parent=5 // pred_check
        %p3673 = pneg %p3672
      $region138: #{srnet_cbam_forward.1} parent=5 // pred_check_branch
        %3675 = sbr.rel (%p3673) target = $region140
      $region139: #{srnet_cbam_forward.1} parent=5 // pred_region
        %s3676 = ssub.s32 %s28, 2
        // Predicated region
        $region141: #{srnet_cbam_forward.1} parent=139 // pred_check
          %p3677 = pneg %p377
        $region142: #{srnet_cbam_forward.1} parent=139 // pred_check_branch
          %3679 = sbr.rel (%p3677) target = $region144
        $region143: #{srnet_cbam_forward.1} parent=139 // pred_region
          %p3680 = scmp.lt.s32.totalorder %s34, 1
          %s3681 = scalar_select %p3680, %s34, 1
          %s3682 = smul.addr %s3681, 4
          %s3683 = smul.addr %s3682, 8
          %s3684 = scalar_lea.vmem %s15, %s3683
        $region144: #{srnet_cbam_forward.1} parent=139 // pred_fallthru
          _
      $region140: #{srnet_cbam_forward.1} parent=5 // pred_fallthru
        _
    $region6: #{srnet_cbam_forward.1} parent=1 // loop_footer
      %s32 = sadd.s32 1, %s28
    $region7: #{srnet_cbam_forward.1} parent=1 // loop_footer_branch
      %27 = sbr.rel target = $region3
    $region8: #{srnet_cbam_forward.1} parent=1 // loop_exit
      _
    %3685 = vsyncpa [#allocation3], 1
    %s3686 = scalar_lea.sflag [#allocation3], 1
    %3687 = vsyncpa %s3686, 1
    %3688 = vsyncpa [#allocation5], 1
    %3689 = vsyncpa [#allocation8], 1
    %3690 = vsyncpa [#allocation11], 1
    %3691 = vsyncpa [#allocation14], 1
    %3692 = vsyncpa [#allocation17], 1
    %3693 = vsyncpa [#allocation20], 1

</llo_original>
